<compile_context>
chip_gen: v7x
topology: tpu7x:2x2x1
jax: 0.10.0
libtpu: 0.0.40
codegen_flags: <defaults>
</compile_context>

<pallas_src>
import jax
import jax.numpy as jnp
from jax.experimental import pallas as pl
from jax.experimental.pallas import tpu as pltpu


def conv_bn_relu_kernel(x0_ref, x1_ref, x2_ref, w_ref, scale_ref, shift_ref,
                        o_ref):
    # x{0,1,2}_ref : (1, 1, Hp, Wp, Cin)  padded depth slices d, d+1, d+2
    # w_ref        : (3, 3, 3, Cin, Cout) conv weights (DHWIO)
    # scale_ref    : (1, Cout)            folded BN scale = gamma/sqrt(var+eps)
    # shift_ref    : (1, Cout)            folded BN shift = beta - mean*scale
    # o_ref        : (1, 1, H, W, Cout)
    h = o_ref.shape[2]
    w = o_ref.shape[3]
    cout = o_ref.shape[4]
    cin = x0_ref.shape[4]

    acc = jnp.zeros((h * w, cout), dtype=jnp.float32)
    slabs = (x0_ref[0, 0], x1_ref[0, 0], x2_ref[0, 0])   # each (Hp, Wp, Cin)

    for kd in range(3):
        xk = slabs[kd]
        for kh in range(3):
            for kw in range(3):
                # Static window slice; reshape keeps the (lane) channel dim.
                patch = xk[kh:kh + h, kw:kw + w, :].reshape(h * w, cin)
                acc += jnp.dot(patch, w_ref[kd, kh, kw],
                               preferred_element_type=jnp.float32)

    y = acc * scale_ref[...] + shift_ref[...]     # folded BatchNorm (eval)
    y = jnp.maximum(y, 0.0)                       # ReLU (Dropout3d eval = id)
    o_ref[...] = y.reshape(1, 1, h, w, cout).astype(o_ref.dtype)


def conv3d_bn_relu(x, w, scale, shift):
    """One fused stage: reflect-pad conv3x3x3 (no bias) + BN(eval) + ReLU.

    x: (N, D, H, W, Cin) float32 (channels-last)
    w: (3, 3, 3, Cin, Cout) float32
    scale, shift: (Cout,) folded BatchNorm affine
    returns (N, D, H, W, Cout) float32
    """
    n, d, h, w_sp, cin = x.shape
    cout = w.shape[-1]

    # Reflect padding (pure data movement) done in the wrapper.
    xp = jnp.pad(x, ((0, 0), (1, 1), (1, 1), (1, 1), (0, 0)), mode="reflect")
    hp, wp = h + 2, w_sp + 2

    scale2 = scale.reshape(1, cout).astype(jnp.float32)
    shift2 = shift.reshape(1, cout).astype(jnp.float32)

    flops = 2.0 * n * d * h * w_sp * 27 * cin * cout
    bytes_accessed = 4 * (3 * xp.size + w.size + 2 * cout
                          + n * d * h * w_sp * cout)

    grid_spec = pltpu.PrefetchScalarGridSpec(
        num_scalar_prefetch=0,
        grid=(n, d),
        in_specs=[
            # Three overlapping padded depth slices for the current output d.
            pl.BlockSpec((1, 1, hp, wp, cin), lambda i, j: (i, j, 0, 0, 0)),
            pl.BlockSpec((1, 1, hp, wp, cin), lambda i, j: (i, j + 1, 0, 0, 0)),
            pl.BlockSpec((1, 1, hp, wp, cin), lambda i, j: (i, j + 2, 0, 0, 0)),
            # Weights / BN params stay resident (same block every step).
            pl.BlockSpec((3, 3, 3, cin, cout), lambda i, j: (0, 0, 0, 0, 0)),
            pl.BlockSpec((1, cout), lambda i, j: (0, 0)),
            pl.BlockSpec((1, cout), lambda i, j: (0, 0)),
        ],
        out_specs=pl.BlockSpec((1, 1, h, w_sp, cout),
                               lambda i, j: (i, j, 0, 0, 0)),
    )

    return pl.pallas_call(
        conv_bn_relu_kernel,
        out_shape=jax.ShapeDtypeStruct((n, d, h, w_sp, cout), jnp.float32),
        grid_spec=grid_spec,
        compiler_params=pltpu.CompilerParams(
            dimension_semantics=("parallel", "parallel")),
        cost_estimate=pl.CostEstimate(
            flops=int(flops),
            transcendentals=0,
            bytes_accessed=int(bytes_accessed)),
    )(xp, xp, xp, w, scale2, shift2)


def conv_block(x_ncdhw, w1, scale1, shift1, w2, scale2, shift2):
    """Conv_Block forward.  x_ncdhw: (N, Cin, D, H, W) -> (N, Cout, D, H, W)."""
    x = jnp.transpose(x_ncdhw, (0, 2, 3, 4, 1))          # NCDHW -> NDHWC
    y = conv3d_bn_relu(x, w1, scale1, shift1)
    y = conv3d_bn_relu(y, w2, scale2, shift2)
    return jnp.transpose(y, (0, 4, 1, 2, 3))             # NDHWC -> NCDHW


def conv_block_ref(x_ncdhw, w1, scale1, shift1, w2, scale2, shift2):
    """Pure-JAX reference matching the PyTorch module (eval mode)."""
    x = jnp.transpose(x_ncdhw, (0, 2, 3, 4, 1))

    def layer(v, w, scale, shift):
        vp = jnp.pad(v, ((0, 0), (1, 1), (1, 1), (1, 1), (0, 0)),
                     mode="reflect")
        y = jax.lax.conv_general_dilated(
            vp, w, window_strides=(1, 1, 1), padding="VALID",
            dimension_numbers=("NDHWC", "DHWIO", "NDHWC"),
            precision=jax.lax.Precision.HIGHEST)
        return jnp.maximum(y * scale + shift, 0.0)

    y = layer(x, w1, scale1, shift1)
    y = layer(y, w2, scale2, shift2)
    return jnp.transpose(y, (0, 4, 1, 2, 3))


if __name__ == "__main__":
    N, CIN, COUT = 2, 4, 8
    D = H = W = 8
    EPS = 1e-5

    key = jax.random.PRNGKey(0)
    kx, kw1, kw2, kbn = jax.random.split(key, 4)

    x = jax.random.normal(kx, (N, CIN, D, H, W), dtype=jnp.float32)

    # Conv weights in DHWIO layout (transpose of PyTorch's OIDHW).
    w1 = (jax.random.normal(kw1, (3, 3, 3, CIN, COUT), jnp.float32)
          / jnp.sqrt(27.0 * CIN))
    w2 = (jax.random.normal(kw2, (3, 3, 3, COUT, COUT), jnp.float32)
          / jnp.sqrt(27.0 * COUT))

    # Deterministic BatchNorm3d params (inference), folded to scale/shift.
    kg1, kb1, km1, kv1, kg2, kb2, km2, kv2 = jax.random.split(kbn, 8)

    def bn_fold(kg, kb, km, kv, c):
        gamma = 1.0 + 0.1 * jax.random.normal(kg, (c,), jnp.float32)
        beta = 0.1 * jax.random.normal(kb, (c,), jnp.float32)
        mean = 0.1 * jax.random.normal(km, (c,), jnp.float32)
        var = 1.0 + 0.1 * jnp.abs(jax.random.normal(kv, (c,), jnp.float32))
        scale = gamma * jax.lax.rsqrt(var + EPS)
        shift = beta - mean * scale
        return scale, shift

    s1, b1 = bn_fold(kg1, kb1, km1, kv1, COUT)
    s2, b2 = bn_fold(kg2, kb2, km2, kv2, COUT)

    out = conv_block(x, w1, s1, b1, w2, s2, b2)
    out = jax.block_until_ready(out)

    ref = conv_block_ref(x, w1, s1, b1, w2, s2, b2)
    assert out.shape == (N, COUT, D, H, W)
    assert jnp.allclose(out, ref, atol=1e-4, rtol=1e-4), "mismatch vs reference"

    print("KERNEL_OK")
</pallas_src>

<mosaic_0001>
module attributes {stable_mosaic.version = 11 : i64} {
  func.func @conv_bn_relu_kernel(%arg0: i32, %arg1: i32, %arg2: memref<1x1x10x10x4xf32, #tpu.memory_space<vmem>>, %arg3: memref<1x1x10x10x4xf32, #tpu.memory_space<vmem>>, %arg4: memref<1x1x10x10x4xf32, #tpu.memory_space<vmem>>, %arg5: memref<3x3x3x4x8xf32, #tpu.memory_space<vmem>>, %arg6: memref<1x8xf32, #tpu.memory_space<vmem>>, %arg7: memref<1x8xf32, #tpu.memory_space<vmem>>, %arg8: memref<1x1x8x8x8xf32, #tpu.memory_space<vmem>>) attributes {dimension_semantics = [#tpu.dimension_semantics<parallel>, #tpu.dimension_semantics<parallel>], iteration_bounds = array<i64: 2, 8>, scalar_prefetch = 0 : i64, scratch_operands = 0 : i64, tpu.core_type = #tpu.core_type<tc>, window_params = [{transform_indices = @transform_0, window_bounds = array<i64: 1, 1, 10, 10, 4>}, {transform_indices = @transform_1, window_bounds = array<i64: 1, 1, 10, 10, 4>}, {transform_indices = @transform_2, window_bounds = array<i64: 1, 1, 10, 10, 4>}, {pipeline_mode = #tpu.pipeline_mode<synchronous>, transform_indices = @transform_3, window_bounds = array<i64: 3, 3, 3, 4, 8>}, {pipeline_mode = #tpu.pipeline_mode<synchronous>, transform_indices = @transform_4, window_bounds = array<i64: 1, 8>}, {pipeline_mode = #tpu.pipeline_mode<synchronous>, transform_indices = @transform_5, window_bounds = array<i64: 1, 8>}, {transform_indices = @transform_6, window_bounds = array<i64: 1, 1, 8, 8, 8>}]} {
    %cst = arith.constant 0.000000e+00 : f32
    %0 = vector.broadcast %cst : f32 to vector<64x8xf32>
    %c0 = arith.constant 0 : index
    %c0_0 = arith.constant 0 : index
    %c0_1 = arith.constant 0 : index
    %c0_2 = arith.constant 0 : index
    %c0_3 = arith.constant 0 : index
    %1 = vector.load %arg2[%c0, %c0_0, %c0_1, %c0_2, %c0_3] : memref<1x1x10x10x4xf32, #tpu.memory_space<vmem>>, vector<1x1x10x10x4xf32>
    %2 = vector.shape_cast %1 : vector<1x1x10x10x4xf32> to vector<10x10x4xf32>
    %c0_4 = arith.constant 0 : index
    %c0_5 = arith.constant 0 : index
    %c0_6 = arith.constant 0 : index
    %c0_7 = arith.constant 0 : index
    %c0_8 = arith.constant 0 : index
    %3 = vector.load %arg3[%c0_4, %c0_5, %c0_6, %c0_7, %c0_8] : memref<1x1x10x10x4xf32, #tpu.memory_space<vmem>>, vector<1x1x10x10x4xf32>
    %4 = vector.shape_cast %3 : vector<1x1x10x10x4xf32> to vector<10x10x4xf32>
    %c0_9 = arith.constant 0 : index
    %c0_10 = arith.constant 0 : index
    %c0_11 = arith.constant 0 : index
    %c0_12 = arith.constant 0 : index
    %c0_13 = arith.constant 0 : index
    %5 = vector.load %arg4[%c0_9, %c0_10, %c0_11, %c0_12, %c0_13] : memref<1x1x10x10x4xf32, #tpu.memory_space<vmem>>, vector<1x1x10x10x4xf32>
    %6 = vector.shape_cast %5 : vector<1x1x10x10x4xf32> to vector<10x10x4xf32>
    %7 = vector.extract_strided_slice %2 {offsets = [0, 0, 0], sizes = [8, 8, 4], strides = [1, 1, 1]} : vector<10x10x4xf32> to vector<8x8x4xf32>
    %8 = vector.shape_cast %7 : vector<8x8x4xf32> to vector<64x4xf32>
    %c0_14 = arith.constant 0 : index
    %c0_15 = arith.constant 0 : index
    %c0_16 = arith.constant 0 : index
    %c0_17 = arith.constant 0 : index
    %c0_18 = arith.constant 0 : index
    %9 = vector.load %arg5[%c0_14, %c0_15, %c0_16, %c0_17, %c0_18] : memref<3x3x3x4x8xf32, #tpu.memory_space<vmem>>, vector<1x1x1x4x8xf32>
    %10 = vector.shape_cast %9 : vector<1x1x1x4x8xf32> to vector<4x8xf32>
    %cst_19 = arith.constant dense<0.000000e+00> : vector<64x8xf32>
    %11 = tpu.matmul %8, %10, %cst_19 {dimension_numbers = #tpu.dot_dimension_numbers<[1], [0], [0], [1], [0, 0, 1, 1], [], []>} : vector<64x4xf32>, vector<4x8xf32>, vector<64x8xf32> -> vector<64x8xf32>
    %12 = arith.addf %0, %11 : vector<64x8xf32>
    %13 = vector.extract_strided_slice %2 {offsets = [0, 1, 0], sizes = [8, 8, 4], strides = [1, 1, 1]} : vector<10x10x4xf32> to vector<8x8x4xf32>
    %14 = vector.shape_cast %13 : vector<8x8x4xf32> to vector<64x4xf32>
    %c0_20 = arith.constant 0 : index
    %c0_21 = arith.constant 0 : index
    %c1 = arith.constant 1 : index
    %c0_22 = arith.constant 0 : index
    %c0_23 = arith.constant 0 : index
    %15 = vector.load %arg5[%c0_20, %c0_21, %c1, %c0_22, %c0_23] : memref<3x3x3x4x8xf32, #tpu.memory_space<vmem>>, vector<1x1x1x4x8xf32>
    %16 = vector.shape_cast %15 : vector<1x1x1x4x8xf32> to vector<4x8xf32>
    %cst_24 = arith.constant dense<0.000000e+00> : vector<64x8xf32>
    %17 = tpu.matmul %14, %16, %cst_24 {dimension_numbers = #tpu.dot_dimension_numbers<[1], [0], [0], [1], [0, 0, 1, 1], [], []>} : vector<64x4xf32>, vector<4x8xf32>, vector<64x8xf32> -> vector<64x8xf32>
    %18 = arith.addf %12, %17 : vector<64x8xf32>
    %19 = vector.extract_strided_slice %2 {offsets = [0, 2, 0], sizes = [8, 8, 4], strides = [1, 1, 1]} : vector<10x10x4xf32> to vector<8x8x4xf32>
    %20 = vector.shape_cast %19 : vector<8x8x4xf32> to vector<64x4xf32>
    %c0_25 = arith.constant 0 : index
    %c0_26 = arith.constant 0 : index
    %c2 = arith.constant 2 : index
    %c0_27 = arith.constant 0 : index
    %c0_28 = arith.constant 0 : index
    %21 = vector.load %arg5[%c0_25, %c0_26, %c2, %c0_27, %c0_28] : memref<3x3x3x4x8xf32, #tpu.memory_space<vmem>>, vector<1x1x1x4x8xf32>
    %22 = vector.shape_cast %21 : vector<1x1x1x4x8xf32> to vector<4x8xf32>
    %cst_29 = arith.constant dense<0.000000e+00> : vector<64x8xf32>
    %23 = tpu.matmul %20, %22, %cst_29 {dimension_numbers = #tpu.dot_dimension_numbers<[1], [0], [0], [1], [0, 0, 1, 1], [], []>} : vector<64x4xf32>, vector<4x8xf32>, vector<64x8xf32> -> vector<64x8xf32>
    %24 = arith.addf %18, %23 : vector<64x8xf32>
    %25 = vector.extract_strided_slice %2 {offsets = [1, 0, 0], sizes = [8, 8, 4], strides = [1, 1, 1]} : vector<10x10x4xf32> to vector<8x8x4xf32>
    %26 = vector.shape_cast %25 : vector<8x8x4xf32> to vector<64x4xf32>
    %c0_30 = arith.constant 0 : index
    %c1_31 = arith.constant 1 : index
    %c0_32 = arith.constant 0 : index
    %c0_33 = arith.constant 0 : index
    %c0_34 = arith.constant 0 : index
    %27 = vector.load %arg5[%c0_30, %c1_31, %c0_32, %c0_33, %c0_34] : memref<3x3x3x4x8xf32, #tpu.memory_space<vmem>>, vector<1x1x1x4x8xf32>
    %28 = vector.shape_cast %27 : vector<1x1x1x4x8xf32> to vector<4x8xf32>
    %cst_35 = arith.constant dense<0.000000e+00> : vector<64x8xf32>
    %29 = tpu.matmul %26, %28, %cst_35 {dimension_numbers = #tpu.dot_dimension_numbers<[1], [0], [0], [1], [0, 0, 1, 1], [], []>} : vector<64x4xf32>, vector<4x8xf32>, vector<64x8xf32> -> vector<64x8xf32>
    %30 = arith.addf %24, %29 : vector<64x8xf32>
    %31 = vector.extract_strided_slice %2 {offsets = [1, 1, 0], sizes = [8, 8, 4], strides = [1, 1, 1]} : vector<10x10x4xf32> to vector<8x8x4xf32>
    %32 = vector.shape_cast %31 : vector<8x8x4xf32> to vector<64x4xf32>
    %c0_36 = arith.constant 0 : index
    %c1_37 = arith.constant 1 : index
    %c1_38 = arith.constant 1 : index
    %c0_39 = arith.constant 0 : index
    %c0_40 = arith.constant 0 : index
    %33 = vector.load %arg5[%c0_36, %c1_37, %c1_38, %c0_39, %c0_40] : memref<3x3x3x4x8xf32, #tpu.memory_space<vmem>>, vector<1x1x1x4x8xf32>
    %34 = vector.shape_cast %33 : vector<1x1x1x4x8xf32> to vector<4x8xf32>
    %cst_41 = arith.constant dense<0.000000e+00> : vector<64x8xf32>
    %35 = tpu.matmul %32, %34, %cst_41 {dimension_numbers = #tpu.dot_dimension_numbers<[1], [0], [0], [1], [0, 0, 1, 1], [], []>} : vector<64x4xf32>, vector<4x8xf32>, vector<64x8xf32> -> vector<64x8xf32>
    %36 = arith.addf %30, %35 : vector<64x8xf32>
    %37 = vector.extract_strided_slice %2 {offsets = [1, 2, 0], sizes = [8, 8, 4], strides = [1, 1, 1]} : vector<10x10x4xf32> to vector<8x8x4xf32>
    %38 = vector.shape_cast %37 : vector<8x8x4xf32> to vector<64x4xf32>
    %c0_42 = arith.constant 0 : index
    %c1_43 = arith.constant 1 : index
    %c2_44 = arith.constant 2 : index
    %c0_45 = arith.constant 0 : index
    %c0_46 = arith.constant 0 : index
    %39 = vector.load %arg5[%c0_42, %c1_43, %c2_44, %c0_45, %c0_46] : memref<3x3x3x4x8xf32, #tpu.memory_space<vmem>>, vector<1x1x1x4x8xf32>
    %40 = vector.shape_cast %39 : vector<1x1x1x4x8xf32> to vector<4x8xf32>
    %cst_47 = arith.constant dense<0.000000e+00> : vector<64x8xf32>
    %41 = tpu.matmul %38, %40, %cst_47 {dimension_numbers = #tpu.dot_dimension_numbers<[1], [0], [0], [1], [0, 0, 1, 1], [], []>} : vector<64x4xf32>, vector<4x8xf32>, vector<64x8xf32> -> vector<64x8xf32>
    %42 = arith.addf %36, %41 : vector<64x8xf32>
    %43 = vector.extract_strided_slice %2 {offsets = [2, 0, 0], sizes = [8, 8, 4], strides = [1, 1, 1]} : vector<10x10x4xf32> to vector<8x8x4xf32>
    %44 = vector.shape_cast %43 : vector<8x8x4xf32> to vector<64x4xf32>
    %c0_48 = arith.constant 0 : index
    %c2_49 = arith.constant 2 : index
    %c0_50 = arith.constant 0 : index
    %c0_51 = arith.constant 0 : index
    %c0_52 = arith.constant 0 : index
    %45 = vector.load %arg5[%c0_48, %c2_49, %c0_50, %c0_51, %c0_52] : memref<3x3x3x4x8xf32, #tpu.memory_space<vmem>>, vector<1x1x1x4x8xf32>
    %46 = vector.shape_cast %45 : vector<1x1x1x4x8xf32> to vector<4x8xf32>
    %cst_53 = arith.constant dense<0.000000e+00> : vector<64x8xf32>
    %47 = tpu.matmul %44, %46, %cst_53 {dimension_numbers = #tpu.dot_dimension_numbers<[1], [0], [0], [1], [0, 0, 1, 1], [], []>} : vector<64x4xf32>, vector<4x8xf32>, vector<64x8xf32> -> vector<64x8xf32>
    %48 = arith.addf %42, %47 : vector<64x8xf32>
    %49 = vector.extract_strided_slice %2 {offsets = [2, 1, 0], sizes = [8, 8, 4], strides = [1, 1, 1]} : vector<10x10x4xf32> to vector<8x8x4xf32>
    %50 = vector.shape_cast %49 : vector<8x8x4xf32> to vector<64x4xf32>
    %c0_54 = arith.constant 0 : index
    %c2_55 = arith.constant 2 : index
    %c1_56 = arith.constant 1 : index
    %c0_57 = arith.constant 0 : index
    %c0_58 = arith.constant 0 : index
    %51 = vector.load %arg5[%c0_54, %c2_55, %c1_56, %c0_57, %c0_58] : memref<3x3x3x4x8xf32, #tpu.memory_space<vmem>>, vector<1x1x1x4x8xf32>
    %52 = vector.shape_cast %51 : vector<1x1x1x4x8xf32> to vector<4x8xf32>
    %cst_59 = arith.constant dense<0.000000e+00> : vector<64x8xf32>
    %53 = tpu.matmul %50, %52, %cst_59 {dimension_numbers = #tpu.dot_dimension_numbers<[1], [0], [0], [1], [0, 0, 1, 1], [], []>} : vector<64x4xf32>, vector<4x8xf32>, vector<64x8xf32> -> vector<64x8xf32>
    %54 = arith.addf %48, %53 : vector<64x8xf32>
    %55 = vector.extract_strided_slice %2 {offsets = [2, 2, 0], sizes = [8, 8, 4], strides = [1, 1, 1]} : vector<10x10x4xf32> to vector<8x8x4xf32>
    %56 = vector.shape_cast %55 : vector<8x8x4xf32> to vector<64x4xf32>
    %c0_60 = arith.constant 0 : index
    %c2_61 = arith.constant 2 : index
    %c2_62 = arith.constant 2 : index
    %c0_63 = arith.constant 0 : index
    %c0_64 = arith.constant 0 : index
    %57 = vector.load %arg5[%c0_60, %c2_61, %c2_62, %c0_63, %c0_64] : memref<3x3x3x4x8xf32, #tpu.memory_space<vmem>>, vector<1x1x1x4x8xf32>
    %58 = vector.shape_cast %57 : vector<1x1x1x4x8xf32> to vector<4x8xf32>
    %cst_65 = arith.constant dense<0.000000e+00> : vector<64x8xf32>
    %59 = tpu.matmul %56, %58, %cst_65 {dimension_numbers = #tpu.dot_dimension_numbers<[1], [0], [0], [1], [0, 0, 1, 1], [], []>} : vector<64x4xf32>, vector<4x8xf32>, vector<64x8xf32> -> vector<64x8xf32>
    %60 = arith.addf %54, %59 : vector<64x8xf32>
    %61 = vector.extract_strided_slice %4 {offsets = [0, 0, 0], sizes = [8, 8, 4], strides = [1, 1, 1]} : vector<10x10x4xf32> to vector<8x8x4xf32>
    %62 = vector.shape_cast %61 : vector<8x8x4xf32> to vector<64x4xf32>
    %c1_66 = arith.constant 1 : index
    %c0_67 = arith.constant 0 : index
    %c0_68 = arith.constant 0 : index
    %c0_69 = arith.constant 0 : index
    %c0_70 = arith.constant 0 : index
    %63 = vector.load %arg5[%c1_66, %c0_67, %c0_68, %c0_69, %c0_70] : memref<3x3x3x4x8xf32, #tpu.memory_space<vmem>>, vector<1x1x1x4x8xf32>
    %64 = vector.shape_cast %63 : vector<1x1x1x4x8xf32> to vector<4x8xf32>
    %cst_71 = arith.constant dense<0.000000e+00> : vector<64x8xf32>
    %65 = tpu.matmul %62, %64, %cst_71 {dimension_numbers = #tpu.dot_dimension_numbers<[1], [0], [0], [1], [0, 0, 1, 1], [], []>} : vector<64x4xf32>, vector<4x8xf32>, vector<64x8xf32> -> vector<64x8xf32>
    %66 = arith.addf %60, %65 : vector<64x8xf32>
    %67 = vector.extract_strided_slice %4 {offsets = [0, 1, 0], sizes = [8, 8, 4], strides = [1, 1, 1]} : vector<10x10x4xf32> to vector<8x8x4xf32>
    %68 = vector.shape_cast %67 : vector<8x8x4xf32> to vector<64x4xf32>
    %c1_72 = arith.constant 1 : index
    %c0_73 = arith.constant 0 : index
    %c1_74 = arith.constant 1 : index
    %c0_75 = arith.constant 0 : index
    %c0_76 = arith.constant 0 : index
    %69 = vector.load %arg5[%c1_72, %c0_73, %c1_74, %c0_75, %c0_76] : memref<3x3x3x4x8xf32, #tpu.memory_space<vmem>>, vector<1x1x1x4x8xf32>
    %70 = vector.shape_cast %69 : vector<1x1x1x4x8xf32> to vector<4x8xf32>
    %cst_77 = arith.constant dense<0.000000e+00> : vector<64x8xf32>
    %71 = tpu.matmul %68, %70, %cst_77 {dimension_numbers = #tpu.dot_dimension_numbers<[1], [0], [0], [1], [0, 0, 1, 1], [], []>} : vector<64x4xf32>, vector<4x8xf32>, vector<64x8xf32> -> vector<64x8xf32>
    %72 = arith.addf %66, %71 : vector<64x8xf32>
    %73 = vector.extract_strided_slice %4 {offsets = [0, 2, 0], sizes = [8, 8, 4], strides = [1, 1, 1]} : vector<10x10x4xf32> to vector<8x8x4xf32>
    %74 = vector.shape_cast %73 : vector<8x8x4xf32> to vector<64x4xf32>
    %c1_78 = arith.constant 1 : index
    %c0_79 = arith.constant 0 : index
    %c2_80 = arith.constant 2 : index
    %c0_81 = arith.constant 0 : index
    %c0_82 = arith.constant 0 : index
    %75 = vector.load %arg5[%c1_78, %c0_79, %c2_80, %c0_81, %c0_82] : memref<3x3x3x4x8xf32, #tpu.memory_space<vmem>>, vector<1x1x1x4x8xf32>
    %76 = vector.shape_cast %75 : vector<1x1x1x4x8xf32> to vector<4x8xf32>
    %cst_83 = arith.constant dense<0.000000e+00> : vector<64x8xf32>
    %77 = tpu.matmul %74, %76, %cst_83 {dimension_numbers = #tpu.dot_dimension_numbers<[1], [0], [0], [1], [0, 0, 1, 1], [], []>} : vector<64x4xf32>, vector<4x8xf32>, vector<64x8xf32> -> vector<64x8xf32>
    %78 = arith.addf %72, %77 : vector<64x8xf32>
    %79 = vector.extract_strided_slice %4 {offsets = [1, 0, 0], sizes = [8, 8, 4], strides = [1, 1, 1]} : vector<10x10x4xf32> to vector<8x8x4xf32>
    %80 = vector.shape_cast %79 : vector<8x8x4xf32> to vector<64x4xf32>
    %c1_84 = arith.constant 1 : index
    %c1_85 = arith.constant 1 : index
    %c0_86 = arith.constant 0 : index
    %c0_87 = arith.constant 0 : index
    %c0_88 = arith.constant 0 : index
    %81 = vector.load %arg5[%c1_84, %c1_85, %c0_86, %c0_87, %c0_88] : memref<3x3x3x4x8xf32, #tpu.memory_space<vmem>>, vector<1x1x1x4x8xf32>
    %82 = vector.shape_cast %81 : vector<1x1x1x4x8xf32> to vector<4x8xf32>
    %cst_89 = arith.constant dense<0.000000e+00> : vector<64x8xf32>
    %83 = tpu.matmul %80, %82, %cst_89 {dimension_numbers = #tpu.dot_dimension_numbers<[1], [0], [0], [1], [0, 0, 1, 1], [], []>} : vector<64x4xf32>, vector<4x8xf32>, vector<64x8xf32> -> vector<64x8xf32>
    %84 = arith.addf %78, %83 : vector<64x8xf32>
    %85 = vector.extract_strided_slice %4 {offsets = [1, 1, 0], sizes = [8, 8, 4], strides = [1, 1, 1]} : vector<10x10x4xf32> to vector<8x8x4xf32>
    %86 = vector.shape_cast %85 : vector<8x8x4xf32> to vector<64x4xf32>
    %c1_90 = arith.constant 1 : index
    %c1_91 = arith.constant 1 : index
    %c1_92 = arith.constant 1 : index
    %c0_93 = arith.constant 0 : index
    %c0_94 = arith.constant 0 : index
    %87 = vector.load %arg5[%c1_90, %c1_91, %c1_92, %c0_93, %c0_94] : memref<3x3x3x4x8xf32, #tpu.memory_space<vmem>>, vector<1x1x1x4x8xf32>
    %88 = vector.shape_cast %87 : vector<1x1x1x4x8xf32> to vector<4x8xf32>
    %cst_95 = arith.constant dense<0.000000e+00> : vector<64x8xf32>
    %89 = tpu.matmul %86, %88, %cst_95 {dimension_numbers = #tpu.dot_dimension_numbers<[1], [0], [0], [1], [0, 0, 1, 1], [], []>} : vector<64x4xf32>, vector<4x8xf32>, vector<64x8xf32> -> vector<64x8xf32>
    %90 = arith.addf %84, %89 : vector<64x8xf32>
    %91 = vector.extract_strided_slice %4 {offsets = [1, 2, 0], sizes = [8, 8, 4], strides = [1, 1, 1]} : vector<10x10x4xf32> to vector<8x8x4xf32>
    %92 = vector.shape_cast %91 : vector<8x8x4xf32> to vector<64x4xf32>
    %c1_96 = arith.constant 1 : index
    %c1_97 = arith.constant 1 : index
    %c2_98 = arith.constant 2 : index
    %c0_99 = arith.constant 0 : index
    %c0_100 = arith.constant 0 : index
    %93 = vector.load %arg5[%c1_96, %c1_97, %c2_98, %c0_99, %c0_100] : memref<3x3x3x4x8xf32, #tpu.memory_space<vmem>>, vector<1x1x1x4x8xf32>
    %94 = vector.shape_cast %93 : vector<1x1x1x4x8xf32> to vector<4x8xf32>
    %cst_101 = arith.constant dense<0.000000e+00> : vector<64x8xf32>
    %95 = tpu.matmul %92, %94, %cst_101 {dimension_numbers = #tpu.dot_dimension_numbers<[1], [0], [0], [1], [0, 0, 1, 1], [], []>} : vector<64x4xf32>, vector<4x8xf32>, vector<64x8xf32> -> vector<64x8xf32>
    %96 = arith.addf %90, %95 : vector<64x8xf32>
    %97 = vector.extract_strided_slice %4 {offsets = [2, 0, 0], sizes = [8, 8, 4], strides = [1, 1, 1]} : vector<10x10x4xf32> to vector<8x8x4xf32>
    %98 = vector.shape_cast %97 : vector<8x8x4xf32> to vector<64x4xf32>
    %c1_102 = arith.constant 1 : index
    %c2_103 = arith.constant 2 : index
    %c0_104 = arith.constant 0 : index
    %c0_105 = arith.constant 0 : index
    %c0_106 = arith.constant 0 : index
    %99 = vector.load %arg5[%c1_102, %c2_103, %c0_104, %c0_105, %c0_106] : memref<3x3x3x4x8xf32, #tpu.memory_space<vmem>>, vector<1x1x1x4x8xf32>
    %100 = vector.shape_cast %99 : vector<1x1x1x4x8xf32> to vector<4x8xf32>
    %cst_107 = arith.constant dense<0.000000e+00> : vector<64x8xf32>
    %101 = tpu.matmul %98, %100, %cst_107 {dimension_numbers = #tpu.dot_dimension_numbers<[1], [0], [0], [1], [0, 0, 1, 1], [], []>} : vector<64x4xf32>, vector<4x8xf32>, vector<64x8xf32> -> vector<64x8xf32>
    %102 = arith.addf %96, %101 : vector<64x8xf32>
    %103 = vector.extract_strided_slice %4 {offsets = [2, 1, 0], sizes = [8, 8, 4], strides = [1, 1, 1]} : vector<10x10x4xf32> to vector<8x8x4xf32>
    %104 = vector.shape_cast %103 : vector<8x8x4xf32> to vector<64x4xf32>
    %c1_108 = arith.constant 1 : index
    %c2_109 = arith.constant 2 : index
    %c1_110 = arith.constant 1 : index
    %c0_111 = arith.constant 0 : index
    %c0_112 = arith.constant 0 : index
    %105 = vector.load %arg5[%c1_108, %c2_109, %c1_110, %c0_111, %c0_112] : memref<3x3x3x4x8xf32, #tpu.memory_space<vmem>>, vector<1x1x1x4x8xf32>
    %106 = vector.shape_cast %105 : vector<1x1x1x4x8xf32> to vector<4x8xf32>
    %cst_113 = arith.constant dense<0.000000e+00> : vector<64x8xf32>
    %107 = tpu.matmul %104, %106, %cst_113 {dimension_numbers = #tpu.dot_dimension_numbers<[1], [0], [0], [1], [0, 0, 1, 1], [], []>} : vector<64x4xf32>, vector<4x8xf32>, vector<64x8xf32> -> vector<64x8xf32>
    %108 = arith.addf %102, %107 : vector<64x8xf32>
    %109 = vector.extract_strided_slice %4 {offsets = [2, 2, 0], sizes = [8, 8, 4], strides = [1, 1, 1]} : vector<10x10x4xf32> to vector<8x8x4xf32>
    %110 = vector.shape_cast %109 : vector<8x8x4xf32> to vector<64x4xf32>
    %c1_114 = arith.constant 1 : index
    %c2_115 = arith.constant 2 : index
    %c2_116 = arith.constant 2 : index
    %c0_117 = arith.constant 0 : index
    %c0_118 = arith.constant 0 : index
    %111 = vector.load %arg5[%c1_114, %c2_115, %c2_116, %c0_117, %c0_118] : memref<3x3x3x4x8xf32, #tpu.memory_space<vmem>>, vector<1x1x1x4x8xf32>
    %112 = vector.shape_cast %111 : vector<1x1x1x4x8xf32> to vector<4x8xf32>
    %cst_119 = arith.constant dense<0.000000e+00> : vector<64x8xf32>
    %113 = tpu.matmul %110, %112, %cst_119 {dimension_numbers = #tpu.dot_dimension_numbers<[1], [0], [0], [1], [0, 0, 1, 1], [], []>} : vector<64x4xf32>, vector<4x8xf32>, vector<64x8xf32> -> vector<64x8xf32>
    %114 = arith.addf %108, %113 : vector<64x8xf32>
    %115 = vector.extract_strided_slice %6 {offsets = [0, 0, 0], sizes = [8, 8, 4], strides = [1, 1, 1]} : vector<10x10x4xf32> to vector<8x8x4xf32>
    %116 = vector.shape_cast %115 : vector<8x8x4xf32> to vector<64x4xf32>
    %c2_120 = arith.constant 2 : index
    %c0_121 = arith.constant 0 : index
    %c0_122 = arith.constant 0 : index
    %c0_123 = arith.constant 0 : index
    %c0_124 = arith.constant 0 : index
    %117 = vector.load %arg5[%c2_120, %c0_121, %c0_122, %c0_123, %c0_124] : memref<3x3x3x4x8xf32, #tpu.memory_space<vmem>>, vector<1x1x1x4x8xf32>
    %118 = vector.shape_cast %117 : vector<1x1x1x4x8xf32> to vector<4x8xf32>
    %cst_125 = arith.constant dense<0.000000e+00> : vector<64x8xf32>
    %119 = tpu.matmul %116, %118, %cst_125 {dimension_numbers = #tpu.dot_dimension_numbers<[1], [0], [0], [1], [0, 0, 1, 1], [], []>} : vector<64x4xf32>, vector<4x8xf32>, vector<64x8xf32> -> vector<64x8xf32>
    %120 = arith.addf %114, %119 : vector<64x8xf32>
    %121 = vector.extract_strided_slice %6 {offsets = [0, 1, 0], sizes = [8, 8, 4], strides = [1, 1, 1]} : vector<10x10x4xf32> to vector<8x8x4xf32>
    %122 = vector.shape_cast %121 : vector<8x8x4xf32> to vector<64x4xf32>
    %c2_126 = arith.constant 2 : index
    %c0_127 = arith.constant 0 : index
    %c1_128 = arith.constant 1 : index
    %c0_129 = arith.constant 0 : index
    %c0_130 = arith.constant 0 : index
    %123 = vector.load %arg5[%c2_126, %c0_127, %c1_128, %c0_129, %c0_130] : memref<3x3x3x4x8xf32, #tpu.memory_space<vmem>>, vector<1x1x1x4x8xf32>
    %124 = vector.shape_cast %123 : vector<1x1x1x4x8xf32> to vector<4x8xf32>
    %cst_131 = arith.constant dense<0.000000e+00> : vector<64x8xf32>
    %125 = tpu.matmul %122, %124, %cst_131 {dimension_numbers = #tpu.dot_dimension_numbers<[1], [0], [0], [1], [0, 0, 1, 1], [], []>} : vector<64x4xf32>, vector<4x8xf32>, vector<64x8xf32> -> vector<64x8xf32>
    %126 = arith.addf %120, %125 : vector<64x8xf32>
    %127 = vector.extract_strided_slice %6 {offsets = [0, 2, 0], sizes = [8, 8, 4], strides = [1, 1, 1]} : vector<10x10x4xf32> to vector<8x8x4xf32>
    %128 = vector.shape_cast %127 : vector<8x8x4xf32> to vector<64x4xf32>
    %c2_132 = arith.constant 2 : index
    %c0_133 = arith.constant 0 : index
    %c2_134 = arith.constant 2 : index
    %c0_135 = arith.constant 0 : index
    %c0_136 = arith.constant 0 : index
    %129 = vector.load %arg5[%c2_132, %c0_133, %c2_134, %c0_135, %c0_136] : memref<3x3x3x4x8xf32, #tpu.memory_space<vmem>>, vector<1x1x1x4x8xf32>
    %130 = vector.shape_cast %129 : vector<1x1x1x4x8xf32> to vector<4x8xf32>
    %cst_137 = arith.constant dense<0.000000e+00> : vector<64x8xf32>
    %131 = tpu.matmul %128, %130, %cst_137 {dimension_numbers = #tpu.dot_dimension_numbers<[1], [0], [0], [1], [0, 0, 1, 1], [], []>} : vector<64x4xf32>, vector<4x8xf32>, vector<64x8xf32> -> vector<64x8xf32>
    %132 = arith.addf %126, %131 : vector<64x8xf32>
    %133 = vector.extract_strided_slice %6 {offsets = [1, 0, 0], sizes = [8, 8, 4], strides = [1, 1, 1]} : vector<10x10x4xf32> to vector<8x8x4xf32>
    %134 = vector.shape_cast %133 : vector<8x8x4xf32> to vector<64x4xf32>
    %c2_138 = arith.constant 2 : index
    %c1_139 = arith.constant 1 : index
    %c0_140 = arith.constant 0 : index
    %c0_141 = arith.constant 0 : index
    %c0_142 = arith.constant 0 : index
    %135 = vector.load %arg5[%c2_138, %c1_139, %c0_140, %c0_141, %c0_142] : memref<3x3x3x4x8xf32, #tpu.memory_space<vmem>>, vector<1x1x1x4x8xf32>
    %136 = vector.shape_cast %135 : vector<1x1x1x4x8xf32> to vector<4x8xf32>
    %cst_143 = arith.constant dense<0.000000e+00> : vector<64x8xf32>
    %137 = tpu.matmul %134, %136, %cst_143 {dimension_numbers = #tpu.dot_dimension_numbers<[1], [0], [0], [1], [0, 0, 1, 1], [], []>} : vector<64x4xf32>, vector<4x8xf32>, vector<64x8xf32> -> vector<64x8xf32>
    %138 = arith.addf %132, %137 : vector<64x8xf32>
    %139 = vector.extract_strided_slice %6 {offsets = [1, 1, 0], sizes = [8, 8, 4], strides = [1, 1, 1]} : vector<10x10x4xf32> to vector<8x8x4xf32>
    %140 = vector.shape_cast %139 : vector<8x8x4xf32> to vector<64x4xf32>
    %c2_144 = arith.constant 2 : index
    %c1_145 = arith.constant 1 : index
    %c1_146 = arith.constant 1 : index
    %c0_147 = arith.constant 0 : index
    %c0_148 = arith.constant 0 : index
    %141 = vector.load %arg5[%c2_144, %c1_145, %c1_146, %c0_147, %c0_148] : memref<3x3x3x4x8xf32, #tpu.memory_space<vmem>>, vector<1x1x1x4x8xf32>
    %142 = vector.shape_cast %141 : vector<1x1x1x4x8xf32> to vector<4x8xf32>
    %cst_149 = arith.constant dense<0.000000e+00> : vector<64x8xf32>
    %143 = tpu.matmul %140, %142, %cst_149 {dimension_numbers = #tpu.dot_dimension_numbers<[1], [0], [0], [1], [0, 0, 1, 1], [], []>} : vector<64x4xf32>, vector<4x8xf32>, vector<64x8xf32> -> vector<64x8xf32>
    %144 = arith.addf %138, %143 : vector<64x8xf32>
    %145 = vector.extract_strided_slice %6 {offsets = [1, 2, 0], sizes = [8, 8, 4], strides = [1, 1, 1]} : vector<10x10x4xf32> to vector<8x8x4xf32>
    %146 = vector.shape_cast %145 : vector<8x8x4xf32> to vector<64x4xf32>
    %c2_150 = arith.constant 2 : index
    %c1_151 = arith.constant 1 : index
    %c2_152 = arith.constant 2 : index
    %c0_153 = arith.constant 0 : index
    %c0_154 = arith.constant 0 : index
    %147 = vector.load %arg5[%c2_150, %c1_151, %c2_152, %c0_153, %c0_154] : memref<3x3x3x4x8xf32, #tpu.memory_space<vmem>>, vector<1x1x1x4x8xf32>
    %148 = vector.shape_cast %147 : vector<1x1x1x4x8xf32> to vector<4x8xf32>
    %cst_155 = arith.constant dense<0.000000e+00> : vector<64x8xf32>
    %149 = tpu.matmul %146, %148, %cst_155 {dimension_numbers = #tpu.dot_dimension_numbers<[1], [0], [0], [1], [0, 0, 1, 1], [], []>} : vector<64x4xf32>, vector<4x8xf32>, vector<64x8xf32> -> vector<64x8xf32>
    %150 = arith.addf %144, %149 : vector<64x8xf32>
    %151 = vector.extract_strided_slice %6 {offsets = [2, 0, 0], sizes = [8, 8, 4], strides = [1, 1, 1]} : vector<10x10x4xf32> to vector<8x8x4xf32>
    %152 = vector.shape_cast %151 : vector<8x8x4xf32> to vector<64x4xf32>
    %c2_156 = arith.constant 2 : index
    %c2_157 = arith.constant 2 : index
    %c0_158 = arith.constant 0 : index
    %c0_159 = arith.constant 0 : index
    %c0_160 = arith.constant 0 : index
    %153 = vector.load %arg5[%c2_156, %c2_157, %c0_158, %c0_159, %c0_160] : memref<3x3x3x4x8xf32, #tpu.memory_space<vmem>>, vector<1x1x1x4x8xf32>
    %154 = vector.shape_cast %153 : vector<1x1x1x4x8xf32> to vector<4x8xf32>
    %cst_161 = arith.constant dense<0.000000e+00> : vector<64x8xf32>
    %155 = tpu.matmul %152, %154, %cst_161 {dimension_numbers = #tpu.dot_dimension_numbers<[1], [0], [0], [1], [0, 0, 1, 1], [], []>} : vector<64x4xf32>, vector<4x8xf32>, vector<64x8xf32> -> vector<64x8xf32>
    %156 = arith.addf %150, %155 : vector<64x8xf32>
    %157 = vector.extract_strided_slice %6 {offsets = [2, 1, 0], sizes = [8, 8, 4], strides = [1, 1, 1]} : vector<10x10x4xf32> to vector<8x8x4xf32>
    %158 = vector.shape_cast %157 : vector<8x8x4xf32> to vector<64x4xf32>
    %c2_162 = arith.constant 2 : index
    %c2_163 = arith.constant 2 : index
    %c1_164 = arith.constant 1 : index
    %c0_165 = arith.constant 0 : index
    %c0_166 = arith.constant 0 : index
    %159 = vector.load %arg5[%c2_162, %c2_163, %c1_164, %c0_165, %c0_166] : memref<3x3x3x4x8xf32, #tpu.memory_space<vmem>>, vector<1x1x1x4x8xf32>
    %160 = vector.shape_cast %159 : vector<1x1x1x4x8xf32> to vector<4x8xf32>
    %cst_167 = arith.constant dense<0.000000e+00> : vector<64x8xf32>
    %161 = tpu.matmul %158, %160, %cst_167 {dimension_numbers = #tpu.dot_dimension_numbers<[1], [0], [0], [1], [0, 0, 1, 1], [], []>} : vector<64x4xf32>, vector<4x8xf32>, vector<64x8xf32> -> vector<64x8xf32>
    %162 = arith.addf %156, %161 : vector<64x8xf32>
    %163 = vector.extract_strided_slice %6 {offsets = [2, 2, 0], sizes = [8, 8, 4], strides = [1, 1, 1]} : vector<10x10x4xf32> to vector<8x8x4xf32>
    %164 = vector.shape_cast %163 : vector<8x8x4xf32> to vector<64x4xf32>
    %c2_168 = arith.constant 2 : index
    %c2_169 = arith.constant 2 : index
    %c2_170 = arith.constant 2 : index
    %c0_171 = arith.constant 0 : index
    %c0_172 = arith.constant 0 : index
    %165 = vector.load %arg5[%c2_168, %c2_169, %c2_170, %c0_171, %c0_172] : memref<3x3x3x4x8xf32, #tpu.memory_space<vmem>>, vector<1x1x1x4x8xf32>
    %166 = vector.shape_cast %165 : vector<1x1x1x4x8xf32> to vector<4x8xf32>
    %cst_173 = arith.constant dense<0.000000e+00> : vector<64x8xf32>
    %167 = tpu.matmul %164, %166, %cst_173 {dimension_numbers = #tpu.dot_dimension_numbers<[1], [0], [0], [1], [0, 0, 1, 1], [], []>} : vector<64x4xf32>, vector<4x8xf32>, vector<64x8xf32> -> vector<64x8xf32>
    %168 = arith.addf %162, %167 : vector<64x8xf32>
    %c0_174 = arith.constant 0 : index
    %c0_175 = arith.constant 0 : index
    %169 = vector.load %arg6[%c0_174, %c0_175] : memref<1x8xf32, #tpu.memory_space<vmem>>, vector<1x8xf32>
    %170 = vector.broadcast %169 : vector<1x8xf32> to vector<64x8xf32>
    %171 = arith.mulf %168, %170 : vector<64x8xf32>
    %c0_176 = arith.constant 0 : index
    %c0_177 = arith.constant 0 : index
    %172 = vector.load %arg7[%c0_176, %c0_177] : memref<1x8xf32, #tpu.memory_space<vmem>>, vector<1x8xf32>
    %173 = vector.broadcast %172 : vector<1x8xf32> to vector<64x8xf32>
    %174 = arith.addf %171, %173 : vector<64x8xf32>
    %cst_178 = arith.constant 0.000000e+00 : f32
    %175 = vector.broadcast %cst_178 : f32 to vector<64x8xf32>
    %176 = arith.maximumf %174, %175 : vector<64x8xf32>
    %177 = vector.shape_cast %176 : vector<64x8xf32> to vector<1x1x8x8x8xf32>
    %c0_179 = arith.constant 0 : index
    %c0_180 = arith.constant 0 : index
    %c0_181 = arith.constant 0 : index
    %c0_182 = arith.constant 0 : index
    %c0_183 = arith.constant 0 : index
    %178 = vector.load %arg8[%c0_179, %c0_180, %c0_181, %c0_182, %c0_183] : memref<1x1x8x8x8xf32, #tpu.memory_space<vmem>>, vector<1x1x8x8x8xf32>
    tpu.vector_store %arg8[%c0_179, %c0_180, %c0_181, %c0_182, %c0_183], %177 {strides = array<i32>} : memref<1x1x8x8x8xf32, #tpu.memory_space<vmem>>, vector<1x1x8x8x8xf32>,
    return
  }
  func.func @transform_0(%arg0: i32, %arg1: i32) -> (i32, i32, i32, i32, i32) {
    %c0_i32 = arith.constant 0 : i32
    %c0_i32_0 = arith.constant 0 : i32
    %c0_i32_1 = arith.constant 0 : i32
    %c0_i32_2 = arith.constant 0 : i32
    return %arg0, %arg1, %c0_i32, %c0_i32_0, %c0_i32_1 : i32, i32, i32, i32, i32
  }
  func.func @transform_1(%arg0: i32, %arg1: i32) -> (i32, i32, i32, i32, i32) {
    %c1_i32 = arith.constant 1 : i32
    %0 = arith.addi %arg1, %c1_i32 : i32
    %c0_i32 = arith.constant 0 : i32
    %c0_i32_0 = arith.constant 0 : i32
    %c0_i32_1 = arith.constant 0 : i32
    %c0_i32_2 = arith.constant 0 : i32
    return %arg0, %0, %c0_i32, %c0_i32_0, %c0_i32_1 : i32, i32, i32, i32, i32
  }
  func.func @transform_2(%arg0: i32, %arg1: i32) -> (i32, i32, i32, i32, i32) {
    %c2_i32 = arith.constant 2 : i32
    %0 = arith.addi %arg1, %c2_i32 : i32
    %c0_i32 = arith.constant 0 : i32
    %c0_i32_0 = arith.constant 0 : i32
    %c0_i32_1 = arith.constant 0 : i32
    %c0_i32_2 = arith.constant 0 : i32
    return %arg0, %0, %c0_i32, %c0_i32_0, %c0_i32_1 : i32, i32, i32, i32, i32
  }
  func.func @transform_3(%arg0: i32, %arg1: i32) -> (i32, i32, i32, i32, i32) {
    %c0_i32 = arith.constant 0 : i32
    %c0_i32_0 = arith.constant 0 : i32
    %c0_i32_1 = arith.constant 0 : i32
    %c0_i32_2 = arith.constant 0 : i32
    %c0_i32_3 = arith.constant 0 : i32
    %c0_i32_4 = arith.constant 0 : i32
    return %c0_i32, %c0_i32_0, %c0_i32_1, %c0_i32_2, %c0_i32_3 : i32, i32, i32, i32, i32
  }
  func.func @transform_4(%arg0: i32, %arg1: i32) -> (i32, i32) {
    %c0_i32 = arith.constant 0 : i32
    %c0_i32_0 = arith.constant 0 : i32
    %c0_i32_1 = arith.constant 0 : i32
    return %c0_i32, %c0_i32_0 : i32, i32
  }
  func.func @transform_5(%arg0: i32, %arg1: i32) -> (i32, i32) {
    %c0_i32 = arith.constant 0 : i32
    %c0_i32_0 = arith.constant 0 : i32
    %c0_i32_1 = arith.constant 0 : i32
    return %c0_i32, %c0_i32_0 : i32, i32
  }
  func.func @transform_6(%arg0: i32, %arg1: i32) -> (i32, i32, i32, i32, i32) {
    %c0_i32 = arith.constant 0 : i32
    %c0_i32_0 = arith.constant 0 : i32
    %c0_i32_1 = arith.constant 0 : i32
    %c0_i32_2 = arith.constant 0 : i32
    return %arg0, %arg1, %c0_i32, %c0_i32_0, %c0_i32_1 : i32, i32, i32, i32, i32
  }
}

</mosaic_0001>

<llo_original>
// kernel: tpu_custom_call.1
$region0: #{tpu_custom_call.1}
  #allocation0 [shape = 'u32[]', space=smem, size = 0x4, offset = 0x4, fixed_abs, tag = 'smem constant byte address 0x4 - core index']
  #allocation1 [shape = 'u32[144,128]{1,0:T(1,128)}', space=vmem, size = 0x12000, scoped, tag = 'internal scratch']
  %s0 = inlined_call_operand.vmem [shape: f32[2,10,10,10,4], index: 0, kind: input, shape index: {}]
  %s1 = inlined_call_operand.vmem [shape: f32[2,10,10,10,4], index: 1, kind: input, shape index: {}]
  %s2 = inlined_call_operand.vmem [shape: f32[2,10,10,10,4], index: 2, kind: input, shape index: {}]
  %s3 = inlined_call_operand.vmem [shape: f32[3,3,3,4,8], index: 3, kind: input, shape index: {}]
  %s4 = inlined_call_operand.vmem [shape: f32[1,8], index: 4, kind: input, shape index: {}]
  %s5 = inlined_call_operand.vmem [shape: f32[1,8], index: 5, kind: input, shape index: {}]
  %s6 = inlined_call_operand.hbm [shape: f32[2,8,8,8,8], index: 6, kind: output, shape index: {}]
  %s7 = sld [smem:[#allocation0]]
  $region57: #{tpu_custom_call.1} parent=0
    _
  %s9 = ssub.s32 1, %s7
  %s10 = scalar_select 0, %s9, %s7
  $region1: #{tpu_custom_call.1} parent=0
    #allocation2 [shape = 'u8[65536]{0}', space=vmem, size = 0x10000, scoped, tag = 'output window, operand 0']
    #allocation3 [shape = 's32[2]{0}', space=sflag, size = 0x8, scoped, tag = 'scoped memory for tpu_custom_call.1']
    %11 = vsyncpa [#allocation3], 0
    %s12 = scalar_lea.sflag [#allocation3], 1
    %13 = vsyncpa %s12, 0
    loop: start=0, step=1, limit=18
    $region2: #{tpu_custom_call.1} parent=1 // loop_pre_header
      _
    $region3: #{tpu_custom_call.1} parent=1 // loop_header
      %s15 = sphi 0, %s19
      %p16 = scmp.ge.s32.totalorder %s15, 18
      %s22 = sphi 0, %s34
      %s23 = sphi 0, %s30
      %s24 = sphi 0, %s22
      %s25 = sphi 0, %s23
      %s26 = sphi 0, %s24
      %s27 = sphi 0, %s25
      %s39 = sphi 0, %s41
      %s42 = sphi 0, %s39
      %s43 = sphi 0, %s42
      %s59 = sphi 0, %s43
      %s69 = sphi 0, %s71
      %s72 = sphi 0, %s69
      %s73 = sphi 0, %s72
      %s89 = sphi 0, %s73
      %s99 = sphi 0, %s101
      %s102 = sphi 0, %s99
      %s103 = sphi 0, %s102
      %s119 = sphi 0, %s103
      %s123 = sphi 0, %s123
      %s125 = sphi 0, %s123
      %s126 = sphi 0, %s125
      %s140 = sphi 0, %s126
      %s144 = sphi 0, %s144
      %s146 = sphi 0, %s144
      %s147 = sphi 0, %s146
      %s161 = sphi 0, %s147
      %s165 = sphi 0, %s165
      %s167 = sphi 0, %s165
      %s168 = sphi 0, %s167
      %s182 = sphi 0, %s168
      %s190 = sphi 0, %s192
      %s193 = sphi 0, %s190
      %s194 = sphi 0, %s193
      %s210 = sphi 0, %s194
    $region4: #{tpu_custom_call.1} parent=1 // loop_header_branch
      %18 = sbr.rel (%p16) target = $region8
    $region5: #{tpu_custom_call.1} parent=1 // loop_body
      %s20 = ssub.s32 %s15, 1
      %s21 = ssub.s32 %s15, 2
      %s28 = sadd.s32 1, %s23
      %p29 = scmp.ge.s32.totalorder %s28, 8
      %s30 = scalar_select %p29, 0, %s28
      %s31 = sadd.s32 1, %s22
      %s32 = scalar_select %p29, %s31, %s22
      %p33 = scmp.ge.s32.totalorder %s32, 2
      %s34 = scalar_select %p33, 0, %s32
      %s35 = ssub.s32 %s22, %s34
      %s36 = ssub.s32 %s23, %s30
      %s37 = sor.u32 %s35, %s36
      %p38 = scmp.eq.s32.totalorder %s37, 0
      %s40 = sadd.s32 %s39, 1
      %s41 = scalar_select %p38, %s39, %s40
      %p44 = pneg %p38
      %p45 = scmp.eq.s32.totalorder %s15, 15
      %p46 = por %p44, %p45
      %p47 = scmp.ne.s32.totalorder %s39, %s42
      %p48 = scmp.eq.s32.totalorder %s15, 0
      %p49 = por %p47, %p48
      %p50 = scmp.ne.s32.totalorder %s39, %s42
      %p51 = scmp.eq.s32.totalorder %s20, 15
      %p52 = por %p50, %p51
      %p53 = scmp.ne.s32.totalorder %s42, %s43
      %p54 = scmp.eq.s32.totalorder %s20, 0
      %p55 = por %p53, %p54
      %p56 = scmp.ne.s32.totalorder %s42, %s43
      %p57 = scmp.eq.s32.totalorder %s21, 15
      %p58 = por %p56, %p57
      %p60 = scmp.ne.s32.totalorder %s43, %s59
      %p61 = scmp.eq.s32.totalorder %s21, 0
      %p62 = por %p60, %p61
      %s63 = sadd.s32 %s23, 1
      %s64 = sadd.s32 %s30, 1
      %s65 = ssub.s32 %s22, %s34
      %s66 = ssub.s32 %s63, %s64
      %s67 = sor.u32 %s65, %s66
      %p68 = scmp.eq.s32.totalorder %s67, 0
      %s70 = sadd.s32 %s69, 1
      %s71 = scalar_select %p68, %s69, %s70
      %p74 = pneg %p68
      %p75 = scmp.eq.s32.totalorder %s15, 15
      %p76 = por %p74, %p75
      %p77 = scmp.ne.s32.totalorder %s69, %s72
      %p78 = scmp.eq.s32.totalorder %s15, 0
      %p79 = por %p77, %p78
      %p80 = scmp.ne.s32.totalorder %s69, %s72
      %p81 = scmp.eq.s32.totalorder %s20, 15
      %p82 = por %p80, %p81
      %p83 = scmp.ne.s32.totalorder %s72, %s73
      %p84 = scmp.eq.s32.totalorder %s20, 0
      %p85 = por %p83, %p84
      %p86 = scmp.ne.s32.totalorder %s72, %s73
      %p87 = scmp.eq.s32.totalorder %s21, 15
      %p88 = por %p86, %p87
      %p90 = scmp.ne.s32.totalorder %s73, %s89
      %p91 = scmp.eq.s32.totalorder %s21, 0
      %p92 = por %p90, %p91
      %s93 = sadd.s32 %s23, 2
      %s94 = sadd.s32 %s30, 2
      %s95 = ssub.s32 %s22, %s34
      %s96 = ssub.s32 %s93, %s94
      %s97 = sor.u32 %s95, %s96
      %p98 = scmp.eq.s32.totalorder %s97, 0
      %s100 = sadd.s32 %s99, 1
      %s101 = scalar_select %p98, %s99, %s100
      %p104 = pneg %p98
      %p105 = scmp.eq.s32.totalorder %s15, 15
      %p106 = por %p104, %p105
      %p107 = scmp.ne.s32.totalorder %s99, %s102
      %p108 = scmp.eq.s32.totalorder %s15, 0
      %p109 = por %p107, %p108
      %p110 = scmp.ne.s32.totalorder %s99, %s102
      %p111 = scmp.eq.s32.totalorder %s20, 15
      %p112 = por %p110, %p111
      %p113 = scmp.ne.s32.totalorder %s102, %s103
      %p114 = scmp.eq.s32.totalorder %s20, 0
      %p115 = por %p113, %p114
      %p116 = scmp.ne.s32.totalorder %s102, %s103
      %p117 = scmp.eq.s32.totalorder %s21, 15
      %p118 = por %p116, %p117
      %p120 = scmp.ne.s32.totalorder %s103, %s119
      %p121 = scmp.eq.s32.totalorder %s21, 0
      %p122 = por %p120, %p121
      %s124 = sadd.s32 %s123, 1
      %p127 = scmp.eq.s32.totalorder %s15, 15
      %p128 = scmp.ne.s32.totalorder %s123, %s125
      %p129 = scmp.eq.s32.totalorder %s15, 0
      %p130 = por %p128, %p129
      %p131 = scmp.ne.s32.totalorder %s123, %s125
      %p132 = scmp.eq.s32.totalorder %s20, 15
      %p133 = por %p131, %p132
      %p134 = scmp.ne.s32.totalorder %s125, %s126
      %p135 = scmp.eq.s32.totalorder %s20, 0
      %p136 = por %p134, %p135
      %p137 = scmp.ne.s32.totalorder %s125, %s126
      %p138 = scmp.eq.s32.totalorder %s21, 15
      %p139 = por %p137, %p138
      %p141 = scmp.ne.s32.totalorder %s126, %s140
      %p142 = scmp.eq.s32.totalorder %s21, 0
      %p143 = por %p141, %p142
      %s145 = sadd.s32 %s144, 1
      %p148 = scmp.eq.s32.totalorder %s15, 15
      %p149 = scmp.ne.s32.totalorder %s144, %s146
      %p150 = scmp.eq.s32.totalorder %s15, 0
      %p151 = por %p149, %p150
      %p152 = scmp.ne.s32.totalorder %s144, %s146
      %p153 = scmp.eq.s32.totalorder %s20, 15
      %p154 = por %p152, %p153
      %p155 = scmp.ne.s32.totalorder %s146, %s147
      %p156 = scmp.eq.s32.totalorder %s20, 0
      %p157 = por %p155, %p156
      %p158 = scmp.ne.s32.totalorder %s146, %s147
      %p159 = scmp.eq.s32.totalorder %s21, 15
      %p160 = por %p158, %p159
      %p162 = scmp.ne.s32.totalorder %s147, %s161
      %p163 = scmp.eq.s32.totalorder %s21, 0
      %p164 = por %p162, %p163
      %s166 = sadd.s32 %s165, 1
      %p169 = scmp.eq.s32.totalorder %s15, 15
      %p170 = scmp.ne.s32.totalorder %s165, %s167
      %p171 = scmp.eq.s32.totalorder %s15, 0
      %p172 = por %p170, %p171
      %p173 = scmp.ne.s32.totalorder %s165, %s167
      %p174 = scmp.eq.s32.totalorder %s20, 15
      %p175 = por %p173, %p174
      %p176 = scmp.ne.s32.totalorder %s167, %s168
      %p177 = scmp.eq.s32.totalorder %s20, 0
      %p178 = por %p176, %p177
      %p179 = scmp.ne.s32.totalorder %s167, %s168
      %p180 = scmp.eq.s32.totalorder %s21, 15
      %p181 = por %p179, %p180
      %p183 = scmp.ne.s32.totalorder %s168, %s182
      %p184 = scmp.eq.s32.totalorder %s21, 0
      %p185 = por %p183, %p184
      %s186 = ssub.s32 %s22, %s34
      %s187 = ssub.s32 %s23, %s30
      %s188 = sor.u32 %s186, %s187
      %p189 = scmp.eq.s32.totalorder %s188, 0
      %s191 = sadd.s32 %s190, 1
      %s192 = scalar_select %p189, %s190, %s191
      %p195 = pneg %p189
      %p196 = scmp.eq.s32.totalorder %s15, 15
      %p197 = por %p195, %p196
      %p198 = scmp.ne.s32.totalorder %s190, %s193
      %p199 = scmp.eq.s32.totalorder %s15, 0
      %p200 = por %p198, %p199
      %p201 = scmp.ne.s32.totalorder %s190, %s193
      %p202 = scmp.eq.s32.totalorder %s20, 15
      %p203 = por %p201, %p202
      %p204 = scmp.ne.s32.totalorder %s193, %s194
      %p205 = scmp.eq.s32.totalorder %s20, 0
      %p206 = por %p204, %p205
      %p207 = scmp.ne.s32.totalorder %s193, %s194
      %p208 = scmp.eq.s32.totalorder %s21, 15
      %p209 = por %p207, %p208
      %p211 = scmp.ne.s32.totalorder %s194, %s210
      %p212 = scmp.eq.s32.totalorder %s21, 0
      %p213 = por %p211, %p212
      %p214 = scmp.le.s32.totalorder 1, %s15
      %p215 = scmp.lt.s32.totalorder %s15, 17
      %p216 = pnand %p214, %p215
      %p217 = pneg %p216
      // Predicated region
      $region9: #{tpu_custom_call.1} parent=5 // pred_check
        _
      $region10: #{tpu_custom_call.1} parent=5 // pred_check_branch
        %219 = sbr.rel (%p216) target = $region12
      $region11: #{tpu_custom_call.1} parent=5 // pred_region
        %s220 = ssub.s32 %s15, 1
        // Predicated region
        $region13: #{tpu_custom_call.1} parent=11 // pred_check
          %p221 = pneg %p136
        $region14: #{tpu_custom_call.1} parent=11 // pred_check_branch
          %223 = sbr.rel (%p221) target = $region16
        $region15: #{tpu_custom_call.1} parent=11 // pred_region
          _
        $region16: #{tpu_custom_call.1} parent=11 // pred_fallthru
          _
        // Predicated region
        $region17: #{tpu_custom_call.1} parent=11 // pred_check
          %p224 = pneg %p157
        $region18: #{tpu_custom_call.1} parent=11 // pred_check_branch
          %226 = sbr.rel (%p224) target = $region20
        $region19: #{tpu_custom_call.1} parent=11 // pred_region
          _
        $region20: #{tpu_custom_call.1} parent=11 // pred_fallthru
          _
        // Predicated region
        $region21: #{tpu_custom_call.1} parent=11 // pred_check
          %p227 = pneg %p178
        $region22: #{tpu_custom_call.1} parent=11 // pred_check_branch
          %229 = sbr.rel (%p227) target = $region24
        $region23: #{tpu_custom_call.1} parent=11 // pred_region
          _
        $region24: #{tpu_custom_call.1} parent=11 // pred_fallthru
          _
      $region12: #{tpu_custom_call.1} parent=5 // pred_fallthru
        _
      %p230 = scmp.lt.s32.totalorder %s15, 16
      // Predicated region
      $region25: #{tpu_custom_call.1} parent=5 // pred_check
        %p231 = pneg %p230
      $region26: #{tpu_custom_call.1} parent=5 // pred_check_branch
        %233 = sbr.rel (%p231) target = $region28
      $region27: #{tpu_custom_call.1} parent=5 // pred_region
        // Predicated region
        $region29: #{tpu_custom_call.1} parent=27 // pred_check
          %p234 = pneg %p49
        $region30: #{tpu_custom_call.1} parent=27 // pred_check_branch
          %236 = sbr.rel (%p234) target = $region32
        $region31: #{tpu_custom_call.1} parent=27 // pred_region
          %p237 = scmp.lt.s32.totalorder %s22, 1
          %s238 = scalar_select %p237, %s22, 1
          %p239 = scmp.lt.s32.totalorder %s23, 9
          %s240 = scalar_select %p239, %s23, 9
          %s241 = smul.addr %s240, 20
          %s242 = smul.addr %s238, 200
          %s243 = sadd.s32 %s241, %s242
          %s244 = smul.addr %s243, 8
          %s245 = scalar_lea.vmem %s0, %s244
        $region32: #{tpu_custom_call.1} parent=27 // pred_fallthru
          _
        // Predicated region
        $region33: #{tpu_custom_call.1} parent=27 // pred_check
          %p246 = pneg %p79
        $region34: #{tpu_custom_call.1} parent=27 // pred_check_branch
          %248 = sbr.rel (%p246) target = $region36
        $region35: #{tpu_custom_call.1} parent=27 // pred_region
          %s249 = sadd.s32 %s23, 1
          %p250 = scmp.lt.s32.totalorder %s22, 1
          %s251 = scalar_select %p250, %s22, 1
          %p252 = scmp.lt.s32.totalorder %s249, 9
          %s253 = scalar_select %p252, %s249, 9
          %s254 = smul.addr %s253, 20
          %s255 = smul.addr %s251, 200
          %s256 = sadd.s32 %s254, %s255
          %s257 = smul.addr %s256, 8
          %s258 = scalar_lea.vmem %s1, %s257
          %s259 = sadd.s32 %s23, 1
        $region36: #{tpu_custom_call.1} parent=27 // pred_fallthru
          _
        // Predicated region
        $region37: #{tpu_custom_call.1} parent=27 // pred_check
          %p260 = pneg %p109
        $region38: #{tpu_custom_call.1} parent=27 // pred_check_branch
          %262 = sbr.rel (%p260) target = $region40
        $region39: #{tpu_custom_call.1} parent=27 // pred_region
          %s263 = sadd.s32 %s23, 2
          %p264 = scmp.lt.s32.totalorder %s22, 1
          %s265 = scalar_select %p264, %s22, 1
          %p266 = scmp.lt.s32.totalorder %s263, 9
          %s267 = scalar_select %p266, %s263, 9
          %s268 = smul.addr %s267, 20
          %s269 = smul.addr %s265, 200
          %s270 = sadd.s32 %s268, %s269
          %s271 = smul.addr %s270, 8
          %s272 = scalar_lea.vmem %s2, %s271
          %s273 = sadd.s32 %s23, 2
        $region40: #{tpu_custom_call.1} parent=27 // pred_fallthru
          _
      $region28: #{tpu_custom_call.1} parent=5 // pred_fallthru
        _
      %p274 = scmp.le.s32.totalorder 1, %s15
      %p275 = scmp.lt.s32.totalorder %s15, 17
      %p276 = pnand %p274, %p275
      %p277 = pneg %p276
      // Predicated region
      $region41: #{tpu_custom_call.1} parent=5 // pred_check
        _
      $region42: #{tpu_custom_call.1} parent=5 // pred_check_branch
        %279 = sbr.rel (%p276) target = $region44
      $region43: #{tpu_custom_call.1} parent=5 // pred_region
        %s280 = ssub.s32 %s15, 1
        %p281 = scmp.lt.s32.totalorder %s24, 1
        %s282 = scalar_select %p281, %s24, 1
        %p283 = scmp.lt.s32.totalorder %s25, 9
        %s284 = scalar_select %p283, %s25, 9
        %s285 = smul.addr %s284, 20
        %s286 = smul.addr %s282, 200
        %s287 = sadd.s32 %s285, %s286
        %s288 = smul.addr %s287, 8
        %s289 = scalar_lea.vmem %s0, %s288
        %p290 = pneg %p55
        %p291 = pneg %p52
        %s292 = sadd.s32 %s25, 1
        %p293 = scmp.lt.s32.totalorder %s24, 1
        %s294 = scalar_select %p293, %s24, 1
        %p295 = scmp.lt.s32.totalorder %s292, 9
        %s296 = scalar_select %p295, %s292, 9
        %s297 = smul.addr %s296, 20
        %s298 = smul.addr %s294, 200
        %s299 = sadd.s32 %s297, %s298
        %s300 = smul.addr %s299, 8
        %s301 = scalar_lea.vmem %s1, %s300
        %p302 = pneg %p85
        %p303 = pneg %p82
        %s304 = sadd.s32 %s25, 2
        %p305 = scmp.lt.s32.totalorder %s24, 1
        %s306 = scalar_select %p305, %s24, 1
        %p307 = scmp.lt.s32.totalorder %s304, 9
        %s308 = scalar_select %p307, %s304, 9
        %s309 = smul.addr %s308, 20
        %s310 = smul.addr %s306, 200
        %s311 = sadd.s32 %s309, %s310
        %s312 = smul.addr %s311, 8
        %s313 = scalar_lea.vmem %s2, %s312
        %p314 = pneg %p115
        %p315 = pneg %p112
        %p316 = pneg %p136
        %p317 = pneg %p133
        %p318 = pneg %p157
        %p319 = pneg %p154
        %p320 = pneg %p178
        %p321 = pneg %p175
        %p322 = pneg %p206
        %p323 = pneg %p203
        %s324 = sand.u32 %s193, 1
        %s325 = scalar_lea.sflag [#allocation3], %s324
        %s326 = sand.u32 %s193, 1
        %s327 = smul.addr %s326, 64
        %s328 = scalar_lea.vmem [#allocation2], %s327
        %p329 = scmp.lt.s32.totalorder %s24, 1
        %s330 = scalar_select %p329, %s24, 1
        %p331 = scmp.lt.s32.totalorder %s25, 9
        %s332 = scalar_select %p331, %s25, 9
        %s333 = smul.addr %s332, 20
        %s334 = smul.addr %s330, 200
        %s335 = sadd.s32 %s333, %s334
        %s336 = smul.addr %s335, 8
        %s337 = scalar_lea.vmem %s0, %s336
        %s338 = sadd.s32 %s25, 1
        %p339 = scmp.lt.s32.totalorder %s24, 1
        %s340 = scalar_select %p339, %s24, 1
        %p341 = scmp.lt.s32.totalorder %s338, 9
        %s342 = scalar_select %p341, %s338, 9
        %s343 = smul.addr %s342, 20
        %s344 = smul.addr %s340, 200
        %s345 = sadd.s32 %s343, %s344
        %s346 = smul.addr %s345, 8
        %s347 = scalar_lea.vmem %s1, %s346
        %s348 = sadd.s32 %s25, 1
        %s349 = sadd.s32 %s25, 2
        %p350 = scmp.lt.s32.totalorder %s24, 1
        %s351 = scalar_select %p350, %s24, 1
        %p352 = scmp.lt.s32.totalorder %s349, 9
        %s353 = scalar_select %p352, %s349, 9
        %s354 = smul.addr %s353, 20
        %s355 = smul.addr %s351, 200
        %s356 = sadd.s32 %s354, %s355
        %s357 = smul.addr %s356, 8
        %s358 = scalar_lea.vmem %s2, %s357
        %s359 = sadd.s32 %s25, 2
        %v360 = vld [vmem:[%s337] sm:$0xff]
        %v361 = vld [vmem:[%s337 + $0x8] sm:$0x3]
        %v362 = vld [vmem:[%s337 + $0x10] sm:$0xff]
        %v363 = vld [vmem:[%s337 + $0x18] sm:$0x3]
        %v364 = vld [vmem:[%s337 + $0x20] sm:$0xff]
        %v365 = vld [vmem:[%s337 + $0x28] sm:$0x3]
        %v366 = vld [vmem:[%s337 + $0x30] sm:$0xff]
        %v367 = vld [vmem:[%s337 + $0x38] sm:$0x3]
        %v368 = vld [vmem:[%s337 + $0x40] sm:$0xff]
        %v369 = vld [vmem:[%s337 + $0x48] sm:$0x3]
        %v370 = vld [vmem:[%s337 + $0x50] sm:$0xff]
        %v371 = vld [vmem:[%s337 + $0x58] sm:$0x3]
        %v372 = vld [vmem:[%s337 + $0x60] sm:$0xff]
        %v373 = vld [vmem:[%s337 + $0x68] sm:$0x3]
        %v374 = vld [vmem:[%s337 + $0x70] sm:$0xff]
        %v375 = vld [vmem:[%s337 + $0x78] sm:$0x3]
        %v376 = vld [vmem:[%s337 + $0x80] sm:$0xff]
        %v377 = vld [vmem:[%s337 + $0x88] sm:$0x3]
        %v378 = vld [vmem:[%s337 + $0x90] sm:$0xff]
        %v379 = vld [vmem:[%s337 + $0x98] sm:$0x3]
        %v380 = vld [vmem:[%s347] sm:$0xff]
        %v381 = vld [vmem:[%s347 + $0x8] sm:$0x3]
        %v382 = vld [vmem:[%s347 + $0x10] sm:$0xff]
        %v383 = vld [vmem:[%s347 + $0x18] sm:$0x3]
        %v384 = vld [vmem:[%s347 + $0x20] sm:$0xff]
        %v385 = vld [vmem:[%s347 + $0x28] sm:$0x3]
        %v386 = vld [vmem:[%s347 + $0x30] sm:$0xff]
        %v387 = vld [vmem:[%s347 + $0x38] sm:$0x3]
        %v388 = vld [vmem:[%s347 + $0x40] sm:$0xff]
        %v389 = vld [vmem:[%s347 + $0x48] sm:$0x3]
        %v390 = vld [vmem:[%s347 + $0x50] sm:$0xff]
        %v391 = vld [vmem:[%s347 + $0x58] sm:$0x3]
        %v392 = vld [vmem:[%s347 + $0x60] sm:$0xff]
        %v393 = vld [vmem:[%s347 + $0x68] sm:$0x3]
        %v394 = vld [vmem:[%s347 + $0x70] sm:$0xff]
        %v395 = vld [vmem:[%s347 + $0x78] sm:$0x3]
        %v396 = vld [vmem:[%s347 + $0x80] sm:$0xff]
        %v397 = vld [vmem:[%s347 + $0x88] sm:$0x3]
        %v398 = vld [vmem:[%s347 + $0x90] sm:$0xff]
        %v399 = vld [vmem:[%s347 + $0x98] sm:$0x3]
        %v400 = vld [vmem:[%s358] sm:$0xff]
        %v401 = vld [vmem:[%s358 + $0x8] sm:$0x3]
        %v402 = vld [vmem:[%s358 + $0x10] sm:$0xff]
        %v403 = vld [vmem:[%s358 + $0x18] sm:$0x3]
        %v404 = vld [vmem:[%s358 + $0x20] sm:$0xff]
        %v405 = vld [vmem:[%s358 + $0x28] sm:$0x3]
        %v406 = vld [vmem:[%s358 + $0x30] sm:$0xff]
        %v407 = vld [vmem:[%s358 + $0x38] sm:$0x3]
        %v408 = vld [vmem:[%s358 + $0x40] sm:$0xff]
        %v409 = vld [vmem:[%s358 + $0x48] sm:$0x3]
        %v410 = vld [vmem:[%s358 + $0x50] sm:$0xff]
        %v411 = vld [vmem:[%s358 + $0x58] sm:$0x3]
        %v412 = vld [vmem:[%s358 + $0x60] sm:$0xff]
        %v413 = vld [vmem:[%s358 + $0x68] sm:$0x3]
        %v414 = vld [vmem:[%s358 + $0x70] sm:$0xff]
        %v415 = vld [vmem:[%s358 + $0x78] sm:$0x3]
        %v416 = vld [vmem:[%s358 + $0x80] sm:$0xff]
        %v417 = vld [vmem:[%s358 + $0x88] sm:$0x3]
        %v418 = vld [vmem:[%s358 + $0x90] sm:$0xff]
        %v419 = vld [vmem:[%s358 + $0x98] sm:$0x3]
        %v420 = vld [vmem:[%s3] sm:$0xf]
        %vm437 = vcmask 1046528
        %v438 = vrot.slane %v360, 1
        %v439 = vrot.slane %v361, 1
        %v440 = vsel %vm437, %v438, %v439
        %v441 = vrot.slane %v362, 1
        %v442 = vrot.slane %v363, 1
        %v443 = vsel %vm437, %v441, %v442
        %v444 = vrot.slane %v364, 1
        %v445 = vrot.slane %v365, 1
        %v446 = vsel %vm437, %v444, %v445
        %v447 = vrot.slane %v366, 1
        %v448 = vrot.slane %v367, 1
        %v449 = vsel %vm437, %v447, %v448
        %v450 = vrot.slane %v368, 1
        %v451 = vrot.slane %v369, 1
        %v452 = vsel %vm437, %v450, %v451
        %v453 = vrot.slane %v370, 1
        %v454 = vrot.slane %v371, 1
        %v455 = vsel %vm437, %v453, %v454
        %v456 = vrot.slane %v372, 1
        %v457 = vrot.slane %v373, 1
        %v458 = vsel %vm437, %v456, %v457
        %v459 = vrot.slane %v374, 1
        %v460 = vrot.slane %v375, 1
        %v461 = vsel %vm437, %v459, %v460
        %s462 = scalar_lea.vmem %s3, 4
        %v463 = vld [vmem:[%s462] sm:$0xf]
        %vm464 = vcmask 31744
        %v465 = vsel %vm464, %v440, 0
        %v467 = vsel %vm464, %v443, 0
        %v469 = vsel %vm464, %v446, 0
        %v471 = vsel %vm464, %v449, 0
        %v473 = vsel %vm464, %v452, 0
        %v475 = vsel %vm464, %v455, 0
        %v477 = vsel %vm464, %v458, 0
        %v479 = vsel %vm464, %v461, 0
        %vm481 = vcmask 1043456
        %v483 = vsel %vm481, %v463, 0
        %485 = vmatprep.subr.mxu0 0.0
        %486 = vmatpush1.msra.mxu0 %v483
        %487 = vmatprep.subr.mxu0 0.0
        %488 = vmatpush1.msra.mxu0 0.0
        %489 = vmatprep.subr.mxu0 0.0
        %490 = vmatpush1.msra.mxu0 0.0
        %491 = vmatprep.subr.mxu0 0.0
        %492 = vmatpush1.msra.mxu0 0.0
        %493 = vmatprep.subr.mxu0 0.0
        %494 = vmatpush1.msra.mxu0 0.0
        %495 = vmatprep.subr.mxu0 0.0
        %496 = vmatpush1.msra.mxu0 0.0
        %497 = vmatprep.subr.mxu0 0.0
        %498 = vmatpush1.msra.mxu0 0.0
        %499 = vmatprep.subr.mxu0 0.0
        %500 = vmatpush1.msra.mxu0 0.0
        %501 = vmatprep.subr.mxu0 0.0
        %502 = vmatpush1.msra.mxu0 0.0
        %503 = vmatprep.subr.mxu0 0.0
        %504 = vmatpush1.msra.mxu0 0.0
        %505 = vmatprep.subr.mxu0 0.0
        %506 = vmatpush1.msra.mxu0 0.0
        %507 = vmatprep.subr.mxu0 0.0
        %508 = vmatpush1.msra.mxu0 0.0
        %509 = vmatprep.subr.mxu0 0.0
        %510 = vmatpush1.msra.mxu0 0.0
        %511 = vmatprep.subr.mxu0 0.0
        %512 = vmatpush1.msra.mxu0 0.0
        %513 = vmatprep.subr.mxu0 0.0
        %514 = vmatpush1.msra.mxu0 0.0
        %515 = vmatprep.subr.mxu0 0.0
        %516 = vmatpush1.msra.mxu0 0.0
        %517 = vmatprep.subr.mxu0 0.0
        %518 = vmatpush1.msra.mxu0 0.0
        %519 = vmatprep.subr.mxu0 0.0
        %520 = vmatpush1.msra.mxu0 0.0
        %521 = vmatprep.subr.mxu0 0.0
        %522 = vmatpush1.msra.mxu0 0.0
        %523 = vmatprep.subr.mxu0 0.0
        %524 = vmatpush1.msra.mxu0 0.0
        %525 = vmatprep.subr.mxu0 0.0
        %526 = vmatpush1.msra.mxu0 0.0
        %527 = vmatprep.subr.mxu0 0.0
        %528 = vmatpush1.msra.mxu0 0.0
        %529 = vmatprep.subr.mxu0 0.0
        %530 = vmatpush1.msra.mxu0 0.0
        %531 = vmatprep.subr.mxu0 0.0
        %532 = vmatpush1.msra.mxu0 0.0
        %533 = vmatprep.subr.mxu0 0.0
        %534 = vmatpush1.msra.mxu0 0.0
        %535 = vmatprep.subr.mxu0 0.0
        %536 = vmatpush1.msra.mxu0 0.0
        %537 = vmatprep.subr.mxu0 0.0
        %538 = vmatpush1.msra.mxu0 0.0
        %539 = vmatprep.subr.mxu0 0.0
        %540 = vmatpush1.msra.mxu0 0.0
        %541 = vmatprep.subr.mxu0 0.0
        %542 = vmatpush1.msra.mxu0 0.0
        %543 = vmatprep.subr.mxu0 0.0
        %544 = vmatpush1.msra.mxu0 0.0
        %545 = vmatprep.subr.mxu0 0.0
        %546 = vmatpush1.msra.mxu0 0.0
        %547 = vmatprep.subr.mxu0 0.0
        %548 = vmatpush1.msra.mxu0 0.0
        %549 = vmatprep.mubr.f32.mxu0 0.0
        %550 = vmatmul.mubr.f32.gmra.mrb[0].mxu0 %v465
        %v551 = vpop.f32.mrb[0].mxu0
        %v552 = vadd.f32 0.0, %v551
        %v553 = vpop.f32.mrb[0].mxu0
        %554 = vmatprep.mubr.f32.mxu0 0.0
        %555 = vmatmul.mubr.f32.gmra.mrb[0].mxu0 %v467
        %v556 = vpop.f32.mrb[0].mxu0
        %v557 = vadd.f32 0.0, %v556
        %v558 = vpop.f32.mrb[0].mxu0
        %559 = vmatprep.mubr.f32.mxu0 0.0
        %560 = vmatmul.mubr.f32.gmra.mrb[0].mxu0 %v469
        %v561 = vpop.f32.mrb[0].mxu0
        %v562 = vadd.f32 0.0, %v561
        %v563 = vpop.f32.mrb[0].mxu0
        %564 = vmatprep.mubr.f32.mxu0 0.0
        %565 = vmatmul.mubr.f32.gmra.mrb[0].mxu0 %v471
        %v566 = vpop.f32.mrb[0].mxu0
        %v567 = vadd.f32 0.0, %v566
        %v568 = vpop.f32.mrb[0].mxu0
        %569 = vmatprep.mubr.f32.mxu0 0.0
        %570 = vmatmul.mubr.f32.gmra.mrb[0].mxu0 %v473
        %v571 = vpop.f32.mrb[0].mxu0
        %v572 = vadd.f32 0.0, %v571
        %v573 = vpop.f32.mrb[0].mxu0
        %574 = vmatprep.mubr.f32.mxu0 0.0
        %575 = vmatmul.mubr.f32.gmra.mrb[0].mxu0 %v475
        %v576 = vpop.f32.mrb[0].mxu0
        %v577 = vadd.f32 0.0, %v576
        %v578 = vpop.f32.mrb[0].mxu0
        %579 = vmatprep.mubr.f32.mxu0 0.0
        %580 = vmatmul.mubr.f32.gmra.mrb[0].mxu0 %v477
        %v581 = vpop.f32.mrb[0].mxu0
        %v582 = vadd.f32 0.0, %v581
        %v583 = vpop.f32.mrb[0].mxu0
        %584 = vmatprep.mubr.f32.mxu0 0.0
        %585 = vmatmul.mubr.f32.gmra.mrb[0].mxu0 %v479
        %v586 = vpop.f32.mrb[0].mxu0
        %v587 = vadd.f32 0.0, %v586
        %v588 = vpop.f32.mrb[0].mxu0
        %589 = vdwg.mxu0
        %v590 = vsel %vm464, %v360, 0
        %v592 = vsel %vm464, %v362, 0
        %v594 = vsel %vm464, %v364, 0
        %v596 = vsel %vm464, %v366, 0
        %v598 = vsel %vm464, %v368, 0
        %v600 = vsel %vm464, %v370, 0
        %v602 = vsel %vm464, %v372, 0
        %v604 = vsel %vm464, %v374, 0
        %v607 = vsel %vm481, %v420, 0
        %609 = vmatprep.subr.mxu0 0.0
        %610 = vmatpush1.msra.mxu0 %v607
        %611 = vmatprep.subr.mxu0 0.0
        %612 = vmatpush1.msra.mxu0 0.0
        %613 = vmatprep.subr.mxu0 0.0
        %614 = vmatpush1.msra.mxu0 0.0
        %615 = vmatprep.subr.mxu0 0.0
        %616 = vmatpush1.msra.mxu0 0.0
        %617 = vmatprep.subr.mxu0 0.0
        %618 = vmatpush1.msra.mxu0 0.0
        %619 = vmatprep.subr.mxu0 0.0
        %620 = vmatpush1.msra.mxu0 0.0
        %621 = vmatprep.subr.mxu0 0.0
        %622 = vmatpush1.msra.mxu0 0.0
        %623 = vmatprep.subr.mxu0 0.0
        %624 = vmatpush1.msra.mxu0 0.0
        %625 = vmatprep.subr.mxu0 0.0
        %626 = vmatpush1.msra.mxu0 0.0
        %627 = vmatprep.subr.mxu0 0.0
        %628 = vmatpush1.msra.mxu0 0.0
        %629 = vmatprep.subr.mxu0 0.0
        %630 = vmatpush1.msra.mxu0 0.0
        %631 = vmatprep.subr.mxu0 0.0
        %632 = vmatpush1.msra.mxu0 0.0
        %633 = vmatprep.subr.mxu0 0.0
        %634 = vmatpush1.msra.mxu0 0.0
        %635 = vmatprep.subr.mxu0 0.0
        %636 = vmatpush1.msra.mxu0 0.0
        %637 = vmatprep.subr.mxu0 0.0
        %638 = vmatpush1.msra.mxu0 0.0
        %639 = vmatprep.subr.mxu0 0.0
        %640 = vmatpush1.msra.mxu0 0.0
        %641 = vmatprep.subr.mxu0 0.0
        %642 = vmatpush1.msra.mxu0 0.0
        %643 = vmatprep.subr.mxu0 0.0
        %644 = vmatpush1.msra.mxu0 0.0
        %645 = vmatprep.subr.mxu0 0.0
        %646 = vmatpush1.msra.mxu0 0.0
        %647 = vmatprep.subr.mxu0 0.0
        %648 = vmatpush1.msra.mxu0 0.0
        %649 = vmatprep.subr.mxu0 0.0
        %650 = vmatpush1.msra.mxu0 0.0
        %651 = vmatprep.subr.mxu0 0.0
        %652 = vmatpush1.msra.mxu0 0.0
        %653 = vmatprep.subr.mxu0 0.0
        %654 = vmatpush1.msra.mxu0 0.0
        %655 = vmatprep.subr.mxu0 0.0
        %656 = vmatpush1.msra.mxu0 0.0
        %657 = vmatprep.subr.mxu0 0.0
        %658 = vmatpush1.msra.mxu0 0.0
        %659 = vmatprep.subr.mxu0 0.0
        %660 = vmatpush1.msra.mxu0 0.0
        %661 = vmatprep.subr.mxu0 0.0
        %662 = vmatpush1.msra.mxu0 0.0
        %663 = vmatprep.subr.mxu0 0.0
        %664 = vmatpush1.msra.mxu0 0.0
        %665 = vmatprep.subr.mxu0 0.0
        %666 = vmatpush1.msra.mxu0 0.0
        %667 = vmatprep.subr.mxu0 0.0
        %668 = vmatpush1.msra.mxu0 0.0
        %669 = vmatprep.subr.mxu0 0.0
        %670 = vmatpush1.msra.mxu0 0.0
        %671 = vmatprep.subr.mxu0 0.0
        %672 = vmatpush1.msra.mxu0 0.0
        %673 = vmatprep.mubr.f32.mxu0 0.0
        %674 = vmatmul.mubr.f32.gmra.mrb[0].mxu0 %v590
        %v675 = vpop.f32.mrb[0].mxu0
        %v676 = vadd.f32 %v552, %v675
        %v677 = vpop.f32.mrb[0].mxu0
        %678 = vmatprep.mubr.f32.mxu0 0.0
        %679 = vmatmul.mubr.f32.gmra.mrb[0].mxu0 %v592
        %v680 = vpop.f32.mrb[0].mxu0
        %v681 = vadd.f32 %v557, %v680
        %v682 = vpop.f32.mrb[0].mxu0
        %683 = vmatprep.mubr.f32.mxu0 0.0
        %684 = vmatmul.mubr.f32.gmra.mrb[0].mxu0 %v594
        %v685 = vpop.f32.mrb[0].mxu0
        %v686 = vadd.f32 %v562, %v685
        %v687 = vpop.f32.mrb[0].mxu0
        %688 = vmatprep.mubr.f32.mxu0 0.0
        %689 = vmatmul.mubr.f32.gmra.mrb[0].mxu0 %v596
        %v690 = vpop.f32.mrb[0].mxu0
        %v691 = vadd.f32 %v567, %v690
        %v692 = vpop.f32.mrb[0].mxu0
        %693 = vmatprep.mubr.f32.mxu0 0.0
        %694 = vmatmul.mubr.f32.gmra.mrb[0].mxu0 %v598
        %v695 = vpop.f32.mrb[0].mxu0
        %v696 = vadd.f32 %v572, %v695
        %v697 = vpop.f32.mrb[0].mxu0
        %698 = vmatprep.mubr.f32.mxu0 0.0
        %699 = vmatmul.mubr.f32.gmra.mrb[0].mxu0 %v600
        %v700 = vpop.f32.mrb[0].mxu0
        %v701 = vadd.f32 %v577, %v700
        %v702 = vpop.f32.mrb[0].mxu0
        %703 = vmatprep.mubr.f32.mxu0 0.0
        %704 = vmatmul.mubr.f32.gmra.mrb[0].mxu0 %v602
        %v705 = vpop.f32.mrb[0].mxu0
        %v706 = vadd.f32 %v582, %v705
        %v707 = vpop.f32.mrb[0].mxu0
        %708 = vmatprep.mubr.f32.mxu0 0.0
        %709 = vmatmul.mubr.f32.gmra.mrb[0].mxu0 %v604
        %v710 = vpop.f32.mrb[0].mxu0
        %v711 = vadd.f32 %v587, %v710
        %v712 = vpop.f32.mrb[0].mxu0
        %713 = vdwg.mxu0
        %vm714 = vcmask 1045504
        %v715 = vrot.slane %v360, 2
        %v716 = vrot.slane %v361, 2
        %v717 = vsel %vm714, %v715, %v716
        %v718 = vrot.slane %v362, 2
        %v719 = vrot.slane %v363, 2
        %v720 = vsel %vm714, %v718, %v719
        %v721 = vrot.slane %v364, 2
        %v722 = vrot.slane %v365, 2
        %v723 = vsel %vm714, %v721, %v722
        %v724 = vrot.slane %v366, 2
        %v725 = vrot.slane %v367, 2
        %v726 = vsel %vm714, %v724, %v725
        %v727 = vrot.slane %v368, 2
        %v728 = vrot.slane %v369, 2
        %v729 = vsel %vm714, %v727, %v728
        %v730 = vrot.slane %v370, 2
        %v731 = vrot.slane %v371, 2
        %v732 = vsel %vm714, %v730, %v731
        %v733 = vrot.slane %v372, 2
        %v734 = vrot.slane %v373, 2
        %v735 = vsel %vm714, %v733, %v734
        %v736 = vrot.slane %v374, 2
        %v737 = vrot.slane %v375, 2
        %v738 = vsel %vm714, %v736, %v737
        %s739 = scalar_lea.vmem %s3, 8
        %v740 = vld [vmem:[%s739] sm:$0xf]
        %v741 = vsel %vm464, %v717, 0
        %v743 = vsel %vm464, %v720, 0
        %v745 = vsel %vm464, %v723, 0
        %v747 = vsel %vm464, %v726, 0
        %v749 = vsel %vm464, %v729, 0
        %v751 = vsel %vm464, %v732, 0
        %v753 = vsel %vm464, %v735, 0
        %v755 = vsel %vm464, %v738, 0
        %v758 = vsel %vm481, %v740, 0
        %760 = vmatprep.subr.mxu0 0.0
        %761 = vmatpush1.msra.mxu0 %v758
        %762 = vmatprep.subr.mxu0 0.0
        %763 = vmatpush1.msra.mxu0 0.0
        %764 = vmatprep.subr.mxu0 0.0
        %765 = vmatpush1.msra.mxu0 0.0
        %766 = vmatprep.subr.mxu0 0.0
        %767 = vmatpush1.msra.mxu0 0.0
        %768 = vmatprep.subr.mxu0 0.0
        %769 = vmatpush1.msra.mxu0 0.0
        %770 = vmatprep.subr.mxu0 0.0
        %771 = vmatpush1.msra.mxu0 0.0
        %772 = vmatprep.subr.mxu0 0.0
        %773 = vmatpush1.msra.mxu0 0.0
        %774 = vmatprep.subr.mxu0 0.0
        %775 = vmatpush1.msra.mxu0 0.0
        %776 = vmatprep.subr.mxu0 0.0
        %777 = vmatpush1.msra.mxu0 0.0
        %778 = vmatprep.subr.mxu0 0.0
        %779 = vmatpush1.msra.mxu0 0.0
        %780 = vmatprep.subr.mxu0 0.0
        %781 = vmatpush1.msra.mxu0 0.0
        %782 = vmatprep.subr.mxu0 0.0
        %783 = vmatpush1.msra.mxu0 0.0
        %784 = vmatprep.subr.mxu0 0.0
        %785 = vmatpush1.msra.mxu0 0.0
        %786 = vmatprep.subr.mxu0 0.0
        %787 = vmatpush1.msra.mxu0 0.0
        %788 = vmatprep.subr.mxu0 0.0
        %789 = vmatpush1.msra.mxu0 0.0
        %790 = vmatprep.subr.mxu0 0.0
        %791 = vmatpush1.msra.mxu0 0.0
        %792 = vmatprep.subr.mxu0 0.0
        %793 = vmatpush1.msra.mxu0 0.0
        %794 = vmatprep.subr.mxu0 0.0
        %795 = vmatpush1.msra.mxu0 0.0
        %796 = vmatprep.subr.mxu0 0.0
        %797 = vmatpush1.msra.mxu0 0.0
        %798 = vmatprep.subr.mxu0 0.0
        %799 = vmatpush1.msra.mxu0 0.0
        %800 = vmatprep.subr.mxu0 0.0
        %801 = vmatpush1.msra.mxu0 0.0
        %802 = vmatprep.subr.mxu0 0.0
        %803 = vmatpush1.msra.mxu0 0.0
        %804 = vmatprep.subr.mxu0 0.0
        %805 = vmatpush1.msra.mxu0 0.0
        %806 = vmatprep.subr.mxu0 0.0
        %807 = vmatpush1.msra.mxu0 0.0
        %808 = vmatprep.subr.mxu0 0.0
        %809 = vmatpush1.msra.mxu0 0.0
        %810 = vmatprep.subr.mxu0 0.0
        %811 = vmatpush1.msra.mxu0 0.0
        %812 = vmatprep.subr.mxu0 0.0
        %813 = vmatpush1.msra.mxu0 0.0
        %814 = vmatprep.subr.mxu0 0.0
        %815 = vmatpush1.msra.mxu0 0.0
        %816 = vmatprep.subr.mxu0 0.0
        %817 = vmatpush1.msra.mxu0 0.0
        %818 = vmatprep.subr.mxu0 0.0
        %819 = vmatpush1.msra.mxu0 0.0
        %820 = vmatprep.subr.mxu0 0.0
        %821 = vmatpush1.msra.mxu0 0.0
        %822 = vmatprep.subr.mxu0 0.0
        %823 = vmatpush1.msra.mxu0 0.0
        %824 = vmatprep.mubr.f32.mxu0 0.0
        %825 = vmatmul.mubr.f32.gmra.mrb[0].mxu0 %v741
        %v826 = vpop.f32.mrb[0].mxu0
        %v827 = vadd.f32 0.0, %v826
        %v828 = vpop.f32.mrb[0].mxu0
        %829 = vmatprep.mubr.f32.mxu0 0.0
        %830 = vmatmul.mubr.f32.gmra.mrb[0].mxu0 %v743
        %v831 = vpop.f32.mrb[0].mxu0
        %v832 = vadd.f32 0.0, %v831
        %v833 = vpop.f32.mrb[0].mxu0
        %834 = vmatprep.mubr.f32.mxu0 0.0
        %835 = vmatmul.mubr.f32.gmra.mrb[0].mxu0 %v745
        %v836 = vpop.f32.mrb[0].mxu0
        %v837 = vadd.f32 0.0, %v836
        %v838 = vpop.f32.mrb[0].mxu0
        %839 = vmatprep.mubr.f32.mxu0 0.0
        %840 = vmatmul.mubr.f32.gmra.mrb[0].mxu0 %v747
        %v841 = vpop.f32.mrb[0].mxu0
        %v842 = vadd.f32 0.0, %v841
        %v843 = vpop.f32.mrb[0].mxu0
        %844 = vmatprep.mubr.f32.mxu0 0.0
        %845 = vmatmul.mubr.f32.gmra.mrb[0].mxu0 %v749
        %v846 = vpop.f32.mrb[0].mxu0
        %v847 = vadd.f32 0.0, %v846
        %v848 = vpop.f32.mrb[0].mxu0
        %849 = vmatprep.mubr.f32.mxu0 0.0
        %850 = vmatmul.mubr.f32.gmra.mrb[0].mxu0 %v751
        %v851 = vpop.f32.mrb[0].mxu0
        %v852 = vadd.f32 0.0, %v851
        %v853 = vpop.f32.mrb[0].mxu0
        %854 = vmatprep.mubr.f32.mxu0 0.0
        %855 = vmatmul.mubr.f32.gmra.mrb[0].mxu0 %v753
        %v856 = vpop.f32.mrb[0].mxu0
        %v857 = vadd.f32 0.0, %v856
        %v858 = vpop.f32.mrb[0].mxu0
        %859 = vmatprep.mubr.f32.mxu0 0.0
        %860 = vmatmul.mubr.f32.gmra.mrb[0].mxu0 %v755
        %v861 = vpop.f32.mrb[0].mxu0
        %v862 = vadd.f32 0.0, %v861
        %v863 = vpop.f32.mrb[0].mxu0
        %864 = vdwg.mxu0
        %v865 = vadd.f32 %v676, %v827
        %v866 = vadd.f32 %v681, %v832
        %v867 = vadd.f32 %v686, %v837
        %v868 = vadd.f32 %v691, %v842
        %v869 = vadd.f32 %v696, %v847
        %v870 = vadd.f32 %v701, %v852
        %v871 = vadd.f32 %v706, %v857
        %v872 = vadd.f32 %v711, %v862
        %s873 = scalar_lea.vmem %s3, 12
        %v874 = vld [vmem:[%s873] sm:$0xf]
        %v876 = vsel %vm464, %v376, 0
        %v879 = vsel %vm481, %v874, 0
        %881 = vmatprep.subr.mxu0 0.0
        %882 = vmatpush1.msra.mxu0 %v879
        %883 = vmatprep.subr.mxu0 0.0
        %884 = vmatpush1.msra.mxu0 0.0
        %885 = vmatprep.subr.mxu0 0.0
        %886 = vmatpush1.msra.mxu0 0.0
        %887 = vmatprep.subr.mxu0 0.0
        %888 = vmatpush1.msra.mxu0 0.0
        %889 = vmatprep.subr.mxu0 0.0
        %890 = vmatpush1.msra.mxu0 0.0
        %891 = vmatprep.subr.mxu0 0.0
        %892 = vmatpush1.msra.mxu0 0.0
        %893 = vmatprep.subr.mxu0 0.0
        %894 = vmatpush1.msra.mxu0 0.0
        %895 = vmatprep.subr.mxu0 0.0
        %896 = vmatpush1.msra.mxu0 0.0
        %897 = vmatprep.subr.mxu0 0.0
        %898 = vmatpush1.msra.mxu0 0.0
        %899 = vmatprep.subr.mxu0 0.0
        %900 = vmatpush1.msra.mxu0 0.0
        %901 = vmatprep.subr.mxu0 0.0
        %902 = vmatpush1.msra.mxu0 0.0
        %903 = vmatprep.subr.mxu0 0.0
        %904 = vmatpush1.msra.mxu0 0.0
        %905 = vmatprep.subr.mxu0 0.0
        %906 = vmatpush1.msra.mxu0 0.0
        %907 = vmatprep.subr.mxu0 0.0
        %908 = vmatpush1.msra.mxu0 0.0
        %909 = vmatprep.subr.mxu0 0.0
        %910 = vmatpush1.msra.mxu0 0.0
        %911 = vmatprep.subr.mxu0 0.0
        %912 = vmatpush1.msra.mxu0 0.0
        %913 = vmatprep.subr.mxu0 0.0
        %914 = vmatpush1.msra.mxu0 0.0
        %915 = vmatprep.subr.mxu0 0.0
        %916 = vmatpush1.msra.mxu0 0.0
        %917 = vmatprep.subr.mxu0 0.0
        %918 = vmatpush1.msra.mxu0 0.0
        %919 = vmatprep.subr.mxu0 0.0
        %920 = vmatpush1.msra.mxu0 0.0
        %921 = vmatprep.subr.mxu0 0.0
        %922 = vmatpush1.msra.mxu0 0.0
        %923 = vmatprep.subr.mxu0 0.0
        %924 = vmatpush1.msra.mxu0 0.0
        %925 = vmatprep.subr.mxu0 0.0
        %926 = vmatpush1.msra.mxu0 0.0
        %927 = vmatprep.subr.mxu0 0.0
        %928 = vmatpush1.msra.mxu0 0.0
        %929 = vmatprep.subr.mxu0 0.0
        %930 = vmatpush1.msra.mxu0 0.0
        %931 = vmatprep.subr.mxu0 0.0
        %932 = vmatpush1.msra.mxu0 0.0
        %933 = vmatprep.subr.mxu0 0.0
        %934 = vmatpush1.msra.mxu0 0.0
        %935 = vmatprep.subr.mxu0 0.0
        %936 = vmatpush1.msra.mxu0 0.0
        %937 = vmatprep.subr.mxu0 0.0
        %938 = vmatpush1.msra.mxu0 0.0
        %939 = vmatprep.subr.mxu0 0.0
        %940 = vmatpush1.msra.mxu0 0.0
        %941 = vmatprep.subr.mxu0 0.0
        %942 = vmatpush1.msra.mxu0 0.0
        %943 = vmatprep.subr.mxu0 0.0
        %944 = vmatpush1.msra.mxu0 0.0
        %945 = vmatprep.mubr.f32.mxu0 0.0
        %946 = vmatmul.mubr.f32.gmra.mrb[0].mxu0 %v592
        %v947 = vpop.f32.mrb[0].mxu0
        %v948 = vadd.f32 0.0, %v947
        %v949 = vpop.f32.mrb[0].mxu0
        %950 = vmatprep.mubr.f32.mxu0 0.0
        %951 = vmatmul.mubr.f32.gmra.mrb[0].mxu0 %v594
        %v952 = vpop.f32.mrb[0].mxu0
        %v953 = vadd.f32 0.0, %v952
        %v954 = vpop.f32.mrb[0].mxu0
        %955 = vmatprep.mubr.f32.mxu0 0.0
        %956 = vmatmul.mubr.f32.gmra.mrb[0].mxu0 %v596
        %v957 = vpop.f32.mrb[0].mxu0
        %v958 = vadd.f32 0.0, %v957
        %v959 = vpop.f32.mrb[0].mxu0
        %960 = vmatprep.mubr.f32.mxu0 0.0
        %961 = vmatmul.mubr.f32.gmra.mrb[0].mxu0 %v598
        %v962 = vpop.f32.mrb[0].mxu0
        %v963 = vadd.f32 0.0, %v962
        %v964 = vpop.f32.mrb[0].mxu0
        %965 = vmatprep.mubr.f32.mxu0 0.0
        %966 = vmatmul.mubr.f32.gmra.mrb[0].mxu0 %v600
        %v967 = vpop.f32.mrb[0].mxu0
        %v968 = vadd.f32 0.0, %v967
        %v969 = vpop.f32.mrb[0].mxu0
        %970 = vmatprep.mubr.f32.mxu0 0.0
        %971 = vmatmul.mubr.f32.gmra.mrb[0].mxu0 %v602
        %v972 = vpop.f32.mrb[0].mxu0
        %v973 = vadd.f32 0.0, %v972
        %v974 = vpop.f32.mrb[0].mxu0
        %975 = vmatprep.mubr.f32.mxu0 0.0
        %976 = vmatmul.mubr.f32.gmra.mrb[0].mxu0 %v604
        %v977 = vpop.f32.mrb[0].mxu0
        %v978 = vadd.f32 0.0, %v977
        %v979 = vpop.f32.mrb[0].mxu0
        %980 = vmatprep.mubr.f32.mxu0 0.0
        %981 = vmatmul.mubr.f32.gmra.mrb[0].mxu0 %v876
        %v982 = vpop.f32.mrb[0].mxu0
        %v983 = vadd.f32 0.0, %v982
        %v984 = vpop.f32.mrb[0].mxu0
        %985 = vdwg.mxu0
        %v986 = vadd.f32 %v865, %v948
        %v987 = vadd.f32 %v866, %v953
        %v988 = vadd.f32 %v867, %v958
        %v989 = vadd.f32 %v868, %v963
        %v990 = vadd.f32 %v869, %v968
        %v991 = vadd.f32 %v870, %v973
        %v992 = vadd.f32 %v871, %v978
        %v993 = vadd.f32 %v872, %v983
        %v995 = vrot.slane %v376, 1
        %v996 = vrot.slane %v377, 1
        %v997 = vsel %vm437, %v995, %v996
        %s998 = scalar_lea.vmem %s3, 16
        %v999 = vld [vmem:[%s998] sm:$0xf]
        %v1000 = vsel %vm464, %v997, 0
        %v1003 = vsel %vm481, %v999, 0
        %1005 = vmatprep.subr.mxu0 0.0
        %1006 = vmatpush1.msra.mxu0 %v1003
        %1007 = vmatprep.subr.mxu0 0.0
        %1008 = vmatpush1.msra.mxu0 0.0
        %1009 = vmatprep.subr.mxu0 0.0
        %1010 = vmatpush1.msra.mxu0 0.0
        %1011 = vmatprep.subr.mxu0 0.0
        %1012 = vmatpush1.msra.mxu0 0.0
        %1013 = vmatprep.subr.mxu0 0.0
        %1014 = vmatpush1.msra.mxu0 0.0
        %1015 = vmatprep.subr.mxu0 0.0
        %1016 = vmatpush1.msra.mxu0 0.0
        %1017 = vmatprep.subr.mxu0 0.0
        %1018 = vmatpush1.msra.mxu0 0.0
        %1019 = vmatprep.subr.mxu0 0.0
        %1020 = vmatpush1.msra.mxu0 0.0
        %1021 = vmatprep.subr.mxu0 0.0
        %1022 = vmatpush1.msra.mxu0 0.0
        %1023 = vmatprep.subr.mxu0 0.0
        %1024 = vmatpush1.msra.mxu0 0.0
        %1025 = vmatprep.subr.mxu0 0.0
        %1026 = vmatpush1.msra.mxu0 0.0
        %1027 = vmatprep.subr.mxu0 0.0
        %1028 = vmatpush1.msra.mxu0 0.0
        %1029 = vmatprep.subr.mxu0 0.0
        %1030 = vmatpush1.msra.mxu0 0.0
        %1031 = vmatprep.subr.mxu0 0.0
        %1032 = vmatpush1.msra.mxu0 0.0
        %1033 = vmatprep.subr.mxu0 0.0
        %1034 = vmatpush1.msra.mxu0 0.0
        %1035 = vmatprep.subr.mxu0 0.0
        %1036 = vmatpush1.msra.mxu0 0.0
        %1037 = vmatprep.subr.mxu0 0.0
        %1038 = vmatpush1.msra.mxu0 0.0
        %1039 = vmatprep.subr.mxu0 0.0
        %1040 = vmatpush1.msra.mxu0 0.0
        %1041 = vmatprep.subr.mxu0 0.0
        %1042 = vmatpush1.msra.mxu0 0.0
        %1043 = vmatprep.subr.mxu0 0.0
        %1044 = vmatpush1.msra.mxu0 0.0
        %1045 = vmatprep.subr.mxu0 0.0
        %1046 = vmatpush1.msra.mxu0 0.0
        %1047 = vmatprep.subr.mxu0 0.0
        %1048 = vmatpush1.msra.mxu0 0.0
        %1049 = vmatprep.subr.mxu0 0.0
        %1050 = vmatpush1.msra.mxu0 0.0
        %1051 = vmatprep.subr.mxu0 0.0
        %1052 = vmatpush1.msra.mxu0 0.0
        %1053 = vmatprep.subr.mxu0 0.0
        %1054 = vmatpush1.msra.mxu0 0.0
        %1055 = vmatprep.subr.mxu0 0.0
        %1056 = vmatpush1.msra.mxu0 0.0
        %1057 = vmatprep.subr.mxu0 0.0
        %1058 = vmatpush1.msra.mxu0 0.0
        %1059 = vmatprep.subr.mxu0 0.0
        %1060 = vmatpush1.msra.mxu0 0.0
        %1061 = vmatprep.subr.mxu0 0.0
        %1062 = vmatpush1.msra.mxu0 0.0
        %1063 = vmatprep.subr.mxu0 0.0
        %1064 = vmatpush1.msra.mxu0 0.0
        %1065 = vmatprep.subr.mxu0 0.0
        %1066 = vmatpush1.msra.mxu0 0.0
        %1067 = vmatprep.subr.mxu0 0.0
        %1068 = vmatpush1.msra.mxu0 0.0
        %1069 = vmatprep.mubr.f32.mxu0 0.0
        %1070 = vmatmul.mubr.f32.gmra.mrb[0].mxu0 %v467
        %v1071 = vpop.f32.mrb[0].mxu0
        %v1072 = vadd.f32 0.0, %v1071
        %v1073 = vpop.f32.mrb[0].mxu0
        %1074 = vmatprep.mubr.f32.mxu0 0.0
        %1075 = vmatmul.mubr.f32.gmra.mrb[0].mxu0 %v469
        %v1076 = vpop.f32.mrb[0].mxu0
        %v1077 = vadd.f32 0.0, %v1076
        %v1078 = vpop.f32.mrb[0].mxu0
        %1079 = vmatprep.mubr.f32.mxu0 0.0
        %1080 = vmatmul.mubr.f32.gmra.mrb[0].mxu0 %v471
        %v1081 = vpop.f32.mrb[0].mxu0
        %v1082 = vadd.f32 0.0, %v1081
        %v1083 = vpop.f32.mrb[0].mxu0
        %1084 = vmatprep.mubr.f32.mxu0 0.0
        %1085 = vmatmul.mubr.f32.gmra.mrb[0].mxu0 %v473
        %v1086 = vpop.f32.mrb[0].mxu0
        %v1087 = vadd.f32 0.0, %v1086
        %v1088 = vpop.f32.mrb[0].mxu0
        %1089 = vmatprep.mubr.f32.mxu0 0.0
        %1090 = vmatmul.mubr.f32.gmra.mrb[0].mxu0 %v475
        %v1091 = vpop.f32.mrb[0].mxu0
        %v1092 = vadd.f32 0.0, %v1091
        %v1093 = vpop.f32.mrb[0].mxu0
        %1094 = vmatprep.mubr.f32.mxu0 0.0
        %1095 = vmatmul.mubr.f32.gmra.mrb[0].mxu0 %v477
        %v1096 = vpop.f32.mrb[0].mxu0
        %v1097 = vadd.f32 0.0, %v1096
        %v1098 = vpop.f32.mrb[0].mxu0
        %1099 = vmatprep.mubr.f32.mxu0 0.0
        %1100 = vmatmul.mubr.f32.gmra.mrb[0].mxu0 %v479
        %v1101 = vpop.f32.mrb[0].mxu0
        %v1102 = vadd.f32 0.0, %v1101
        %v1103 = vpop.f32.mrb[0].mxu0
        %1104 = vmatprep.mubr.f32.mxu0 0.0
        %1105 = vmatmul.mubr.f32.gmra.mrb[0].mxu0 %v1000
        %v1106 = vpop.f32.mrb[0].mxu0
        %v1107 = vadd.f32 0.0, %v1106
        %v1108 = vpop.f32.mrb[0].mxu0
        %1109 = vdwg.mxu0
        %v1110 = vadd.f32 %v986, %v1072
        %v1111 = vadd.f32 %v987, %v1077
        %v1112 = vadd.f32 %v988, %v1082
        %v1113 = vadd.f32 %v989, %v1087
        %v1114 = vadd.f32 %v990, %v1092
        %v1115 = vadd.f32 %v991, %v1097
        %v1116 = vadd.f32 %v992, %v1102
        %v1117 = vadd.f32 %v993, %v1107
        %v1118 = vrot.slane %v376, 2
        %v1119 = vrot.slane %v377, 2
        %v1120 = vsel %vm714, %v1118, %v1119
        %s1121 = scalar_lea.vmem %s3, 20
        %v1122 = vld [vmem:[%s1121] sm:$0xf]
        %v1123 = vsel %vm464, %v1120, 0
        %v1126 = vsel %vm481, %v1122, 0
        %1128 = vmatprep.subr.mxu0 0.0
        %1129 = vmatpush1.msra.mxu0 %v1126
        %1130 = vmatprep.subr.mxu0 0.0
        %1131 = vmatpush1.msra.mxu0 0.0
        %1132 = vmatprep.subr.mxu0 0.0
        %1133 = vmatpush1.msra.mxu0 0.0
        %1134 = vmatprep.subr.mxu0 0.0
        %1135 = vmatpush1.msra.mxu0 0.0
        %1136 = vmatprep.subr.mxu0 0.0
        %1137 = vmatpush1.msra.mxu0 0.0
        %1138 = vmatprep.subr.mxu0 0.0
        %1139 = vmatpush1.msra.mxu0 0.0
        %1140 = vmatprep.subr.mxu0 0.0
        %1141 = vmatpush1.msra.mxu0 0.0
        %1142 = vmatprep.subr.mxu0 0.0
        %1143 = vmatpush1.msra.mxu0 0.0
        %1144 = vmatprep.subr.mxu0 0.0
        %1145 = vmatpush1.msra.mxu0 0.0
        %1146 = vmatprep.subr.mxu0 0.0
        %1147 = vmatpush1.msra.mxu0 0.0
        %1148 = vmatprep.subr.mxu0 0.0
        %1149 = vmatpush1.msra.mxu0 0.0
        %1150 = vmatprep.subr.mxu0 0.0
        %1151 = vmatpush1.msra.mxu0 0.0
        %1152 = vmatprep.subr.mxu0 0.0
        %1153 = vmatpush1.msra.mxu0 0.0
        %1154 = vmatprep.subr.mxu0 0.0
        %1155 = vmatpush1.msra.mxu0 0.0
        %1156 = vmatprep.subr.mxu0 0.0
        %1157 = vmatpush1.msra.mxu0 0.0
        %1158 = vmatprep.subr.mxu0 0.0
        %1159 = vmatpush1.msra.mxu0 0.0
        %1160 = vmatprep.subr.mxu0 0.0
        %1161 = vmatpush1.msra.mxu0 0.0
        %1162 = vmatprep.subr.mxu0 0.0
        %1163 = vmatpush1.msra.mxu0 0.0
        %1164 = vmatprep.subr.mxu0 0.0
        %1165 = vmatpush1.msra.mxu0 0.0
        %1166 = vmatprep.subr.mxu0 0.0
        %1167 = vmatpush1.msra.mxu0 0.0
        %1168 = vmatprep.subr.mxu0 0.0
        %1169 = vmatpush1.msra.mxu0 0.0
        %1170 = vmatprep.subr.mxu0 0.0
        %1171 = vmatpush1.msra.mxu0 0.0
        %1172 = vmatprep.subr.mxu0 0.0
        %1173 = vmatpush1.msra.mxu0 0.0
        %1174 = vmatprep.subr.mxu0 0.0
        %1175 = vmatpush1.msra.mxu0 0.0
        %1176 = vmatprep.subr.mxu0 0.0
        %1177 = vmatpush1.msra.mxu0 0.0
        %1178 = vmatprep.subr.mxu0 0.0
        %1179 = vmatpush1.msra.mxu0 0.0
        %1180 = vmatprep.subr.mxu0 0.0
        %1181 = vmatpush1.msra.mxu0 0.0
        %1182 = vmatprep.subr.mxu0 0.0
        %1183 = vmatpush1.msra.mxu0 0.0
        %1184 = vmatprep.subr.mxu0 0.0
        %1185 = vmatpush1.msra.mxu0 0.0
        %1186 = vmatprep.subr.mxu0 0.0
        %1187 = vmatpush1.msra.mxu0 0.0
        %1188 = vmatprep.subr.mxu0 0.0
        %1189 = vmatpush1.msra.mxu0 0.0
        %1190 = vmatprep.subr.mxu0 0.0
        %1191 = vmatpush1.msra.mxu0 0.0
        %1192 = vmatprep.mubr.f32.mxu0 0.0
        %1193 = vmatmul.mubr.f32.gmra.mrb[0].mxu0 %v743
        %v1194 = vpop.f32.mrb[0].mxu0
        %v1195 = vadd.f32 0.0, %v1194
        %v1196 = vpop.f32.mrb[0].mxu0
        %1197 = vmatprep.mubr.f32.mxu0 0.0
        %1198 = vmatmul.mubr.f32.gmra.mrb[0].mxu0 %v745
        %v1199 = vpop.f32.mrb[0].mxu0
        %v1200 = vadd.f32 0.0, %v1199
        %v1201 = vpop.f32.mrb[0].mxu0
        %1202 = vmatprep.mubr.f32.mxu0 0.0
        %1203 = vmatmul.mubr.f32.gmra.mrb[0].mxu0 %v747
        %v1204 = vpop.f32.mrb[0].mxu0
        %v1205 = vadd.f32 0.0, %v1204
        %v1206 = vpop.f32.mrb[0].mxu0
        %1207 = vmatprep.mubr.f32.mxu0 0.0
        %1208 = vmatmul.mubr.f32.gmra.mrb[0].mxu0 %v749
        %v1209 = vpop.f32.mrb[0].mxu0
        %v1210 = vadd.f32 0.0, %v1209
        %v1211 = vpop.f32.mrb[0].mxu0
        %1212 = vmatprep.mubr.f32.mxu0 0.0
        %1213 = vmatmul.mubr.f32.gmra.mrb[0].mxu0 %v751
        %v1214 = vpop.f32.mrb[0].mxu0
        %v1215 = vadd.f32 0.0, %v1214
        %v1216 = vpop.f32.mrb[0].mxu0
        %1217 = vmatprep.mubr.f32.mxu0 0.0
        %1218 = vmatmul.mubr.f32.gmra.mrb[0].mxu0 %v753
        %v1219 = vpop.f32.mrb[0].mxu0
        %v1220 = vadd.f32 0.0, %v1219
        %v1221 = vpop.f32.mrb[0].mxu0
        %1222 = vmatprep.mubr.f32.mxu0 0.0
        %1223 = vmatmul.mubr.f32.gmra.mrb[0].mxu0 %v755
        %v1224 = vpop.f32.mrb[0].mxu0
        %v1225 = vadd.f32 0.0, %v1224
        %v1226 = vpop.f32.mrb[0].mxu0
        %1227 = vmatprep.mubr.f32.mxu0 0.0
        %1228 = vmatmul.mubr.f32.gmra.mrb[0].mxu0 %v1123
        %v1229 = vpop.f32.mrb[0].mxu0
        %v1230 = vadd.f32 0.0, %v1229
        %v1231 = vpop.f32.mrb[0].mxu0
        %1232 = vdwg.mxu0
        %v1233 = vadd.f32 %v1110, %v1195
        %v1234 = vadd.f32 %v1111, %v1200
        %v1235 = vadd.f32 %v1112, %v1205
        %v1236 = vadd.f32 %v1113, %v1210
        %v1237 = vadd.f32 %v1114, %v1215
        %v1238 = vadd.f32 %v1115, %v1220
        %v1239 = vadd.f32 %v1116, %v1225
        %v1240 = vadd.f32 %v1117, %v1230
        %s1241 = scalar_lea.vmem %s3, 24
        %v1242 = vld [vmem:[%s1241] sm:$0xf]
        %v1244 = vsel %vm464, %v378, 0
        %v1247 = vsel %vm481, %v1242, 0
        %1249 = vmatprep.subr.mxu0 0.0
        %1250 = vmatpush1.msra.mxu0 %v1247
        %1251 = vmatprep.subr.mxu0 0.0
        %1252 = vmatpush1.msra.mxu0 0.0
        %1253 = vmatprep.subr.mxu0 0.0
        %1254 = vmatpush1.msra.mxu0 0.0
        %1255 = vmatprep.subr.mxu0 0.0
        %1256 = vmatpush1.msra.mxu0 0.0
        %1257 = vmatprep.subr.mxu0 0.0
        %1258 = vmatpush1.msra.mxu0 0.0
        %1259 = vmatprep.subr.mxu0 0.0
        %1260 = vmatpush1.msra.mxu0 0.0
        %1261 = vmatprep.subr.mxu0 0.0
        %1262 = vmatpush1.msra.mxu0 0.0
        %1263 = vmatprep.subr.mxu0 0.0
        %1264 = vmatpush1.msra.mxu0 0.0
        %1265 = vmatprep.subr.mxu0 0.0
        %1266 = vmatpush1.msra.mxu0 0.0
        %1267 = vmatprep.subr.mxu0 0.0
        %1268 = vmatpush1.msra.mxu0 0.0
        %1269 = vmatprep.subr.mxu0 0.0
        %1270 = vmatpush1.msra.mxu0 0.0
        %1271 = vmatprep.subr.mxu0 0.0
        %1272 = vmatpush1.msra.mxu0 0.0
        %1273 = vmatprep.subr.mxu0 0.0
        %1274 = vmatpush1.msra.mxu0 0.0
        %1275 = vmatprep.subr.mxu0 0.0
        %1276 = vmatpush1.msra.mxu0 0.0
        %1277 = vmatprep.subr.mxu0 0.0
        %1278 = vmatpush1.msra.mxu0 0.0
        %1279 = vmatprep.subr.mxu0 0.0
        %1280 = vmatpush1.msra.mxu0 0.0
        %1281 = vmatprep.subr.mxu0 0.0
        %1282 = vmatpush1.msra.mxu0 0.0
        %1283 = vmatprep.subr.mxu0 0.0
        %1284 = vmatpush1.msra.mxu0 0.0
        %1285 = vmatprep.subr.mxu0 0.0
        %1286 = vmatpush1.msra.mxu0 0.0
        %1287 = vmatprep.subr.mxu0 0.0
        %1288 = vmatpush1.msra.mxu0 0.0
        %1289 = vmatprep.subr.mxu0 0.0
        %1290 = vmatpush1.msra.mxu0 0.0
        %1291 = vmatprep.subr.mxu0 0.0
        %1292 = vmatpush1.msra.mxu0 0.0
        %1293 = vmatprep.subr.mxu0 0.0
        %1294 = vmatpush1.msra.mxu0 0.0
        %1295 = vmatprep.subr.mxu0 0.0
        %1296 = vmatpush1.msra.mxu0 0.0
        %1297 = vmatprep.subr.mxu0 0.0
        %1298 = vmatpush1.msra.mxu0 0.0
        %1299 = vmatprep.subr.mxu0 0.0
        %1300 = vmatpush1.msra.mxu0 0.0
        %1301 = vmatprep.subr.mxu0 0.0
        %1302 = vmatpush1.msra.mxu0 0.0
        %1303 = vmatprep.subr.mxu0 0.0
        %1304 = vmatpush1.msra.mxu0 0.0
        %1305 = vmatprep.subr.mxu0 0.0
        %1306 = vmatpush1.msra.mxu0 0.0
        %1307 = vmatprep.subr.mxu0 0.0
        %1308 = vmatpush1.msra.mxu0 0.0
        %1309 = vmatprep.subr.mxu0 0.0
        %1310 = vmatpush1.msra.mxu0 0.0
        %1311 = vmatprep.subr.mxu0 0.0
        %1312 = vmatpush1.msra.mxu0 0.0
        %1313 = vmatprep.mubr.f32.mxu0 0.0
        %1314 = vmatmul.mubr.f32.gmra.mrb[0].mxu0 %v594
        %v1315 = vpop.f32.mrb[0].mxu0
        %v1316 = vadd.f32 0.0, %v1315
        %v1317 = vpop.f32.mrb[0].mxu0
        %1318 = vmatprep.mubr.f32.mxu0 0.0
        %1319 = vmatmul.mubr.f32.gmra.mrb[0].mxu0 %v596
        %v1320 = vpop.f32.mrb[0].mxu0
        %v1321 = vadd.f32 0.0, %v1320
        %v1322 = vpop.f32.mrb[0].mxu0
        %1323 = vmatprep.mubr.f32.mxu0 0.0
        %1324 = vmatmul.mubr.f32.gmra.mrb[0].mxu0 %v598
        %v1325 = vpop.f32.mrb[0].mxu0
        %v1326 = vadd.f32 0.0, %v1325
        %v1327 = vpop.f32.mrb[0].mxu0
        %1328 = vmatprep.mubr.f32.mxu0 0.0
        %1329 = vmatmul.mubr.f32.gmra.mrb[0].mxu0 %v600
        %v1330 = vpop.f32.mrb[0].mxu0
        %v1331 = vadd.f32 0.0, %v1330
        %v1332 = vpop.f32.mrb[0].mxu0
        %1333 = vmatprep.mubr.f32.mxu0 0.0
        %1334 = vmatmul.mubr.f32.gmra.mrb[0].mxu0 %v602
        %v1335 = vpop.f32.mrb[0].mxu0
        %v1336 = vadd.f32 0.0, %v1335
        %v1337 = vpop.f32.mrb[0].mxu0
        %1338 = vmatprep.mubr.f32.mxu0 0.0
        %1339 = vmatmul.mubr.f32.gmra.mrb[0].mxu0 %v604
        %v1340 = vpop.f32.mrb[0].mxu0
        %v1341 = vadd.f32 0.0, %v1340
        %v1342 = vpop.f32.mrb[0].mxu0
        %1343 = vmatprep.mubr.f32.mxu0 0.0
        %1344 = vmatmul.mubr.f32.gmra.mrb[0].mxu0 %v876
        %v1345 = vpop.f32.mrb[0].mxu0
        %v1346 = vadd.f32 0.0, %v1345
        %v1347 = vpop.f32.mrb[0].mxu0
        %1348 = vmatprep.mubr.f32.mxu0 0.0
        %1349 = vmatmul.mubr.f32.gmra.mrb[0].mxu0 %v1244
        %v1350 = vpop.f32.mrb[0].mxu0
        %v1351 = vadd.f32 0.0, %v1350
        %v1352 = vpop.f32.mrb[0].mxu0
        %1353 = vdwg.mxu0
        %v1354 = vadd.f32 %v1233, %v1316
        %v1355 = vadd.f32 %v1234, %v1321
        %v1356 = vadd.f32 %v1235, %v1326
        %v1357 = vadd.f32 %v1236, %v1331
        %v1358 = vadd.f32 %v1237, %v1336
        %v1359 = vadd.f32 %v1238, %v1341
        %v1360 = vadd.f32 %v1239, %v1346
        %v1361 = vadd.f32 %v1240, %v1351
        %v1363 = vrot.slane %v378, 1
        %v1364 = vrot.slane %v379, 1
        %v1365 = vsel %vm437, %v1363, %v1364
        %s1366 = scalar_lea.vmem %s3, 28
        %v1367 = vld [vmem:[%s1366] sm:$0xf]
        %v1368 = vsel %vm464, %v1365, 0
        %v1371 = vsel %vm481, %v1367, 0
        %1373 = vmatprep.subr.mxu0 0.0
        %1374 = vmatpush1.msra.mxu0 %v1371
        %1375 = vmatprep.subr.mxu0 0.0
        %1376 = vmatpush1.msra.mxu0 0.0
        %1377 = vmatprep.subr.mxu0 0.0
        %1378 = vmatpush1.msra.mxu0 0.0
        %1379 = vmatprep.subr.mxu0 0.0
        %1380 = vmatpush1.msra.mxu0 0.0
        %1381 = vmatprep.subr.mxu0 0.0
        %1382 = vmatpush1.msra.mxu0 0.0
        %1383 = vmatprep.subr.mxu0 0.0
        %1384 = vmatpush1.msra.mxu0 0.0
        %1385 = vmatprep.subr.mxu0 0.0
        %1386 = vmatpush1.msra.mxu0 0.0
        %1387 = vmatprep.subr.mxu0 0.0
        %1388 = vmatpush1.msra.mxu0 0.0
        %1389 = vmatprep.subr.mxu0 0.0
        %1390 = vmatpush1.msra.mxu0 0.0
        %1391 = vmatprep.subr.mxu0 0.0
        %1392 = vmatpush1.msra.mxu0 0.0
        %1393 = vmatprep.subr.mxu0 0.0
        %1394 = vmatpush1.msra.mxu0 0.0
        %1395 = vmatprep.subr.mxu0 0.0
        %1396 = vmatpush1.msra.mxu0 0.0
        %1397 = vmatprep.subr.mxu0 0.0
        %1398 = vmatpush1.msra.mxu0 0.0
        %1399 = vmatprep.subr.mxu0 0.0
        %1400 = vmatpush1.msra.mxu0 0.0
        %1401 = vmatprep.subr.mxu0 0.0
        %1402 = vmatpush1.msra.mxu0 0.0
        %1403 = vmatprep.subr.mxu0 0.0
        %1404 = vmatpush1.msra.mxu0 0.0
        %1405 = vmatprep.subr.mxu0 0.0
        %1406 = vmatpush1.msra.mxu0 0.0
        %1407 = vmatprep.subr.mxu0 0.0
        %1408 = vmatpush1.msra.mxu0 0.0
        %1409 = vmatprep.subr.mxu0 0.0
        %1410 = vmatpush1.msra.mxu0 0.0
        %1411 = vmatprep.subr.mxu0 0.0
        %1412 = vmatpush1.msra.mxu0 0.0
        %1413 = vmatprep.subr.mxu0 0.0
        %1414 = vmatpush1.msra.mxu0 0.0
        %1415 = vmatprep.subr.mxu0 0.0
        %1416 = vmatpush1.msra.mxu0 0.0
        %1417 = vmatprep.subr.mxu0 0.0
        %1418 = vmatpush1.msra.mxu0 0.0
        %1419 = vmatprep.subr.mxu0 0.0
        %1420 = vmatpush1.msra.mxu0 0.0
        %1421 = vmatprep.subr.mxu0 0.0
        %1422 = vmatpush1.msra.mxu0 0.0
        %1423 = vmatprep.subr.mxu0 0.0
        %1424 = vmatpush1.msra.mxu0 0.0
        %1425 = vmatprep.subr.mxu0 0.0
        %1426 = vmatpush1.msra.mxu0 0.0
        %1427 = vmatprep.subr.mxu0 0.0
        %1428 = vmatpush1.msra.mxu0 0.0
        %1429 = vmatprep.subr.mxu0 0.0
        %1430 = vmatpush1.msra.mxu0 0.0
        %1431 = vmatprep.subr.mxu0 0.0
        %1432 = vmatpush1.msra.mxu0 0.0
        %1433 = vmatprep.subr.mxu0 0.0
        %1434 = vmatpush1.msra.mxu0 0.0
        %1435 = vmatprep.subr.mxu0 0.0
        %1436 = vmatpush1.msra.mxu0 0.0
        %1437 = vmatprep.mubr.f32.mxu0 0.0
        %1438 = vmatmul.mubr.f32.gmra.mrb[0].mxu0 %v469
        %v1439 = vpop.f32.mrb[0].mxu0
        %v1440 = vadd.f32 0.0, %v1439
        %v1441 = vpop.f32.mrb[0].mxu0
        %1442 = vmatprep.mubr.f32.mxu0 0.0
        %1443 = vmatmul.mubr.f32.gmra.mrb[0].mxu0 %v471
        %v1444 = vpop.f32.mrb[0].mxu0
        %v1445 = vadd.f32 0.0, %v1444
        %v1446 = vpop.f32.mrb[0].mxu0
        %1447 = vmatprep.mubr.f32.mxu0 0.0
        %1448 = vmatmul.mubr.f32.gmra.mrb[0].mxu0 %v473
        %v1449 = vpop.f32.mrb[0].mxu0
        %v1450 = vadd.f32 0.0, %v1449
        %v1451 = vpop.f32.mrb[0].mxu0
        %1452 = vmatprep.mubr.f32.mxu0 0.0
        %1453 = vmatmul.mubr.f32.gmra.mrb[0].mxu0 %v475
        %v1454 = vpop.f32.mrb[0].mxu0
        %v1455 = vadd.f32 0.0, %v1454
        %v1456 = vpop.f32.mrb[0].mxu0
        %1457 = vmatprep.mubr.f32.mxu0 0.0
        %1458 = vmatmul.mubr.f32.gmra.mrb[0].mxu0 %v477
        %v1459 = vpop.f32.mrb[0].mxu0
        %v1460 = vadd.f32 0.0, %v1459
        %v1461 = vpop.f32.mrb[0].mxu0
        %1462 = vmatprep.mubr.f32.mxu0 0.0
        %1463 = vmatmul.mubr.f32.gmra.mrb[0].mxu0 %v479
        %v1464 = vpop.f32.mrb[0].mxu0
        %v1465 = vadd.f32 0.0, %v1464
        %v1466 = vpop.f32.mrb[0].mxu0
        %1467 = vmatprep.mubr.f32.mxu0 0.0
        %1468 = vmatmul.mubr.f32.gmra.mrb[0].mxu0 %v1000
        %v1469 = vpop.f32.mrb[0].mxu0
        %v1470 = vadd.f32 0.0, %v1469
        %v1471 = vpop.f32.mrb[0].mxu0
        %1472 = vmatprep.mubr.f32.mxu0 0.0
        %1473 = vmatmul.mubr.f32.gmra.mrb[0].mxu0 %v1368
        %v1474 = vpop.f32.mrb[0].mxu0
        %v1475 = vadd.f32 0.0, %v1474
        %v1476 = vpop.f32.mrb[0].mxu0
        %1477 = vdwg.mxu0
        %v1478 = vadd.f32 %v1354, %v1440
        %v1479 = vadd.f32 %v1355, %v1445
        %v1480 = vadd.f32 %v1356, %v1450
        %v1481 = vadd.f32 %v1357, %v1455
        %v1482 = vadd.f32 %v1358, %v1460
        %v1483 = vadd.f32 %v1359, %v1465
        %v1484 = vadd.f32 %v1360, %v1470
        %v1485 = vadd.f32 %v1361, %v1475
        %v1486 = vrot.slane %v378, 2
        %v1487 = vrot.slane %v379, 2
        %v1488 = vsel %vm714, %v1486, %v1487
        %s1489 = scalar_lea.vmem %s3, 32
        %v1490 = vld [vmem:[%s1489] sm:$0xf]
        %v1491 = vsel %vm464, %v1488, 0
        %v1494 = vsel %vm481, %v1490, 0
        %1496 = vmatprep.subr.mxu0 0.0
        %1497 = vmatpush1.msra.mxu0 %v1494
        %1498 = vmatprep.subr.mxu0 0.0
        %1499 = vmatpush1.msra.mxu0 0.0
        %1500 = vmatprep.subr.mxu0 0.0
        %1501 = vmatpush1.msra.mxu0 0.0
        %1502 = vmatprep.subr.mxu0 0.0
        %1503 = vmatpush1.msra.mxu0 0.0
        %1504 = vmatprep.subr.mxu0 0.0
        %1505 = vmatpush1.msra.mxu0 0.0
        %1506 = vmatprep.subr.mxu0 0.0
        %1507 = vmatpush1.msra.mxu0 0.0
        %1508 = vmatprep.subr.mxu0 0.0
        %1509 = vmatpush1.msra.mxu0 0.0
        %1510 = vmatprep.subr.mxu0 0.0
        %1511 = vmatpush1.msra.mxu0 0.0
        %1512 = vmatprep.subr.mxu0 0.0
        %1513 = vmatpush1.msra.mxu0 0.0
        %1514 = vmatprep.subr.mxu0 0.0
        %1515 = vmatpush1.msra.mxu0 0.0
        %1516 = vmatprep.subr.mxu0 0.0
        %1517 = vmatpush1.msra.mxu0 0.0
        %1518 = vmatprep.subr.mxu0 0.0
        %1519 = vmatpush1.msra.mxu0 0.0
        %1520 = vmatprep.subr.mxu0 0.0
        %1521 = vmatpush1.msra.mxu0 0.0
        %1522 = vmatprep.subr.mxu0 0.0
        %1523 = vmatpush1.msra.mxu0 0.0
        %1524 = vmatprep.subr.mxu0 0.0
        %1525 = vmatpush1.msra.mxu0 0.0
        %1526 = vmatprep.subr.mxu0 0.0
        %1527 = vmatpush1.msra.mxu0 0.0
        %1528 = vmatprep.subr.mxu0 0.0
        %1529 = vmatpush1.msra.mxu0 0.0
        %1530 = vmatprep.subr.mxu0 0.0
        %1531 = vmatpush1.msra.mxu0 0.0
        %1532 = vmatprep.subr.mxu0 0.0
        %1533 = vmatpush1.msra.mxu0 0.0
        %1534 = vmatprep.subr.mxu0 0.0
        %1535 = vmatpush1.msra.mxu0 0.0
        %1536 = vmatprep.subr.mxu0 0.0
        %1537 = vmatpush1.msra.mxu0 0.0
        %1538 = vmatprep.subr.mxu0 0.0
        %1539 = vmatpush1.msra.mxu0 0.0
        %1540 = vmatprep.subr.mxu0 0.0
        %1541 = vmatpush1.msra.mxu0 0.0
        %1542 = vmatprep.subr.mxu0 0.0
        %1543 = vmatpush1.msra.mxu0 0.0
        %1544 = vmatprep.subr.mxu0 0.0
        %1545 = vmatpush1.msra.mxu0 0.0
        %1546 = vmatprep.subr.mxu0 0.0
        %1547 = vmatpush1.msra.mxu0 0.0
        %1548 = vmatprep.subr.mxu0 0.0
        %1549 = vmatpush1.msra.mxu0 0.0
        %1550 = vmatprep.subr.mxu0 0.0
        %1551 = vmatpush1.msra.mxu0 0.0
        %1552 = vmatprep.subr.mxu0 0.0
        %1553 = vmatpush1.msra.mxu0 0.0
        %1554 = vmatprep.subr.mxu0 0.0
        %1555 = vmatpush1.msra.mxu0 0.0
        %1556 = vmatprep.subr.mxu0 0.0
        %1557 = vmatpush1.msra.mxu0 0.0
        %1558 = vmatprep.subr.mxu0 0.0
        %1559 = vmatpush1.msra.mxu0 0.0
        %1560 = vmatprep.mubr.f32.mxu0 0.0
        %1561 = vmatmul.mubr.f32.gmra.mrb[0].mxu0 %v745
        %v1562 = vpop.f32.mrb[0].mxu0
        %v1563 = vadd.f32 0.0, %v1562
        %v1564 = vpop.f32.mrb[0].mxu0
        %1565 = vmatprep.mubr.f32.mxu0 0.0
        %1566 = vmatmul.mubr.f32.gmra.mrb[0].mxu0 %v747
        %v1567 = vpop.f32.mrb[0].mxu0
        %v1568 = vadd.f32 0.0, %v1567
        %v1569 = vpop.f32.mrb[0].mxu0
        %1570 = vmatprep.mubr.f32.mxu0 0.0
        %1571 = vmatmul.mubr.f32.gmra.mrb[0].mxu0 %v749
        %v1572 = vpop.f32.mrb[0].mxu0
        %v1573 = vadd.f32 0.0, %v1572
        %v1574 = vpop.f32.mrb[0].mxu0
        %1575 = vmatprep.mubr.f32.mxu0 0.0
        %1576 = vmatmul.mubr.f32.gmra.mrb[0].mxu0 %v751
        %v1577 = vpop.f32.mrb[0].mxu0
        %v1578 = vadd.f32 0.0, %v1577
        %v1579 = vpop.f32.mrb[0].mxu0
        %1580 = vmatprep.mubr.f32.mxu0 0.0
        %1581 = vmatmul.mubr.f32.gmra.mrb[0].mxu0 %v753
        %v1582 = vpop.f32.mrb[0].mxu0
        %v1583 = vadd.f32 0.0, %v1582
        %v1584 = vpop.f32.mrb[0].mxu0
        %1585 = vmatprep.mubr.f32.mxu0 0.0
        %1586 = vmatmul.mubr.f32.gmra.mrb[0].mxu0 %v755
        %v1587 = vpop.f32.mrb[0].mxu0
        %v1588 = vadd.f32 0.0, %v1587
        %v1589 = vpop.f32.mrb[0].mxu0
        %1590 = vmatprep.mubr.f32.mxu0 0.0
        %1591 = vmatmul.mubr.f32.gmra.mrb[0].mxu0 %v1123
        %v1592 = vpop.f32.mrb[0].mxu0
        %v1593 = vadd.f32 0.0, %v1592
        %v1594 = vpop.f32.mrb[0].mxu0
        %1595 = vmatprep.mubr.f32.mxu0 0.0
        %1596 = vmatmul.mubr.f32.gmra.mrb[0].mxu0 %v1491
        %v1597 = vpop.f32.mrb[0].mxu0
        %v1598 = vadd.f32 0.0, %v1597
        %v1599 = vpop.f32.mrb[0].mxu0
        %1600 = vdwg.mxu0
        %v1601 = vadd.f32 %v1478, %v1563
        %v1602 = vadd.f32 %v1479, %v1568
        %v1603 = vadd.f32 %v1480, %v1573
        %v1604 = vadd.f32 %v1481, %v1578
        %v1605 = vadd.f32 %v1482, %v1583
        %v1606 = vadd.f32 %v1483, %v1588
        %v1607 = vadd.f32 %v1484, %v1593
        %v1608 = vadd.f32 %v1485, %v1598
        %s1609 = scalar_lea.vmem %s3, 36
        %v1610 = vld [vmem:[%s1609] sm:$0xf]
        %v1612 = vsel %vm464, %v380, 0
        %v1615 = vsel %vm464, %v382, 0
        %v1618 = vsel %vm464, %v384, 0
        %v1621 = vsel %vm464, %v386, 0
        %v1624 = vsel %vm464, %v388, 0
        %v1627 = vsel %vm464, %v390, 0
        %v1630 = vsel %vm464, %v392, 0
        %v1633 = vsel %vm464, %v394, 0
        %v1636 = vsel %vm481, %v1610, 0
        %1638 = vmatprep.subr.mxu0 0.0
        %1639 = vmatpush1.msra.mxu0 %v1636
        %1640 = vmatprep.subr.mxu0 0.0
        %1641 = vmatpush1.msra.mxu0 0.0
        %1642 = vmatprep.subr.mxu0 0.0
        %1643 = vmatpush1.msra.mxu0 0.0
        %1644 = vmatprep.subr.mxu0 0.0
        %1645 = vmatpush1.msra.mxu0 0.0
        %1646 = vmatprep.subr.mxu0 0.0
        %1647 = vmatpush1.msra.mxu0 0.0
        %1648 = vmatprep.subr.mxu0 0.0
        %1649 = vmatpush1.msra.mxu0 0.0
        %1650 = vmatprep.subr.mxu0 0.0
        %1651 = vmatpush1.msra.mxu0 0.0
        %1652 = vmatprep.subr.mxu0 0.0
        %1653 = vmatpush1.msra.mxu0 0.0
        %1654 = vmatprep.subr.mxu0 0.0
        %1655 = vmatpush1.msra.mxu0 0.0
        %1656 = vmatprep.subr.mxu0 0.0
        %1657 = vmatpush1.msra.mxu0 0.0
        %1658 = vmatprep.subr.mxu0 0.0
        %1659 = vmatpush1.msra.mxu0 0.0
        %1660 = vmatprep.subr.mxu0 0.0
        %1661 = vmatpush1.msra.mxu0 0.0
        %1662 = vmatprep.subr.mxu0 0.0
        %1663 = vmatpush1.msra.mxu0 0.0
        %1664 = vmatprep.subr.mxu0 0.0
        %1665 = vmatpush1.msra.mxu0 0.0
        %1666 = vmatprep.subr.mxu0 0.0
        %1667 = vmatpush1.msra.mxu0 0.0
        %1668 = vmatprep.subr.mxu0 0.0
        %1669 = vmatpush1.msra.mxu0 0.0
        %1670 = vmatprep.subr.mxu0 0.0
        %1671 = vmatpush1.msra.mxu0 0.0
        %1672 = vmatprep.subr.mxu0 0.0
        %1673 = vmatpush1.msra.mxu0 0.0
        %1674 = vmatprep.subr.mxu0 0.0
        %1675 = vmatpush1.msra.mxu0 0.0
        %1676 = vmatprep.subr.mxu0 0.0
        %1677 = vmatpush1.msra.mxu0 0.0
        %1678 = vmatprep.subr.mxu0 0.0
        %1679 = vmatpush1.msra.mxu0 0.0
        %1680 = vmatprep.subr.mxu0 0.0
        %1681 = vmatpush1.msra.mxu0 0.0
        %1682 = vmatprep.subr.mxu0 0.0
        %1683 = vmatpush1.msra.mxu0 0.0
        %1684 = vmatprep.subr.mxu0 0.0
        %1685 = vmatpush1.msra.mxu0 0.0
        %1686 = vmatprep.subr.mxu0 0.0
        %1687 = vmatpush1.msra.mxu0 0.0
        %1688 = vmatprep.subr.mxu0 0.0
        %1689 = vmatpush1.msra.mxu0 0.0
        %1690 = vmatprep.subr.mxu0 0.0
        %1691 = vmatpush1.msra.mxu0 0.0
        %1692 = vmatprep.subr.mxu0 0.0
        %1693 = vmatpush1.msra.mxu0 0.0
        %1694 = vmatprep.subr.mxu0 0.0
        %1695 = vmatpush1.msra.mxu0 0.0
        %1696 = vmatprep.subr.mxu0 0.0
        %1697 = vmatpush1.msra.mxu0 0.0
        %1698 = vmatprep.subr.mxu0 0.0
        %1699 = vmatpush1.msra.mxu0 0.0
        %1700 = vmatprep.subr.mxu0 0.0
        %1701 = vmatpush1.msra.mxu0 0.0
        %1702 = vmatprep.mubr.f32.mxu0 0.0
        %1703 = vmatmul.mubr.f32.gmra.mrb[0].mxu0 %v1612
        %v1704 = vpop.f32.mrb[0].mxu0
        %v1705 = vadd.f32 0.0, %v1704
        %v1706 = vpop.f32.mrb[0].mxu0
        %1707 = vmatprep.mubr.f32.mxu0 0.0
        %1708 = vmatmul.mubr.f32.gmra.mrb[0].mxu0 %v1615
        %v1709 = vpop.f32.mrb[0].mxu0
        %v1710 = vadd.f32 0.0, %v1709
        %v1711 = vpop.f32.mrb[0].mxu0
        %1712 = vmatprep.mubr.f32.mxu0 0.0
        %1713 = vmatmul.mubr.f32.gmra.mrb[0].mxu0 %v1618
        %v1714 = vpop.f32.mrb[0].mxu0
        %v1715 = vadd.f32 0.0, %v1714
        %v1716 = vpop.f32.mrb[0].mxu0
        %1717 = vmatprep.mubr.f32.mxu0 0.0
        %1718 = vmatmul.mubr.f32.gmra.mrb[0].mxu0 %v1621
        %v1719 = vpop.f32.mrb[0].mxu0
        %v1720 = vadd.f32 0.0, %v1719
        %v1721 = vpop.f32.mrb[0].mxu0
        %1722 = vmatprep.mubr.f32.mxu0 0.0
        %1723 = vmatmul.mubr.f32.gmra.mrb[0].mxu0 %v1624
        %v1724 = vpop.f32.mrb[0].mxu0
        %v1725 = vadd.f32 0.0, %v1724
        %v1726 = vpop.f32.mrb[0].mxu0
        %1727 = vmatprep.mubr.f32.mxu0 0.0
        %1728 = vmatmul.mubr.f32.gmra.mrb[0].mxu0 %v1627
        %v1729 = vpop.f32.mrb[0].mxu0
        %v1730 = vadd.f32 0.0, %v1729
        %v1731 = vpop.f32.mrb[0].mxu0
        %1732 = vmatprep.mubr.f32.mxu0 0.0
        %1733 = vmatmul.mubr.f32.gmra.mrb[0].mxu0 %v1630
        %v1734 = vpop.f32.mrb[0].mxu0
        %v1735 = vadd.f32 0.0, %v1734
        %v1736 = vpop.f32.mrb[0].mxu0
        %1737 = vmatprep.mubr.f32.mxu0 0.0
        %1738 = vmatmul.mubr.f32.gmra.mrb[0].mxu0 %v1633
        %v1739 = vpop.f32.mrb[0].mxu0
        %v1740 = vadd.f32 0.0, %v1739
        %v1741 = vpop.f32.mrb[0].mxu0
        %1742 = vdwg.mxu0
        %v1743 = vadd.f32 %v1601, %v1705
        %v1744 = vadd.f32 %v1602, %v1710
        %v1745 = vadd.f32 %v1603, %v1715
        %v1746 = vadd.f32 %v1604, %v1720
        %v1747 = vadd.f32 %v1605, %v1725
        %v1748 = vadd.f32 %v1606, %v1730
        %v1749 = vadd.f32 %v1607, %v1735
        %v1750 = vadd.f32 %v1608, %v1740
        %v1759 = vrot.slane %v380, 1
        %v1760 = vrot.slane %v381, 1
        %v1761 = vsel %vm437, %v1759, %v1760
        %v1762 = vrot.slane %v382, 1
        %v1763 = vrot.slane %v383, 1
        %v1764 = vsel %vm437, %v1762, %v1763
        %v1765 = vrot.slane %v384, 1
        %v1766 = vrot.slane %v385, 1
        %v1767 = vsel %vm437, %v1765, %v1766
        %v1768 = vrot.slane %v386, 1
        %v1769 = vrot.slane %v387, 1
        %v1770 = vsel %vm437, %v1768, %v1769
        %v1771 = vrot.slane %v388, 1
        %v1772 = vrot.slane %v389, 1
        %v1773 = vsel %vm437, %v1771, %v1772
        %v1774 = vrot.slane %v390, 1
        %v1775 = vrot.slane %v391, 1
        %v1776 = vsel %vm437, %v1774, %v1775
        %v1777 = vrot.slane %v392, 1
        %v1778 = vrot.slane %v393, 1
        %v1779 = vsel %vm437, %v1777, %v1778
        %v1780 = vrot.slane %v394, 1
        %v1781 = vrot.slane %v395, 1
        %v1782 = vsel %vm437, %v1780, %v1781
        %s1783 = scalar_lea.vmem %s3, 40
        %v1784 = vld [vmem:[%s1783] sm:$0xf]
        %v1785 = vsel %vm464, %v1761, 0
        %v1787 = vsel %vm464, %v1764, 0
        %v1789 = vsel %vm464, %v1767, 0
        %v1791 = vsel %vm464, %v1770, 0
        %v1793 = vsel %vm464, %v1773, 0
        %v1795 = vsel %vm464, %v1776, 0
        %v1797 = vsel %vm464, %v1779, 0
        %v1799 = vsel %vm464, %v1782, 0
        %v1802 = vsel %vm481, %v1784, 0
        %1804 = vmatprep.subr.mxu0 0.0
        %1805 = vmatpush1.msra.mxu0 %v1802
        %1806 = vmatprep.subr.mxu0 0.0
        %1807 = vmatpush1.msra.mxu0 0.0
        %1808 = vmatprep.subr.mxu0 0.0
        %1809 = vmatpush1.msra.mxu0 0.0
        %1810 = vmatprep.subr.mxu0 0.0
        %1811 = vmatpush1.msra.mxu0 0.0
        %1812 = vmatprep.subr.mxu0 0.0
        %1813 = vmatpush1.msra.mxu0 0.0
        %1814 = vmatprep.subr.mxu0 0.0
        %1815 = vmatpush1.msra.mxu0 0.0
        %1816 = vmatprep.subr.mxu0 0.0
        %1817 = vmatpush1.msra.mxu0 0.0
        %1818 = vmatprep.subr.mxu0 0.0
        %1819 = vmatpush1.msra.mxu0 0.0
        %1820 = vmatprep.subr.mxu0 0.0
        %1821 = vmatpush1.msra.mxu0 0.0
        %1822 = vmatprep.subr.mxu0 0.0
        %1823 = vmatpush1.msra.mxu0 0.0
        %1824 = vmatprep.subr.mxu0 0.0
        %1825 = vmatpush1.msra.mxu0 0.0
        %1826 = vmatprep.subr.mxu0 0.0
        %1827 = vmatpush1.msra.mxu0 0.0
        %1828 = vmatprep.subr.mxu0 0.0
        %1829 = vmatpush1.msra.mxu0 0.0
        %1830 = vmatprep.subr.mxu0 0.0
        %1831 = vmatpush1.msra.mxu0 0.0
        %1832 = vmatprep.subr.mxu0 0.0
        %1833 = vmatpush1.msra.mxu0 0.0
        %1834 = vmatprep.subr.mxu0 0.0
        %1835 = vmatpush1.msra.mxu0 0.0
        %1836 = vmatprep.subr.mxu0 0.0
        %1837 = vmatpush1.msra.mxu0 0.0
        %1838 = vmatprep.subr.mxu0 0.0
        %1839 = vmatpush1.msra.mxu0 0.0
        %1840 = vmatprep.subr.mxu0 0.0
        %1841 = vmatpush1.msra.mxu0 0.0
        %1842 = vmatprep.subr.mxu0 0.0
        %1843 = vmatpush1.msra.mxu0 0.0
        %1844 = vmatprep.subr.mxu0 0.0
        %1845 = vmatpush1.msra.mxu0 0.0
        %1846 = vmatprep.subr.mxu0 0.0
        %1847 = vmatpush1.msra.mxu0 0.0
        %1848 = vmatprep.subr.mxu0 0.0
        %1849 = vmatpush1.msra.mxu0 0.0
        %1850 = vmatprep.subr.mxu0 0.0
        %1851 = vmatpush1.msra.mxu0 0.0
        %1852 = vmatprep.subr.mxu0 0.0
        %1853 = vmatpush1.msra.mxu0 0.0
        %1854 = vmatprep.subr.mxu0 0.0
        %1855 = vmatpush1.msra.mxu0 0.0
        %1856 = vmatprep.subr.mxu0 0.0
        %1857 = vmatpush1.msra.mxu0 0.0
        %1858 = vmatprep.subr.mxu0 0.0
        %1859 = vmatpush1.msra.mxu0 0.0
        %1860 = vmatprep.subr.mxu0 0.0
        %1861 = vmatpush1.msra.mxu0 0.0
        %1862 = vmatprep.subr.mxu0 0.0
        %1863 = vmatpush1.msra.mxu0 0.0
        %1864 = vmatprep.subr.mxu0 0.0
        %1865 = vmatpush1.msra.mxu0 0.0
        %1866 = vmatprep.subr.mxu0 0.0
        %1867 = vmatpush1.msra.mxu0 0.0
        %1868 = vmatprep.mubr.f32.mxu0 0.0
        %1869 = vmatmul.mubr.f32.gmra.mrb[0].mxu0 %v1785
        %v1870 = vpop.f32.mrb[0].mxu0
        %v1871 = vadd.f32 0.0, %v1870
        %v1872 = vpop.f32.mrb[0].mxu0
        %1873 = vmatprep.mubr.f32.mxu0 0.0
        %1874 = vmatmul.mubr.f32.gmra.mrb[0].mxu0 %v1787
        %v1875 = vpop.f32.mrb[0].mxu0
        %v1876 = vadd.f32 0.0, %v1875
        %v1877 = vpop.f32.mrb[0].mxu0
        %1878 = vmatprep.mubr.f32.mxu0 0.0
        %1879 = vmatmul.mubr.f32.gmra.mrb[0].mxu0 %v1789
        %v1880 = vpop.f32.mrb[0].mxu0
        %v1881 = vadd.f32 0.0, %v1880
        %v1882 = vpop.f32.mrb[0].mxu0
        %1883 = vmatprep.mubr.f32.mxu0 0.0
        %1884 = vmatmul.mubr.f32.gmra.mrb[0].mxu0 %v1791
        %v1885 = vpop.f32.mrb[0].mxu0
        %v1886 = vadd.f32 0.0, %v1885
        %v1887 = vpop.f32.mrb[0].mxu0
        %1888 = vmatprep.mubr.f32.mxu0 0.0
        %1889 = vmatmul.mubr.f32.gmra.mrb[0].mxu0 %v1793
        %v1890 = vpop.f32.mrb[0].mxu0
        %v1891 = vadd.f32 0.0, %v1890
        %v1892 = vpop.f32.mrb[0].mxu0
        %1893 = vmatprep.mubr.f32.mxu0 0.0
        %1894 = vmatmul.mubr.f32.gmra.mrb[0].mxu0 %v1795
        %v1895 = vpop.f32.mrb[0].mxu0
        %v1896 = vadd.f32 0.0, %v1895
        %v1897 = vpop.f32.mrb[0].mxu0
        %1898 = vmatprep.mubr.f32.mxu0 0.0
        %1899 = vmatmul.mubr.f32.gmra.mrb[0].mxu0 %v1797
        %v1900 = vpop.f32.mrb[0].mxu0
        %v1901 = vadd.f32 0.0, %v1900
        %v1902 = vpop.f32.mrb[0].mxu0
        %1903 = vmatprep.mubr.f32.mxu0 0.0
        %1904 = vmatmul.mubr.f32.gmra.mrb[0].mxu0 %v1799
        %v1905 = vpop.f32.mrb[0].mxu0
        %v1906 = vadd.f32 0.0, %v1905
        %v1907 = vpop.f32.mrb[0].mxu0
        %1908 = vdwg.mxu0
        %v1909 = vadd.f32 %v1743, %v1871
        %v1910 = vadd.f32 %v1744, %v1876
        %v1911 = vadd.f32 %v1745, %v1881
        %v1912 = vadd.f32 %v1746, %v1886
        %v1913 = vadd.f32 %v1747, %v1891
        %v1914 = vadd.f32 %v1748, %v1896
        %v1915 = vadd.f32 %v1749, %v1901
        %v1916 = vadd.f32 %v1750, %v1906
        %v1917 = vrot.slane %v380, 2
        %v1918 = vrot.slane %v381, 2
        %v1919 = vsel %vm714, %v1917, %v1918
        %v1920 = vrot.slane %v382, 2
        %v1921 = vrot.slane %v383, 2
        %v1922 = vsel %vm714, %v1920, %v1921
        %v1923 = vrot.slane %v384, 2
        %v1924 = vrot.slane %v385, 2
        %v1925 = vsel %vm714, %v1923, %v1924
        %v1926 = vrot.slane %v386, 2
        %v1927 = vrot.slane %v387, 2
        %v1928 = vsel %vm714, %v1926, %v1927
        %v1929 = vrot.slane %v388, 2
        %v1930 = vrot.slane %v389, 2
        %v1931 = vsel %vm714, %v1929, %v1930
        %v1932 = vrot.slane %v390, 2
        %v1933 = vrot.slane %v391, 2
        %v1934 = vsel %vm714, %v1932, %v1933
        %v1935 = vrot.slane %v392, 2
        %v1936 = vrot.slane %v393, 2
        %v1937 = vsel %vm714, %v1935, %v1936
        %v1938 = vrot.slane %v394, 2
        %v1939 = vrot.slane %v395, 2
        %v1940 = vsel %vm714, %v1938, %v1939
        %s1941 = scalar_lea.vmem %s3, 44
        %v1942 = vld [vmem:[%s1941] sm:$0xf]
        %v1943 = vsel %vm464, %v1919, 0
        %v1945 = vsel %vm464, %v1922, 0
        %v1947 = vsel %vm464, %v1925, 0
        %v1949 = vsel %vm464, %v1928, 0
        %v1951 = vsel %vm464, %v1931, 0
        %v1953 = vsel %vm464, %v1934, 0
        %v1955 = vsel %vm464, %v1937, 0
        %v1957 = vsel %vm464, %v1940, 0
        %v1960 = vsel %vm481, %v1942, 0
        %1962 = vmatprep.subr.mxu0 0.0
        %1963 = vmatpush1.msra.mxu0 %v1960
        %1964 = vmatprep.subr.mxu0 0.0
        %1965 = vmatpush1.msra.mxu0 0.0
        %1966 = vmatprep.subr.mxu0 0.0
        %1967 = vmatpush1.msra.mxu0 0.0
        %1968 = vmatprep.subr.mxu0 0.0
        %1969 = vmatpush1.msra.mxu0 0.0
        %1970 = vmatprep.subr.mxu0 0.0
        %1971 = vmatpush1.msra.mxu0 0.0
        %1972 = vmatprep.subr.mxu0 0.0
        %1973 = vmatpush1.msra.mxu0 0.0
        %1974 = vmatprep.subr.mxu0 0.0
        %1975 = vmatpush1.msra.mxu0 0.0
        %1976 = vmatprep.subr.mxu0 0.0
        %1977 = vmatpush1.msra.mxu0 0.0
        %1978 = vmatprep.subr.mxu0 0.0
        %1979 = vmatpush1.msra.mxu0 0.0
        %1980 = vmatprep.subr.mxu0 0.0
        %1981 = vmatpush1.msra.mxu0 0.0
        %1982 = vmatprep.subr.mxu0 0.0
        %1983 = vmatpush1.msra.mxu0 0.0
        %1984 = vmatprep.subr.mxu0 0.0
        %1985 = vmatpush1.msra.mxu0 0.0
        %1986 = vmatprep.subr.mxu0 0.0
        %1987 = vmatpush1.msra.mxu0 0.0
        %1988 = vmatprep.subr.mxu0 0.0
        %1989 = vmatpush1.msra.mxu0 0.0
        %1990 = vmatprep.subr.mxu0 0.0
        %1991 = vmatpush1.msra.mxu0 0.0
        %1992 = vmatprep.subr.mxu0 0.0
        %1993 = vmatpush1.msra.mxu0 0.0
        %1994 = vmatprep.subr.mxu0 0.0
        %1995 = vmatpush1.msra.mxu0 0.0
        %1996 = vmatprep.subr.mxu0 0.0
        %1997 = vmatpush1.msra.mxu0 0.0
        %1998 = vmatprep.subr.mxu0 0.0
        %1999 = vmatpush1.msra.mxu0 0.0
        %2000 = vmatprep.subr.mxu0 0.0
        %2001 = vmatpush1.msra.mxu0 0.0
        %2002 = vmatprep.subr.mxu0 0.0
        %2003 = vmatpush1.msra.mxu0 0.0
        %2004 = vmatprep.subr.mxu0 0.0
        %2005 = vmatpush1.msra.mxu0 0.0
        %2006 = vmatprep.subr.mxu0 0.0
        %2007 = vmatpush1.msra.mxu0 0.0
        %2008 = vmatprep.subr.mxu0 0.0
        %2009 = vmatpush1.msra.mxu0 0.0
        %2010 = vmatprep.subr.mxu0 0.0
        %2011 = vmatpush1.msra.mxu0 0.0
        %2012 = vmatprep.subr.mxu0 0.0
        %2013 = vmatpush1.msra.mxu0 0.0
        %2014 = vmatprep.subr.mxu0 0.0
        %2015 = vmatpush1.msra.mxu0 0.0
        %2016 = vmatprep.subr.mxu0 0.0
        %2017 = vmatpush1.msra.mxu0 0.0
        %2018 = vmatprep.subr.mxu0 0.0
        %2019 = vmatpush1.msra.mxu0 0.0
        %2020 = vmatprep.subr.mxu0 0.0
        %2021 = vmatpush1.msra.mxu0 0.0
        %2022 = vmatprep.subr.mxu0 0.0
        %2023 = vmatpush1.msra.mxu0 0.0
        %2024 = vmatprep.subr.mxu0 0.0
        %2025 = vmatpush1.msra.mxu0 0.0
        %2026 = vmatprep.mubr.f32.mxu0 0.0
        %2027 = vmatmul.mubr.f32.gmra.mrb[0].mxu0 %v1943
        %v2028 = vpop.f32.mrb[0].mxu0
        %v2029 = vadd.f32 0.0, %v2028
        %v2030 = vpop.f32.mrb[0].mxu0
        %2031 = vmatprep.mubr.f32.mxu0 0.0
        %2032 = vmatmul.mubr.f32.gmra.mrb[0].mxu0 %v1945
        %v2033 = vpop.f32.mrb[0].mxu0
        %v2034 = vadd.f32 0.0, %v2033
        %v2035 = vpop.f32.mrb[0].mxu0
        %2036 = vmatprep.mubr.f32.mxu0 0.0
        %2037 = vmatmul.mubr.f32.gmra.mrb[0].mxu0 %v1947
        %v2038 = vpop.f32.mrb[0].mxu0
        %v2039 = vadd.f32 0.0, %v2038
        %v2040 = vpop.f32.mrb[0].mxu0
        %2041 = vmatprep.mubr.f32.mxu0 0.0
        %2042 = vmatmul.mubr.f32.gmra.mrb[0].mxu0 %v1949
        %v2043 = vpop.f32.mrb[0].mxu0
        %v2044 = vadd.f32 0.0, %v2043
        %v2045 = vpop.f32.mrb[0].mxu0
        %2046 = vmatprep.mubr.f32.mxu0 0.0
        %2047 = vmatmul.mubr.f32.gmra.mrb[0].mxu0 %v1951
        %v2048 = vpop.f32.mrb[0].mxu0
        %v2049 = vadd.f32 0.0, %v2048
        %v2050 = vpop.f32.mrb[0].mxu0
        %2051 = vmatprep.mubr.f32.mxu0 0.0
        %2052 = vmatmul.mubr.f32.gmra.mrb[0].mxu0 %v1953
        %v2053 = vpop.f32.mrb[0].mxu0
        %v2054 = vadd.f32 0.0, %v2053
        %v2055 = vpop.f32.mrb[0].mxu0
        %2056 = vmatprep.mubr.f32.mxu0 0.0
        %2057 = vmatmul.mubr.f32.gmra.mrb[0].mxu0 %v1955
        %v2058 = vpop.f32.mrb[0].mxu0
        %v2059 = vadd.f32 0.0, %v2058
        %v2060 = vpop.f32.mrb[0].mxu0
        %2061 = vmatprep.mubr.f32.mxu0 0.0
        %2062 = vmatmul.mubr.f32.gmra.mrb[0].mxu0 %v1957
        %v2063 = vpop.f32.mrb[0].mxu0
        %v2064 = vadd.f32 0.0, %v2063
        %v2065 = vpop.f32.mrb[0].mxu0
        %2066 = vdwg.mxu0
        %v2067 = vadd.f32 %v1909, %v2029
        %v2068 = vadd.f32 %v1910, %v2034
        %v2069 = vadd.f32 %v1911, %v2039
        %v2070 = vadd.f32 %v1912, %v2044
        %v2071 = vadd.f32 %v1913, %v2049
        %v2072 = vadd.f32 %v1914, %v2054
        %v2073 = vadd.f32 %v1915, %v2059
        %v2074 = vadd.f32 %v1916, %v2064
        %s2075 = scalar_lea.vmem %s3, 48
        %v2076 = vld [vmem:[%s2075] sm:$0xf]
        %v2078 = vsel %vm464, %v396, 0
        %v2081 = vsel %vm481, %v2076, 0
        %2083 = vmatprep.subr.mxu0 0.0
        %2084 = vmatpush1.msra.mxu0 %v2081
        %2085 = vmatprep.subr.mxu0 0.0
        %2086 = vmatpush1.msra.mxu0 0.0
        %2087 = vmatprep.subr.mxu0 0.0
        %2088 = vmatpush1.msra.mxu0 0.0
        %2089 = vmatprep.subr.mxu0 0.0
        %2090 = vmatpush1.msra.mxu0 0.0
        %2091 = vmatprep.subr.mxu0 0.0
        %2092 = vmatpush1.msra.mxu0 0.0
        %2093 = vmatprep.subr.mxu0 0.0
        %2094 = vmatpush1.msra.mxu0 0.0
        %2095 = vmatprep.subr.mxu0 0.0
        %2096 = vmatpush1.msra.mxu0 0.0
        %2097 = vmatprep.subr.mxu0 0.0
        %2098 = vmatpush1.msra.mxu0 0.0
        %2099 = vmatprep.subr.mxu0 0.0
        %2100 = vmatpush1.msra.mxu0 0.0
        %2101 = vmatprep.subr.mxu0 0.0
        %2102 = vmatpush1.msra.mxu0 0.0
        %2103 = vmatprep.subr.mxu0 0.0
        %2104 = vmatpush1.msra.mxu0 0.0
        %2105 = vmatprep.subr.mxu0 0.0
        %2106 = vmatpush1.msra.mxu0 0.0
        %2107 = vmatprep.subr.mxu0 0.0
        %2108 = vmatpush1.msra.mxu0 0.0
        %2109 = vmatprep.subr.mxu0 0.0
        %2110 = vmatpush1.msra.mxu0 0.0
        %2111 = vmatprep.subr.mxu0 0.0
        %2112 = vmatpush1.msra.mxu0 0.0
        %2113 = vmatprep.subr.mxu0 0.0
        %2114 = vmatpush1.msra.mxu0 0.0
        %2115 = vmatprep.subr.mxu0 0.0
        %2116 = vmatpush1.msra.mxu0 0.0
        %2117 = vmatprep.subr.mxu0 0.0
        %2118 = vmatpush1.msra.mxu0 0.0
        %2119 = vmatprep.subr.mxu0 0.0
        %2120 = vmatpush1.msra.mxu0 0.0
        %2121 = vmatprep.subr.mxu0 0.0
        %2122 = vmatpush1.msra.mxu0 0.0
        %2123 = vmatprep.subr.mxu0 0.0
        %2124 = vmatpush1.msra.mxu0 0.0
        %2125 = vmatprep.subr.mxu0 0.0
        %2126 = vmatpush1.msra.mxu0 0.0
        %2127 = vmatprep.subr.mxu0 0.0
        %2128 = vmatpush1.msra.mxu0 0.0
        %2129 = vmatprep.subr.mxu0 0.0
        %2130 = vmatpush1.msra.mxu0 0.0
        %2131 = vmatprep.subr.mxu0 0.0
        %2132 = vmatpush1.msra.mxu0 0.0
        %2133 = vmatprep.subr.mxu0 0.0
        %2134 = vmatpush1.msra.mxu0 0.0
        %2135 = vmatprep.subr.mxu0 0.0
        %2136 = vmatpush1.msra.mxu0 0.0
        %2137 = vmatprep.subr.mxu0 0.0
        %2138 = vmatpush1.msra.mxu0 0.0
        %2139 = vmatprep.subr.mxu0 0.0
        %2140 = vmatpush1.msra.mxu0 0.0
        %2141 = vmatprep.subr.mxu0 0.0
        %2142 = vmatpush1.msra.mxu0 0.0
        %2143 = vmatprep.subr.mxu0 0.0
        %2144 = vmatpush1.msra.mxu0 0.0
        %2145 = vmatprep.subr.mxu0 0.0
        %2146 = vmatpush1.msra.mxu0 0.0
        %2147 = vmatprep.mubr.f32.mxu0 0.0
        %2148 = vmatmul.mubr.f32.gmra.mrb[0].mxu0 %v1615
        %v2149 = vpop.f32.mrb[0].mxu0
        %v2150 = vadd.f32 0.0, %v2149
        %v2151 = vpop.f32.mrb[0].mxu0
        %2152 = vmatprep.mubr.f32.mxu0 0.0
        %2153 = vmatmul.mubr.f32.gmra.mrb[0].mxu0 %v1618
        %v2154 = vpop.f32.mrb[0].mxu0
        %v2155 = vadd.f32 0.0, %v2154
        %v2156 = vpop.f32.mrb[0].mxu0
        %2157 = vmatprep.mubr.f32.mxu0 0.0
        %2158 = vmatmul.mubr.f32.gmra.mrb[0].mxu0 %v1621
        %v2159 = vpop.f32.mrb[0].mxu0
        %v2160 = vadd.f32 0.0, %v2159
        %v2161 = vpop.f32.mrb[0].mxu0
        %2162 = vmatprep.mubr.f32.mxu0 0.0
        %2163 = vmatmul.mubr.f32.gmra.mrb[0].mxu0 %v1624
        %v2164 = vpop.f32.mrb[0].mxu0
        %v2165 = vadd.f32 0.0, %v2164
        %v2166 = vpop.f32.mrb[0].mxu0
        %2167 = vmatprep.mubr.f32.mxu0 0.0
        %2168 = vmatmul.mubr.f32.gmra.mrb[0].mxu0 %v1627
        %v2169 = vpop.f32.mrb[0].mxu0
        %v2170 = vadd.f32 0.0, %v2169
        %v2171 = vpop.f32.mrb[0].mxu0
        %2172 = vmatprep.mubr.f32.mxu0 0.0
        %2173 = vmatmul.mubr.f32.gmra.mrb[0].mxu0 %v1630
        %v2174 = vpop.f32.mrb[0].mxu0
        %v2175 = vadd.f32 0.0, %v2174
        %v2176 = vpop.f32.mrb[0].mxu0
        %2177 = vmatprep.mubr.f32.mxu0 0.0
        %2178 = vmatmul.mubr.f32.gmra.mrb[0].mxu0 %v1633
        %v2179 = vpop.f32.mrb[0].mxu0
        %v2180 = vadd.f32 0.0, %v2179
        %v2181 = vpop.f32.mrb[0].mxu0
        %2182 = vmatprep.mubr.f32.mxu0 0.0
        %2183 = vmatmul.mubr.f32.gmra.mrb[0].mxu0 %v2078
        %v2184 = vpop.f32.mrb[0].mxu0
        %v2185 = vadd.f32 0.0, %v2184
        %v2186 = vpop.f32.mrb[0].mxu0
        %2187 = vdwg.mxu0
        %v2188 = vadd.f32 %v2067, %v2150
        %v2189 = vadd.f32 %v2068, %v2155
        %v2190 = vadd.f32 %v2069, %v2160
        %v2191 = vadd.f32 %v2070, %v2165
        %v2192 = vadd.f32 %v2071, %v2170
        %v2193 = vadd.f32 %v2072, %v2175
        %v2194 = vadd.f32 %v2073, %v2180
        %v2195 = vadd.f32 %v2074, %v2185
        %v2197 = vrot.slane %v396, 1
        %v2198 = vrot.slane %v397, 1
        %v2199 = vsel %vm437, %v2197, %v2198
        %s2200 = scalar_lea.vmem %s3, 52
        %v2201 = vld [vmem:[%s2200] sm:$0xf]
        %v2202 = vsel %vm464, %v2199, 0
        %v2205 = vsel %vm481, %v2201, 0
        %2207 = vmatprep.subr.mxu0 0.0
        %2208 = vmatpush1.msra.mxu0 %v2205
        %2209 = vmatprep.subr.mxu0 0.0
        %2210 = vmatpush1.msra.mxu0 0.0
        %2211 = vmatprep.subr.mxu0 0.0
        %2212 = vmatpush1.msra.mxu0 0.0
        %2213 = vmatprep.subr.mxu0 0.0
        %2214 = vmatpush1.msra.mxu0 0.0
        %2215 = vmatprep.subr.mxu0 0.0
        %2216 = vmatpush1.msra.mxu0 0.0
        %2217 = vmatprep.subr.mxu0 0.0
        %2218 = vmatpush1.msra.mxu0 0.0
        %2219 = vmatprep.subr.mxu0 0.0
        %2220 = vmatpush1.msra.mxu0 0.0
        %2221 = vmatprep.subr.mxu0 0.0
        %2222 = vmatpush1.msra.mxu0 0.0
        %2223 = vmatprep.subr.mxu0 0.0
        %2224 = vmatpush1.msra.mxu0 0.0
        %2225 = vmatprep.subr.mxu0 0.0
        %2226 = vmatpush1.msra.mxu0 0.0
        %2227 = vmatprep.subr.mxu0 0.0
        %2228 = vmatpush1.msra.mxu0 0.0
        %2229 = vmatprep.subr.mxu0 0.0
        %2230 = vmatpush1.msra.mxu0 0.0
        %2231 = vmatprep.subr.mxu0 0.0
        %2232 = vmatpush1.msra.mxu0 0.0
        %2233 = vmatprep.subr.mxu0 0.0
        %2234 = vmatpush1.msra.mxu0 0.0
        %2235 = vmatprep.subr.mxu0 0.0
        %2236 = vmatpush1.msra.mxu0 0.0
        %2237 = vmatprep.subr.mxu0 0.0
        %2238 = vmatpush1.msra.mxu0 0.0
        %2239 = vmatprep.subr.mxu0 0.0
        %2240 = vmatpush1.msra.mxu0 0.0
        %2241 = vmatprep.subr.mxu0 0.0
        %2242 = vmatpush1.msra.mxu0 0.0
        %2243 = vmatprep.subr.mxu0 0.0
        %2244 = vmatpush1.msra.mxu0 0.0
        %2245 = vmatprep.subr.mxu0 0.0
        %2246 = vmatpush1.msra.mxu0 0.0
        %2247 = vmatprep.subr.mxu0 0.0
        %2248 = vmatpush1.msra.mxu0 0.0
        %2249 = vmatprep.subr.mxu0 0.0
        %2250 = vmatpush1.msra.mxu0 0.0
        %2251 = vmatprep.subr.mxu0 0.0
        %2252 = vmatpush1.msra.mxu0 0.0
        %2253 = vmatprep.subr.mxu0 0.0
        %2254 = vmatpush1.msra.mxu0 0.0
        %2255 = vmatprep.subr.mxu0 0.0
        %2256 = vmatpush1.msra.mxu0 0.0
        %2257 = vmatprep.subr.mxu0 0.0
        %2258 = vmatpush1.msra.mxu0 0.0
        %2259 = vmatprep.subr.mxu0 0.0
        %2260 = vmatpush1.msra.mxu0 0.0
        %2261 = vmatprep.subr.mxu0 0.0
        %2262 = vmatpush1.msra.mxu0 0.0
        %2263 = vmatprep.subr.mxu0 0.0
        %2264 = vmatpush1.msra.mxu0 0.0
        %2265 = vmatprep.subr.mxu0 0.0
        %2266 = vmatpush1.msra.mxu0 0.0
        %2267 = vmatprep.subr.mxu0 0.0
        %2268 = vmatpush1.msra.mxu0 0.0
        %2269 = vmatprep.subr.mxu0 0.0
        %2270 = vmatpush1.msra.mxu0 0.0
        %2271 = vmatprep.mubr.f32.mxu0 0.0
        %2272 = vmatmul.mubr.f32.gmra.mrb[0].mxu0 %v1787
        %v2273 = vpop.f32.mrb[0].mxu0
        %v2274 = vadd.f32 0.0, %v2273
        %v2275 = vpop.f32.mrb[0].mxu0
        %2276 = vmatprep.mubr.f32.mxu0 0.0
        %2277 = vmatmul.mubr.f32.gmra.mrb[0].mxu0 %v1789
        %v2278 = vpop.f32.mrb[0].mxu0
        %v2279 = vadd.f32 0.0, %v2278
        %v2280 = vpop.f32.mrb[0].mxu0
        %2281 = vmatprep.mubr.f32.mxu0 0.0
        %2282 = vmatmul.mubr.f32.gmra.mrb[0].mxu0 %v1791
        %v2283 = vpop.f32.mrb[0].mxu0
        %v2284 = vadd.f32 0.0, %v2283
        %v2285 = vpop.f32.mrb[0].mxu0
        %2286 = vmatprep.mubr.f32.mxu0 0.0
        %2287 = vmatmul.mubr.f32.gmra.mrb[0].mxu0 %v1793
        %v2288 = vpop.f32.mrb[0].mxu0
        %v2289 = vadd.f32 0.0, %v2288
        %v2290 = vpop.f32.mrb[0].mxu0
        %2291 = vmatprep.mubr.f32.mxu0 0.0
        %2292 = vmatmul.mubr.f32.gmra.mrb[0].mxu0 %v1795
        %v2293 = vpop.f32.mrb[0].mxu0
        %v2294 = vadd.f32 0.0, %v2293
        %v2295 = vpop.f32.mrb[0].mxu0
        %2296 = vmatprep.mubr.f32.mxu0 0.0
        %2297 = vmatmul.mubr.f32.gmra.mrb[0].mxu0 %v1797
        %v2298 = vpop.f32.mrb[0].mxu0
        %v2299 = vadd.f32 0.0, %v2298
        %v2300 = vpop.f32.mrb[0].mxu0
        %2301 = vmatprep.mubr.f32.mxu0 0.0
        %2302 = vmatmul.mubr.f32.gmra.mrb[0].mxu0 %v1799
        %v2303 = vpop.f32.mrb[0].mxu0
        %v2304 = vadd.f32 0.0, %v2303
        %v2305 = vpop.f32.mrb[0].mxu0
        %2306 = vmatprep.mubr.f32.mxu0 0.0
        %2307 = vmatmul.mubr.f32.gmra.mrb[0].mxu0 %v2202
        %v2308 = vpop.f32.mrb[0].mxu0
        %v2309 = vadd.f32 0.0, %v2308
        %v2310 = vpop.f32.mrb[0].mxu0
        %2311 = vdwg.mxu0
        %v2312 = vadd.f32 %v2188, %v2274
        %v2313 = vadd.f32 %v2189, %v2279
        %v2314 = vadd.f32 %v2190, %v2284
        %v2315 = vadd.f32 %v2191, %v2289
        %v2316 = vadd.f32 %v2192, %v2294
        %v2317 = vadd.f32 %v2193, %v2299
        %v2318 = vadd.f32 %v2194, %v2304
        %v2319 = vadd.f32 %v2195, %v2309
        %v2320 = vrot.slane %v396, 2
        %v2321 = vrot.slane %v397, 2
        %v2322 = vsel %vm714, %v2320, %v2321
        %s2323 = scalar_lea.vmem %s3, 56
        %v2324 = vld [vmem:[%s2323] sm:$0xf]
        %v2325 = vsel %vm464, %v2322, 0
        %v2328 = vsel %vm481, %v2324, 0
        %2330 = vmatprep.subr.mxu0 0.0
        %2331 = vmatpush1.msra.mxu0 %v2328
        %2332 = vmatprep.subr.mxu0 0.0
        %2333 = vmatpush1.msra.mxu0 0.0
        %2334 = vmatprep.subr.mxu0 0.0
        %2335 = vmatpush1.msra.mxu0 0.0
        %2336 = vmatprep.subr.mxu0 0.0
        %2337 = vmatpush1.msra.mxu0 0.0
        %2338 = vmatprep.subr.mxu0 0.0
        %2339 = vmatpush1.msra.mxu0 0.0
        %2340 = vmatprep.subr.mxu0 0.0
        %2341 = vmatpush1.msra.mxu0 0.0
        %2342 = vmatprep.subr.mxu0 0.0
        %2343 = vmatpush1.msra.mxu0 0.0
        %2344 = vmatprep.subr.mxu0 0.0
        %2345 = vmatpush1.msra.mxu0 0.0
        %2346 = vmatprep.subr.mxu0 0.0
        %2347 = vmatpush1.msra.mxu0 0.0
        %2348 = vmatprep.subr.mxu0 0.0
        %2349 = vmatpush1.msra.mxu0 0.0
        %2350 = vmatprep.subr.mxu0 0.0
        %2351 = vmatpush1.msra.mxu0 0.0
        %2352 = vmatprep.subr.mxu0 0.0
        %2353 = vmatpush1.msra.mxu0 0.0
        %2354 = vmatprep.subr.mxu0 0.0
        %2355 = vmatpush1.msra.mxu0 0.0
        %2356 = vmatprep.subr.mxu0 0.0
        %2357 = vmatpush1.msra.mxu0 0.0
        %2358 = vmatprep.subr.mxu0 0.0
        %2359 = vmatpush1.msra.mxu0 0.0
        %2360 = vmatprep.subr.mxu0 0.0
        %2361 = vmatpush1.msra.mxu0 0.0
        %2362 = vmatprep.subr.mxu0 0.0
        %2363 = vmatpush1.msra.mxu0 0.0
        %2364 = vmatprep.subr.mxu0 0.0
        %2365 = vmatpush1.msra.mxu0 0.0
        %2366 = vmatprep.subr.mxu0 0.0
        %2367 = vmatpush1.msra.mxu0 0.0
        %2368 = vmatprep.subr.mxu0 0.0
        %2369 = vmatpush1.msra.mxu0 0.0
        %2370 = vmatprep.subr.mxu0 0.0
        %2371 = vmatpush1.msra.mxu0 0.0
        %2372 = vmatprep.subr.mxu0 0.0
        %2373 = vmatpush1.msra.mxu0 0.0
        %2374 = vmatprep.subr.mxu0 0.0
        %2375 = vmatpush1.msra.mxu0 0.0
        %2376 = vmatprep.subr.mxu0 0.0
        %2377 = vmatpush1.msra.mxu0 0.0
        %2378 = vmatprep.subr.mxu0 0.0
        %2379 = vmatpush1.msra.mxu0 0.0
        %2380 = vmatprep.subr.mxu0 0.0
        %2381 = vmatpush1.msra.mxu0 0.0
        %2382 = vmatprep.subr.mxu0 0.0
        %2383 = vmatpush1.msra.mxu0 0.0
        %2384 = vmatprep.subr.mxu0 0.0
        %2385 = vmatpush1.msra.mxu0 0.0
        %2386 = vmatprep.subr.mxu0 0.0
        %2387 = vmatpush1.msra.mxu0 0.0
        %2388 = vmatprep.subr.mxu0 0.0
        %2389 = vmatpush1.msra.mxu0 0.0
        %2390 = vmatprep.subr.mxu0 0.0
        %2391 = vmatpush1.msra.mxu0 0.0
        %2392 = vmatprep.subr.mxu0 0.0
        %2393 = vmatpush1.msra.mxu0 0.0
        %2394 = vmatprep.mubr.f32.mxu0 0.0
        %2395 = vmatmul.mubr.f32.gmra.mrb[0].mxu0 %v1945
        %v2396 = vpop.f32.mrb[0].mxu0
        %v2397 = vadd.f32 0.0, %v2396
        %v2398 = vpop.f32.mrb[0].mxu0
        %2399 = vmatprep.mubr.f32.mxu0 0.0
        %2400 = vmatmul.mubr.f32.gmra.mrb[0].mxu0 %v1947
        %v2401 = vpop.f32.mrb[0].mxu0
        %v2402 = vadd.f32 0.0, %v2401
        %v2403 = vpop.f32.mrb[0].mxu0
        %2404 = vmatprep.mubr.f32.mxu0 0.0
        %2405 = vmatmul.mubr.f32.gmra.mrb[0].mxu0 %v1949
        %v2406 = vpop.f32.mrb[0].mxu0
        %v2407 = vadd.f32 0.0, %v2406
        %v2408 = vpop.f32.mrb[0].mxu0
        %2409 = vmatprep.mubr.f32.mxu0 0.0
        %2410 = vmatmul.mubr.f32.gmra.mrb[0].mxu0 %v1951
        %v2411 = vpop.f32.mrb[0].mxu0
        %v2412 = vadd.f32 0.0, %v2411
        %v2413 = vpop.f32.mrb[0].mxu0
        %2414 = vmatprep.mubr.f32.mxu0 0.0
        %2415 = vmatmul.mubr.f32.gmra.mrb[0].mxu0 %v1953
        %v2416 = vpop.f32.mrb[0].mxu0
        %v2417 = vadd.f32 0.0, %v2416
        %v2418 = vpop.f32.mrb[0].mxu0
        %2419 = vmatprep.mubr.f32.mxu0 0.0
        %2420 = vmatmul.mubr.f32.gmra.mrb[0].mxu0 %v1955
        %v2421 = vpop.f32.mrb[0].mxu0
        %v2422 = vadd.f32 0.0, %v2421
        %v2423 = vpop.f32.mrb[0].mxu0
        %2424 = vmatprep.mubr.f32.mxu0 0.0
        %2425 = vmatmul.mubr.f32.gmra.mrb[0].mxu0 %v1957
        %v2426 = vpop.f32.mrb[0].mxu0
        %v2427 = vadd.f32 0.0, %v2426
        %v2428 = vpop.f32.mrb[0].mxu0
        %2429 = vmatprep.mubr.f32.mxu0 0.0
        %2430 = vmatmul.mubr.f32.gmra.mrb[0].mxu0 %v2325
        %v2431 = vpop.f32.mrb[0].mxu0
        %v2432 = vadd.f32 0.0, %v2431
        %v2433 = vpop.f32.mrb[0].mxu0
        %2434 = vdwg.mxu0
        %v2435 = vadd.f32 %v2312, %v2397
        %v2436 = vadd.f32 %v2313, %v2402
        %v2437 = vadd.f32 %v2314, %v2407
        %v2438 = vadd.f32 %v2315, %v2412
        %v2439 = vadd.f32 %v2316, %v2417
        %v2440 = vadd.f32 %v2317, %v2422
        %v2441 = vadd.f32 %v2318, %v2427
        %v2442 = vadd.f32 %v2319, %v2432
        %s2443 = scalar_lea.vmem %s3, 60
        %v2444 = vld [vmem:[%s2443] sm:$0xf]
        %v2446 = vsel %vm464, %v398, 0
        %v2449 = vsel %vm481, %v2444, 0
        %2451 = vmatprep.subr.mxu0 0.0
        %2452 = vmatpush1.msra.mxu0 %v2449
        %2453 = vmatprep.subr.mxu0 0.0
        %2454 = vmatpush1.msra.mxu0 0.0
        %2455 = vmatprep.subr.mxu0 0.0
        %2456 = vmatpush1.msra.mxu0 0.0
        %2457 = vmatprep.subr.mxu0 0.0
        %2458 = vmatpush1.msra.mxu0 0.0
        %2459 = vmatprep.subr.mxu0 0.0
        %2460 = vmatpush1.msra.mxu0 0.0
        %2461 = vmatprep.subr.mxu0 0.0
        %2462 = vmatpush1.msra.mxu0 0.0
        %2463 = vmatprep.subr.mxu0 0.0
        %2464 = vmatpush1.msra.mxu0 0.0
        %2465 = vmatprep.subr.mxu0 0.0
        %2466 = vmatpush1.msra.mxu0 0.0
        %2467 = vmatprep.subr.mxu0 0.0
        %2468 = vmatpush1.msra.mxu0 0.0
        %2469 = vmatprep.subr.mxu0 0.0
        %2470 = vmatpush1.msra.mxu0 0.0
        %2471 = vmatprep.subr.mxu0 0.0
        %2472 = vmatpush1.msra.mxu0 0.0
        %2473 = vmatprep.subr.mxu0 0.0
        %2474 = vmatpush1.msra.mxu0 0.0
        %2475 = vmatprep.subr.mxu0 0.0
        %2476 = vmatpush1.msra.mxu0 0.0
        %2477 = vmatprep.subr.mxu0 0.0
        %2478 = vmatpush1.msra.mxu0 0.0
        %2479 = vmatprep.subr.mxu0 0.0
        %2480 = vmatpush1.msra.mxu0 0.0
        %2481 = vmatprep.subr.mxu0 0.0
        %2482 = vmatpush1.msra.mxu0 0.0
        %2483 = vmatprep.subr.mxu0 0.0
        %2484 = vmatpush1.msra.mxu0 0.0
        %2485 = vmatprep.subr.mxu0 0.0
        %2486 = vmatpush1.msra.mxu0 0.0
        %2487 = vmatprep.subr.mxu0 0.0
        %2488 = vmatpush1.msra.mxu0 0.0
        %2489 = vmatprep.subr.mxu0 0.0
        %2490 = vmatpush1.msra.mxu0 0.0
        %2491 = vmatprep.subr.mxu0 0.0
        %2492 = vmatpush1.msra.mxu0 0.0
        %2493 = vmatprep.subr.mxu0 0.0
        %2494 = vmatpush1.msra.mxu0 0.0
        %2495 = vmatprep.subr.mxu0 0.0
        %2496 = vmatpush1.msra.mxu0 0.0
        %2497 = vmatprep.subr.mxu0 0.0
        %2498 = vmatpush1.msra.mxu0 0.0
        %2499 = vmatprep.subr.mxu0 0.0
        %2500 = vmatpush1.msra.mxu0 0.0
        %2501 = vmatprep.subr.mxu0 0.0
        %2502 = vmatpush1.msra.mxu0 0.0
        %2503 = vmatprep.subr.mxu0 0.0
        %2504 = vmatpush1.msra.mxu0 0.0
        %2505 = vmatprep.subr.mxu0 0.0
        %2506 = vmatpush1.msra.mxu0 0.0
        %2507 = vmatprep.subr.mxu0 0.0
        %2508 = vmatpush1.msra.mxu0 0.0
        %2509 = vmatprep.subr.mxu0 0.0
        %2510 = vmatpush1.msra.mxu0 0.0
        %2511 = vmatprep.subr.mxu0 0.0
        %2512 = vmatpush1.msra.mxu0 0.0
        %2513 = vmatprep.subr.mxu0 0.0
        %2514 = vmatpush1.msra.mxu0 0.0
        %2515 = vmatprep.mubr.f32.mxu0 0.0
        %2516 = vmatmul.mubr.f32.gmra.mrb[0].mxu0 %v1618
        %v2517 = vpop.f32.mrb[0].mxu0
        %v2518 = vadd.f32 0.0, %v2517
        %v2519 = vpop.f32.mrb[0].mxu0
        %2520 = vmatprep.mubr.f32.mxu0 0.0
        %2521 = vmatmul.mubr.f32.gmra.mrb[0].mxu0 %v1621
        %v2522 = vpop.f32.mrb[0].mxu0
        %v2523 = vadd.f32 0.0, %v2522
        %v2524 = vpop.f32.mrb[0].mxu0
        %2525 = vmatprep.mubr.f32.mxu0 0.0
        %2526 = vmatmul.mubr.f32.gmra.mrb[0].mxu0 %v1624
        %v2527 = vpop.f32.mrb[0].mxu0
        %v2528 = vadd.f32 0.0, %v2527
        %v2529 = vpop.f32.mrb[0].mxu0
        %2530 = vmatprep.mubr.f32.mxu0 0.0
        %2531 = vmatmul.mubr.f32.gmra.mrb[0].mxu0 %v1627
        %v2532 = vpop.f32.mrb[0].mxu0
        %v2533 = vadd.f32 0.0, %v2532
        %v2534 = vpop.f32.mrb[0].mxu0
        %2535 = vmatprep.mubr.f32.mxu0 0.0
        %2536 = vmatmul.mubr.f32.gmra.mrb[0].mxu0 %v1630
        %v2537 = vpop.f32.mrb[0].mxu0
        %v2538 = vadd.f32 0.0, %v2537
        %v2539 = vpop.f32.mrb[0].mxu0
        %2540 = vmatprep.mubr.f32.mxu0 0.0
        %2541 = vmatmul.mubr.f32.gmra.mrb[0].mxu0 %v1633
        %v2542 = vpop.f32.mrb[0].mxu0
        %v2543 = vadd.f32 0.0, %v2542
        %v2544 = vpop.f32.mrb[0].mxu0
        %2545 = vmatprep.mubr.f32.mxu0 0.0
        %2546 = vmatmul.mubr.f32.gmra.mrb[0].mxu0 %v2078
        %v2547 = vpop.f32.mrb[0].mxu0
        %v2548 = vadd.f32 0.0, %v2547
        %v2549 = vpop.f32.mrb[0].mxu0
        %2550 = vmatprep.mubr.f32.mxu0 0.0
        %2551 = vmatmul.mubr.f32.gmra.mrb[0].mxu0 %v2446
        %v2552 = vpop.f32.mrb[0].mxu0
        %v2553 = vadd.f32 0.0, %v2552
        %v2554 = vpop.f32.mrb[0].mxu0
        %2555 = vdwg.mxu0
        %v2556 = vadd.f32 %v2435, %v2518
        %v2557 = vadd.f32 %v2436, %v2523
        %v2558 = vadd.f32 %v2437, %v2528
        %v2559 = vadd.f32 %v2438, %v2533
        %v2560 = vadd.f32 %v2439, %v2538
        %v2561 = vadd.f32 %v2440, %v2543
        %v2562 = vadd.f32 %v2441, %v2548
        %v2563 = vadd.f32 %v2442, %v2553
        %v2565 = vrot.slane %v398, 1
        %v2566 = vrot.slane %v399, 1
        %v2567 = vsel %vm437, %v2565, %v2566
        %s2568 = scalar_lea.vmem %s3, 64
        %v2569 = vld [vmem:[%s2568] sm:$0xf]
        %v2570 = vsel %vm464, %v2567, 0
        %v2573 = vsel %vm481, %v2569, 0
        %2575 = vmatprep.subr.mxu0 0.0
        %2576 = vmatpush1.msra.mxu0 %v2573
        %2577 = vmatprep.subr.mxu0 0.0
        %2578 = vmatpush1.msra.mxu0 0.0
        %2579 = vmatprep.subr.mxu0 0.0
        %2580 = vmatpush1.msra.mxu0 0.0
        %2581 = vmatprep.subr.mxu0 0.0
        %2582 = vmatpush1.msra.mxu0 0.0
        %2583 = vmatprep.subr.mxu0 0.0
        %2584 = vmatpush1.msra.mxu0 0.0
        %2585 = vmatprep.subr.mxu0 0.0
        %2586 = vmatpush1.msra.mxu0 0.0
        %2587 = vmatprep.subr.mxu0 0.0
        %2588 = vmatpush1.msra.mxu0 0.0
        %2589 = vmatprep.subr.mxu0 0.0
        %2590 = vmatpush1.msra.mxu0 0.0
        %2591 = vmatprep.subr.mxu0 0.0
        %2592 = vmatpush1.msra.mxu0 0.0
        %2593 = vmatprep.subr.mxu0 0.0
        %2594 = vmatpush1.msra.mxu0 0.0
        %2595 = vmatprep.subr.mxu0 0.0
        %2596 = vmatpush1.msra.mxu0 0.0
        %2597 = vmatprep.subr.mxu0 0.0
        %2598 = vmatpush1.msra.mxu0 0.0
        %2599 = vmatprep.subr.mxu0 0.0
        %2600 = vmatpush1.msra.mxu0 0.0
        %2601 = vmatprep.subr.mxu0 0.0
        %2602 = vmatpush1.msra.mxu0 0.0
        %2603 = vmatprep.subr.mxu0 0.0
        %2604 = vmatpush1.msra.mxu0 0.0
        %2605 = vmatprep.subr.mxu0 0.0
        %2606 = vmatpush1.msra.mxu0 0.0
        %2607 = vmatprep.subr.mxu0 0.0
        %2608 = vmatpush1.msra.mxu0 0.0
        %2609 = vmatprep.subr.mxu0 0.0
        %2610 = vmatpush1.msra.mxu0 0.0
        %2611 = vmatprep.subr.mxu0 0.0
        %2612 = vmatpush1.msra.mxu0 0.0
        %2613 = vmatprep.subr.mxu0 0.0
        %2614 = vmatpush1.msra.mxu0 0.0
        %2615 = vmatprep.subr.mxu0 0.0
        %2616 = vmatpush1.msra.mxu0 0.0
        %2617 = vmatprep.subr.mxu0 0.0
        %2618 = vmatpush1.msra.mxu0 0.0
        %2619 = vmatprep.subr.mxu0 0.0
        %2620 = vmatpush1.msra.mxu0 0.0
        %2621 = vmatprep.subr.mxu0 0.0
        %2622 = vmatpush1.msra.mxu0 0.0
        %2623 = vmatprep.subr.mxu0 0.0
        %2624 = vmatpush1.msra.mxu0 0.0
        %2625 = vmatprep.subr.mxu0 0.0
        %2626 = vmatpush1.msra.mxu0 0.0
        %2627 = vmatprep.subr.mxu0 0.0
        %2628 = vmatpush1.msra.mxu0 0.0
        %2629 = vmatprep.subr.mxu0 0.0
        %2630 = vmatpush1.msra.mxu0 0.0
        %2631 = vmatprep.subr.mxu0 0.0
        %2632 = vmatpush1.msra.mxu0 0.0
        %2633 = vmatprep.subr.mxu0 0.0
        %2634 = vmatpush1.msra.mxu0 0.0
        %2635 = vmatprep.subr.mxu0 0.0
        %2636 = vmatpush1.msra.mxu0 0.0
        %2637 = vmatprep.subr.mxu0 0.0
        %2638 = vmatpush1.msra.mxu0 0.0
        %2639 = vmatprep.mubr.f32.mxu0 0.0
        %2640 = vmatmul.mubr.f32.gmra.mrb[0].mxu0 %v1789
        %v2641 = vpop.f32.mrb[0].mxu0
        %v2642 = vadd.f32 0.0, %v2641
        %v2643 = vpop.f32.mrb[0].mxu0
        %2644 = vmatprep.mubr.f32.mxu0 0.0
        %2645 = vmatmul.mubr.f32.gmra.mrb[0].mxu0 %v1791
        %v2646 = vpop.f32.mrb[0].mxu0
        %v2647 = vadd.f32 0.0, %v2646
        %v2648 = vpop.f32.mrb[0].mxu0
        %2649 = vmatprep.mubr.f32.mxu0 0.0
        %2650 = vmatmul.mubr.f32.gmra.mrb[0].mxu0 %v1793
        %v2651 = vpop.f32.mrb[0].mxu0
        %v2652 = vadd.f32 0.0, %v2651
        %v2653 = vpop.f32.mrb[0].mxu0
        %2654 = vmatprep.mubr.f32.mxu0 0.0
        %2655 = vmatmul.mubr.f32.gmra.mrb[0].mxu0 %v1795
        %v2656 = vpop.f32.mrb[0].mxu0
        %v2657 = vadd.f32 0.0, %v2656
        %v2658 = vpop.f32.mrb[0].mxu0
        %2659 = vmatprep.mubr.f32.mxu0 0.0
        %2660 = vmatmul.mubr.f32.gmra.mrb[0].mxu0 %v1797
        %v2661 = vpop.f32.mrb[0].mxu0
        %v2662 = vadd.f32 0.0, %v2661
        %v2663 = vpop.f32.mrb[0].mxu0
        %2664 = vmatprep.mubr.f32.mxu0 0.0
        %2665 = vmatmul.mubr.f32.gmra.mrb[0].mxu0 %v1799
        %v2666 = vpop.f32.mrb[0].mxu0
        %v2667 = vadd.f32 0.0, %v2666
        %v2668 = vpop.f32.mrb[0].mxu0
        %2669 = vmatprep.mubr.f32.mxu0 0.0
        %2670 = vmatmul.mubr.f32.gmra.mrb[0].mxu0 %v2202
        %v2671 = vpop.f32.mrb[0].mxu0
        %v2672 = vadd.f32 0.0, %v2671
        %v2673 = vpop.f32.mrb[0].mxu0
        %2674 = vmatprep.mubr.f32.mxu0 0.0
        %2675 = vmatmul.mubr.f32.gmra.mrb[0].mxu0 %v2570
        %v2676 = vpop.f32.mrb[0].mxu0
        %v2677 = vadd.f32 0.0, %v2676
        %v2678 = vpop.f32.mrb[0].mxu0
        %2679 = vdwg.mxu0
        %v2680 = vadd.f32 %v2556, %v2642
        %v2681 = vadd.f32 %v2557, %v2647
        %v2682 = vadd.f32 %v2558, %v2652
        %v2683 = vadd.f32 %v2559, %v2657
        %v2684 = vadd.f32 %v2560, %v2662
        %v2685 = vadd.f32 %v2561, %v2667
        %v2686 = vadd.f32 %v2562, %v2672
        %v2687 = vadd.f32 %v2563, %v2677
        %v2688 = vrot.slane %v398, 2
        %v2689 = vrot.slane %v399, 2
        %v2690 = vsel %vm714, %v2688, %v2689
        %s2691 = scalar_lea.vmem %s3, 68
        %v2692 = vld [vmem:[%s2691] sm:$0xf]
        %v2693 = vsel %vm464, %v2690, 0
        %v2696 = vsel %vm481, %v2692, 0
        %2698 = vmatprep.subr.mxu0 0.0
        %2699 = vmatpush1.msra.mxu0 %v2696
        %2700 = vmatprep.subr.mxu0 0.0
        %2701 = vmatpush1.msra.mxu0 0.0
        %2702 = vmatprep.subr.mxu0 0.0
        %2703 = vmatpush1.msra.mxu0 0.0
        %2704 = vmatprep.subr.mxu0 0.0
        %2705 = vmatpush1.msra.mxu0 0.0
        %2706 = vmatprep.subr.mxu0 0.0
        %2707 = vmatpush1.msra.mxu0 0.0
        %2708 = vmatprep.subr.mxu0 0.0
        %2709 = vmatpush1.msra.mxu0 0.0
        %2710 = vmatprep.subr.mxu0 0.0
        %2711 = vmatpush1.msra.mxu0 0.0
        %2712 = vmatprep.subr.mxu0 0.0
        %2713 = vmatpush1.msra.mxu0 0.0
        %2714 = vmatprep.subr.mxu0 0.0
        %2715 = vmatpush1.msra.mxu0 0.0
        %2716 = vmatprep.subr.mxu0 0.0
        %2717 = vmatpush1.msra.mxu0 0.0
        %2718 = vmatprep.subr.mxu0 0.0
        %2719 = vmatpush1.msra.mxu0 0.0
        %2720 = vmatprep.subr.mxu0 0.0
        %2721 = vmatpush1.msra.mxu0 0.0
        %2722 = vmatprep.subr.mxu0 0.0
        %2723 = vmatpush1.msra.mxu0 0.0
        %2724 = vmatprep.subr.mxu0 0.0
        %2725 = vmatpush1.msra.mxu0 0.0
        %2726 = vmatprep.subr.mxu0 0.0
        %2727 = vmatpush1.msra.mxu0 0.0
        %2728 = vmatprep.subr.mxu0 0.0
        %2729 = vmatpush1.msra.mxu0 0.0
        %2730 = vmatprep.subr.mxu0 0.0
        %2731 = vmatpush1.msra.mxu0 0.0
        %2732 = vmatprep.subr.mxu0 0.0
        %2733 = vmatpush1.msra.mxu0 0.0
        %2734 = vmatprep.subr.mxu0 0.0
        %2735 = vmatpush1.msra.mxu0 0.0
        %2736 = vmatprep.subr.mxu0 0.0
        %2737 = vmatpush1.msra.mxu0 0.0
        %2738 = vmatprep.subr.mxu0 0.0
        %2739 = vmatpush1.msra.mxu0 0.0
        %2740 = vmatprep.subr.mxu0 0.0
        %2741 = vmatpush1.msra.mxu0 0.0
        %2742 = vmatprep.subr.mxu0 0.0
        %2743 = vmatpush1.msra.mxu0 0.0
        %2744 = vmatprep.subr.mxu0 0.0
        %2745 = vmatpush1.msra.mxu0 0.0
        %2746 = vmatprep.subr.mxu0 0.0
        %2747 = vmatpush1.msra.mxu0 0.0
        %2748 = vmatprep.subr.mxu0 0.0
        %2749 = vmatpush1.msra.mxu0 0.0
        %2750 = vmatprep.subr.mxu0 0.0
        %2751 = vmatpush1.msra.mxu0 0.0
        %2752 = vmatprep.subr.mxu0 0.0
        %2753 = vmatpush1.msra.mxu0 0.0
        %2754 = vmatprep.subr.mxu0 0.0
        %2755 = vmatpush1.msra.mxu0 0.0
        %2756 = vmatprep.subr.mxu0 0.0
        %2757 = vmatpush1.msra.mxu0 0.0
        %2758 = vmatprep.subr.mxu0 0.0
        %2759 = vmatpush1.msra.mxu0 0.0
        %2760 = vmatprep.subr.mxu0 0.0
        %2761 = vmatpush1.msra.mxu0 0.0
        %2762 = vmatprep.mubr.f32.mxu0 0.0
        %2763 = vmatmul.mubr.f32.gmra.mrb[0].mxu0 %v1947
        %v2764 = vpop.f32.mrb[0].mxu0
        %v2765 = vadd.f32 0.0, %v2764
        %v2766 = vpop.f32.mrb[0].mxu0
        %2767 = vmatprep.mubr.f32.mxu0 0.0
        %2768 = vmatmul.mubr.f32.gmra.mrb[0].mxu0 %v1949
        %v2769 = vpop.f32.mrb[0].mxu0
        %v2770 = vadd.f32 0.0, %v2769
        %v2771 = vpop.f32.mrb[0].mxu0
        %2772 = vmatprep.mubr.f32.mxu0 0.0
        %2773 = vmatmul.mubr.f32.gmra.mrb[0].mxu0 %v1951
        %v2774 = vpop.f32.mrb[0].mxu0
        %v2775 = vadd.f32 0.0, %v2774
        %v2776 = vpop.f32.mrb[0].mxu0
        %2777 = vmatprep.mubr.f32.mxu0 0.0
        %2778 = vmatmul.mubr.f32.gmra.mrb[0].mxu0 %v1953
        %v2779 = vpop.f32.mrb[0].mxu0
        %v2780 = vadd.f32 0.0, %v2779
        %v2781 = vpop.f32.mrb[0].mxu0
        %2782 = vmatprep.mubr.f32.mxu0 0.0
        %2783 = vmatmul.mubr.f32.gmra.mrb[0].mxu0 %v1955
        %v2784 = vpop.f32.mrb[0].mxu0
        %v2785 = vadd.f32 0.0, %v2784
        %v2786 = vpop.f32.mrb[0].mxu0
        %2787 = vmatprep.mubr.f32.mxu0 0.0
        %2788 = vmatmul.mubr.f32.gmra.mrb[0].mxu0 %v1957
        %v2789 = vpop.f32.mrb[0].mxu0
        %v2790 = vadd.f32 0.0, %v2789
        %v2791 = vpop.f32.mrb[0].mxu0
        %2792 = vmatprep.mubr.f32.mxu0 0.0
        %2793 = vmatmul.mubr.f32.gmra.mrb[0].mxu0 %v2325
        %v2794 = vpop.f32.mrb[0].mxu0
        %v2795 = vadd.f32 0.0, %v2794
        %v2796 = vpop.f32.mrb[0].mxu0
        %2797 = vmatprep.mubr.f32.mxu0 0.0
        %2798 = vmatmul.mubr.f32.gmra.mrb[0].mxu0 %v2693
        %v2799 = vpop.f32.mrb[0].mxu0
        %v2800 = vadd.f32 0.0, %v2799
        %v2801 = vpop.f32.mrb[0].mxu0
        %2802 = vdwg.mxu0
        %v2803 = vadd.f32 %v2680, %v2765
        %v2804 = vadd.f32 %v2681, %v2770
        %v2805 = vadd.f32 %v2682, %v2775
        %v2806 = vadd.f32 %v2683, %v2780
        %v2807 = vadd.f32 %v2684, %v2785
        %v2808 = vadd.f32 %v2685, %v2790
        %v2809 = vadd.f32 %v2686, %v2795
        %v2810 = vadd.f32 %v2687, %v2800
        %s2811 = scalar_lea.vmem %s3, 72
        %v2812 = vld [vmem:[%s2811] sm:$0xf]
        %v2814 = vsel %vm464, %v400, 0
        %v2817 = vsel %vm464, %v402, 0
        %v2820 = vsel %vm464, %v404, 0
        %v2823 = vsel %vm464, %v406, 0
        %v2826 = vsel %vm464, %v408, 0
        %v2829 = vsel %vm464, %v410, 0
        %v2832 = vsel %vm464, %v412, 0
        %v2835 = vsel %vm464, %v414, 0
        %v2838 = vsel %vm481, %v2812, 0
        %2840 = vmatprep.subr.mxu0 0.0
        %2841 = vmatpush1.msra.mxu0 %v2838
        %2842 = vmatprep.subr.mxu0 0.0
        %2843 = vmatpush1.msra.mxu0 0.0
        %2844 = vmatprep.subr.mxu0 0.0
        %2845 = vmatpush1.msra.mxu0 0.0
        %2846 = vmatprep.subr.mxu0 0.0
        %2847 = vmatpush1.msra.mxu0 0.0
        %2848 = vmatprep.subr.mxu0 0.0
        %2849 = vmatpush1.msra.mxu0 0.0
        %2850 = vmatprep.subr.mxu0 0.0
        %2851 = vmatpush1.msra.mxu0 0.0
        %2852 = vmatprep.subr.mxu0 0.0
        %2853 = vmatpush1.msra.mxu0 0.0
        %2854 = vmatprep.subr.mxu0 0.0
        %2855 = vmatpush1.msra.mxu0 0.0
        %2856 = vmatprep.subr.mxu0 0.0
        %2857 = vmatpush1.msra.mxu0 0.0
        %2858 = vmatprep.subr.mxu0 0.0
        %2859 = vmatpush1.msra.mxu0 0.0
        %2860 = vmatprep.subr.mxu0 0.0
        %2861 = vmatpush1.msra.mxu0 0.0
        %2862 = vmatprep.subr.mxu0 0.0
        %2863 = vmatpush1.msra.mxu0 0.0
        %2864 = vmatprep.subr.mxu0 0.0
        %2865 = vmatpush1.msra.mxu0 0.0
        %2866 = vmatprep.subr.mxu0 0.0
        %2867 = vmatpush1.msra.mxu0 0.0
        %2868 = vmatprep.subr.mxu0 0.0
        %2869 = vmatpush1.msra.mxu0 0.0
        %2870 = vmatprep.subr.mxu0 0.0
        %2871 = vmatpush1.msra.mxu0 0.0
        %2872 = vmatprep.subr.mxu0 0.0
        %2873 = vmatpush1.msra.mxu0 0.0
        %2874 = vmatprep.subr.mxu0 0.0
        %2875 = vmatpush1.msra.mxu0 0.0
        %2876 = vmatprep.subr.mxu0 0.0
        %2877 = vmatpush1.msra.mxu0 0.0
        %2878 = vmatprep.subr.mxu0 0.0
        %2879 = vmatpush1.msra.mxu0 0.0
        %2880 = vmatprep.subr.mxu0 0.0
        %2881 = vmatpush1.msra.mxu0 0.0
        %2882 = vmatprep.subr.mxu0 0.0
        %2883 = vmatpush1.msra.mxu0 0.0
        %2884 = vmatprep.subr.mxu0 0.0
        %2885 = vmatpush1.msra.mxu0 0.0
        %2886 = vmatprep.subr.mxu0 0.0
        %2887 = vmatpush1.msra.mxu0 0.0
        %2888 = vmatprep.subr.mxu0 0.0
        %2889 = vmatpush1.msra.mxu0 0.0
        %2890 = vmatprep.subr.mxu0 0.0
        %2891 = vmatpush1.msra.mxu0 0.0
        %2892 = vmatprep.subr.mxu0 0.0
        %2893 = vmatpush1.msra.mxu0 0.0
        %2894 = vmatprep.subr.mxu0 0.0
        %2895 = vmatpush1.msra.mxu0 0.0
        %2896 = vmatprep.subr.mxu0 0.0
        %2897 = vmatpush1.msra.mxu0 0.0
        %2898 = vmatprep.subr.mxu0 0.0
        %2899 = vmatpush1.msra.mxu0 0.0
        %2900 = vmatprep.subr.mxu0 0.0
        %2901 = vmatpush1.msra.mxu0 0.0
        %2902 = vmatprep.subr.mxu0 0.0
        %2903 = vmatpush1.msra.mxu0 0.0
        %2904 = vmatprep.mubr.f32.mxu0 0.0
        %2905 = vmatmul.mubr.f32.gmra.mrb[0].mxu0 %v2814
        %v2906 = vpop.f32.mrb[0].mxu0
        %v2907 = vadd.f32 0.0, %v2906
        %v2908 = vpop.f32.mrb[0].mxu0
        %2909 = vmatprep.mubr.f32.mxu0 0.0
        %2910 = vmatmul.mubr.f32.gmra.mrb[0].mxu0 %v2817
        %v2911 = vpop.f32.mrb[0].mxu0
        %v2912 = vadd.f32 0.0, %v2911
        %v2913 = vpop.f32.mrb[0].mxu0
        %2914 = vmatprep.mubr.f32.mxu0 0.0
        %2915 = vmatmul.mubr.f32.gmra.mrb[0].mxu0 %v2820
        %v2916 = vpop.f32.mrb[0].mxu0
        %v2917 = vadd.f32 0.0, %v2916
        %v2918 = vpop.f32.mrb[0].mxu0
        %2919 = vmatprep.mubr.f32.mxu0 0.0
        %2920 = vmatmul.mubr.f32.gmra.mrb[0].mxu0 %v2823
        %v2921 = vpop.f32.mrb[0].mxu0
        %v2922 = vadd.f32 0.0, %v2921
        %v2923 = vpop.f32.mrb[0].mxu0
        %2924 = vmatprep.mubr.f32.mxu0 0.0
        %2925 = vmatmul.mubr.f32.gmra.mrb[0].mxu0 %v2826
        %v2926 = vpop.f32.mrb[0].mxu0
        %v2927 = vadd.f32 0.0, %v2926
        %v2928 = vpop.f32.mrb[0].mxu0
        %2929 = vmatprep.mubr.f32.mxu0 0.0
        %2930 = vmatmul.mubr.f32.gmra.mrb[0].mxu0 %v2829
        %v2931 = vpop.f32.mrb[0].mxu0
        %v2932 = vadd.f32 0.0, %v2931
        %v2933 = vpop.f32.mrb[0].mxu0
        %2934 = vmatprep.mubr.f32.mxu0 0.0
        %2935 = vmatmul.mubr.f32.gmra.mrb[0].mxu0 %v2832
        %v2936 = vpop.f32.mrb[0].mxu0
        %v2937 = vadd.f32 0.0, %v2936
        %v2938 = vpop.f32.mrb[0].mxu0
        %2939 = vmatprep.mubr.f32.mxu0 0.0
        %2940 = vmatmul.mubr.f32.gmra.mrb[0].mxu0 %v2835
        %v2941 = vpop.f32.mrb[0].mxu0
        %v2942 = vadd.f32 0.0, %v2941
        %v2943 = vpop.f32.mrb[0].mxu0
        %2944 = vdwg.mxu0
        %v2945 = vadd.f32 %v2803, %v2907
        %v2946 = vadd.f32 %v2804, %v2912
        %v2947 = vadd.f32 %v2805, %v2917
        %v2948 = vadd.f32 %v2806, %v2922
        %v2949 = vadd.f32 %v2807, %v2927
        %v2950 = vadd.f32 %v2808, %v2932
        %v2951 = vadd.f32 %v2809, %v2937
        %v2952 = vadd.f32 %v2810, %v2942
        %v2961 = vrot.slane %v400, 1
        %v2962 = vrot.slane %v401, 1
        %v2963 = vsel %vm437, %v2961, %v2962
        %v2964 = vrot.slane %v402, 1
        %v2965 = vrot.slane %v403, 1
        %v2966 = vsel %vm437, %v2964, %v2965
        %v2967 = vrot.slane %v404, 1
        %v2968 = vrot.slane %v405, 1
        %v2969 = vsel %vm437, %v2967, %v2968
        %v2970 = vrot.slane %v406, 1
        %v2971 = vrot.slane %v407, 1
        %v2972 = vsel %vm437, %v2970, %v2971
        %v2973 = vrot.slane %v408, 1
        %v2974 = vrot.slane %v409, 1
        %v2975 = vsel %vm437, %v2973, %v2974
        %v2976 = vrot.slane %v410, 1
        %v2977 = vrot.slane %v411, 1
        %v2978 = vsel %vm437, %v2976, %v2977
        %v2979 = vrot.slane %v412, 1
        %v2980 = vrot.slane %v413, 1
        %v2981 = vsel %vm437, %v2979, %v2980
        %v2982 = vrot.slane %v414, 1
        %v2983 = vrot.slane %v415, 1
        %v2984 = vsel %vm437, %v2982, %v2983
        %s2985 = scalar_lea.vmem %s3, 76
        %v2986 = vld [vmem:[%s2985] sm:$0xf]
        %v2987 = vsel %vm464, %v2963, 0
        %v2989 = vsel %vm464, %v2966, 0
        %v2991 = vsel %vm464, %v2969, 0
        %v2993 = vsel %vm464, %v2972, 0
        %v2995 = vsel %vm464, %v2975, 0
        %v2997 = vsel %vm464, %v2978, 0
        %v2999 = vsel %vm464, %v2981, 0
        %v3001 = vsel %vm464, %v2984, 0
        %v3004 = vsel %vm481, %v2986, 0
        %3006 = vmatprep.subr.mxu0 0.0
        %3007 = vmatpush1.msra.mxu0 %v3004
        %3008 = vmatprep.subr.mxu0 0.0
        %3009 = vmatpush1.msra.mxu0 0.0
        %3010 = vmatprep.subr.mxu0 0.0
        %3011 = vmatpush1.msra.mxu0 0.0
        %3012 = vmatprep.subr.mxu0 0.0
        %3013 = vmatpush1.msra.mxu0 0.0
        %3014 = vmatprep.subr.mxu0 0.0
        %3015 = vmatpush1.msra.mxu0 0.0
        %3016 = vmatprep.subr.mxu0 0.0
        %3017 = vmatpush1.msra.mxu0 0.0
        %3018 = vmatprep.subr.mxu0 0.0
        %3019 = vmatpush1.msra.mxu0 0.0
        %3020 = vmatprep.subr.mxu0 0.0
        %3021 = vmatpush1.msra.mxu0 0.0
        %3022 = vmatprep.subr.mxu0 0.0
        %3023 = vmatpush1.msra.mxu0 0.0
        %3024 = vmatprep.subr.mxu0 0.0
        %3025 = vmatpush1.msra.mxu0 0.0
        %3026 = vmatprep.subr.mxu0 0.0
        %3027 = vmatpush1.msra.mxu0 0.0
        %3028 = vmatprep.subr.mxu0 0.0
        %3029 = vmatpush1.msra.mxu0 0.0
        %3030 = vmatprep.subr.mxu0 0.0
        %3031 = vmatpush1.msra.mxu0 0.0
        %3032 = vmatprep.subr.mxu0 0.0
        %3033 = vmatpush1.msra.mxu0 0.0
        %3034 = vmatprep.subr.mxu0 0.0
        %3035 = vmatpush1.msra.mxu0 0.0
        %3036 = vmatprep.subr.mxu0 0.0
        %3037 = vmatpush1.msra.mxu0 0.0
        %3038 = vmatprep.subr.mxu0 0.0
        %3039 = vmatpush1.msra.mxu0 0.0
        %3040 = vmatprep.subr.mxu0 0.0
        %3041 = vmatpush1.msra.mxu0 0.0
        %3042 = vmatprep.subr.mxu0 0.0
        %3043 = vmatpush1.msra.mxu0 0.0
        %3044 = vmatprep.subr.mxu0 0.0
        %3045 = vmatpush1.msra.mxu0 0.0
        %3046 = vmatprep.subr.mxu0 0.0
        %3047 = vmatpush1.msra.mxu0 0.0
        %3048 = vmatprep.subr.mxu0 0.0
        %3049 = vmatpush1.msra.mxu0 0.0
        %3050 = vmatprep.subr.mxu0 0.0
        %3051 = vmatpush1.msra.mxu0 0.0
        %3052 = vmatprep.subr.mxu0 0.0
        %3053 = vmatpush1.msra.mxu0 0.0
        %3054 = vmatprep.subr.mxu0 0.0
        %3055 = vmatpush1.msra.mxu0 0.0
        %3056 = vmatprep.subr.mxu0 0.0
        %3057 = vmatpush1.msra.mxu0 0.0
        %3058 = vmatprep.subr.mxu0 0.0
        %3059 = vmatpush1.msra.mxu0 0.0
        %3060 = vmatprep.subr.mxu0 0.0
        %3061 = vmatpush1.msra.mxu0 0.0
        %3062 = vmatprep.subr.mxu0 0.0
        %3063 = vmatpush1.msra.mxu0 0.0
        %3064 = vmatprep.subr.mxu0 0.0
        %3065 = vmatpush1.msra.mxu0 0.0
        %3066 = vmatprep.subr.mxu0 0.0
        %3067 = vmatpush1.msra.mxu0 0.0
        %3068 = vmatprep.subr.mxu0 0.0
        %3069 = vmatpush1.msra.mxu0 0.0
        %3070 = vmatprep.mubr.f32.mxu0 0.0
        %3071 = vmatmul.mubr.f32.gmra.mrb[0].mxu0 %v2987
        %v3072 = vpop.f32.mrb[0].mxu0
        %v3073 = vadd.f32 0.0, %v3072
        %v3074 = vpop.f32.mrb[0].mxu0
        %3075 = vmatprep.mubr.f32.mxu0 0.0
        %3076 = vmatmul.mubr.f32.gmra.mrb[0].mxu0 %v2989
        %v3077 = vpop.f32.mrb[0].mxu0
        %v3078 = vadd.f32 0.0, %v3077
        %v3079 = vpop.f32.mrb[0].mxu0
        %3080 = vmatprep.mubr.f32.mxu0 0.0
        %3081 = vmatmul.mubr.f32.gmra.mrb[0].mxu0 %v2991
        %v3082 = vpop.f32.mrb[0].mxu0
        %v3083 = vadd.f32 0.0, %v3082
        %v3084 = vpop.f32.mrb[0].mxu0
        %3085 = vmatprep.mubr.f32.mxu0 0.0
        %3086 = vmatmul.mubr.f32.gmra.mrb[0].mxu0 %v2993
        %v3087 = vpop.f32.mrb[0].mxu0
        %v3088 = vadd.f32 0.0, %v3087
        %v3089 = vpop.f32.mrb[0].mxu0
        %3090 = vmatprep.mubr.f32.mxu0 0.0
        %3091 = vmatmul.mubr.f32.gmra.mrb[0].mxu0 %v2995
        %v3092 = vpop.f32.mrb[0].mxu0
        %v3093 = vadd.f32 0.0, %v3092
        %v3094 = vpop.f32.mrb[0].mxu0
        %3095 = vmatprep.mubr.f32.mxu0 0.0
        %3096 = vmatmul.mubr.f32.gmra.mrb[0].mxu0 %v2997
        %v3097 = vpop.f32.mrb[0].mxu0
        %v3098 = vadd.f32 0.0, %v3097
        %v3099 = vpop.f32.mrb[0].mxu0
        %3100 = vmatprep.mubr.f32.mxu0 0.0
        %3101 = vmatmul.mubr.f32.gmra.mrb[0].mxu0 %v2999
        %v3102 = vpop.f32.mrb[0].mxu0
        %v3103 = vadd.f32 0.0, %v3102
        %v3104 = vpop.f32.mrb[0].mxu0
        %3105 = vmatprep.mubr.f32.mxu0 0.0
        %3106 = vmatmul.mubr.f32.gmra.mrb[0].mxu0 %v3001
        %v3107 = vpop.f32.mrb[0].mxu0
        %v3108 = vadd.f32 0.0, %v3107
        %v3109 = vpop.f32.mrb[0].mxu0
        %3110 = vdwg.mxu0
        %v3111 = vadd.f32 %v2945, %v3073
        %v3112 = vadd.f32 %v2946, %v3078
        %v3113 = vadd.f32 %v2947, %v3083
        %v3114 = vadd.f32 %v2948, %v3088
        %v3115 = vadd.f32 %v2949, %v3093
        %v3116 = vadd.f32 %v2950, %v3098
        %v3117 = vadd.f32 %v2951, %v3103
        %v3118 = vadd.f32 %v2952, %v3108
        %v3119 = vrot.slane %v400, 2
        %v3120 = vrot.slane %v401, 2
        %v3121 = vsel %vm714, %v3119, %v3120
        %v3122 = vrot.slane %v402, 2
        %v3123 = vrot.slane %v403, 2
        %v3124 = vsel %vm714, %v3122, %v3123
        %v3125 = vrot.slane %v404, 2
        %v3126 = vrot.slane %v405, 2
        %v3127 = vsel %vm714, %v3125, %v3126
        %v3128 = vrot.slane %v406, 2
        %v3129 = vrot.slane %v407, 2
        %v3130 = vsel %vm714, %v3128, %v3129
        %v3131 = vrot.slane %v408, 2
        %v3132 = vrot.slane %v409, 2
        %v3133 = vsel %vm714, %v3131, %v3132
        %v3134 = vrot.slane %v410, 2
        %v3135 = vrot.slane %v411, 2
        %v3136 = vsel %vm714, %v3134, %v3135
        %v3137 = vrot.slane %v412, 2
        %v3138 = vrot.slane %v413, 2
        %v3139 = vsel %vm714, %v3137, %v3138
        %v3140 = vrot.slane %v414, 2
        %v3141 = vrot.slane %v415, 2
        %v3142 = vsel %vm714, %v3140, %v3141
        %s3143 = scalar_lea.vmem %s3, 80
        %v3144 = vld [vmem:[%s3143] sm:$0xf]
        %v3145 = vsel %vm464, %v3121, 0
        %v3147 = vsel %vm464, %v3124, 0
        %v3149 = vsel %vm464, %v3127, 0
        %v3151 = vsel %vm464, %v3130, 0
        %v3153 = vsel %vm464, %v3133, 0
        %v3155 = vsel %vm464, %v3136, 0
        %v3157 = vsel %vm464, %v3139, 0
        %v3159 = vsel %vm464, %v3142, 0
        %v3162 = vsel %vm481, %v3144, 0
        %3164 = vmatprep.subr.mxu0 0.0
        %3165 = vmatpush1.msra.mxu0 %v3162
        %3166 = vmatprep.subr.mxu0 0.0
        %3167 = vmatpush1.msra.mxu0 0.0
        %3168 = vmatprep.subr.mxu0 0.0
        %3169 = vmatpush1.msra.mxu0 0.0
        %3170 = vmatprep.subr.mxu0 0.0
        %3171 = vmatpush1.msra.mxu0 0.0
        %3172 = vmatprep.subr.mxu0 0.0
        %3173 = vmatpush1.msra.mxu0 0.0
        %3174 = vmatprep.subr.mxu0 0.0
        %3175 = vmatpush1.msra.mxu0 0.0
        %3176 = vmatprep.subr.mxu0 0.0
        %3177 = vmatpush1.msra.mxu0 0.0
        %3178 = vmatprep.subr.mxu0 0.0
        %3179 = vmatpush1.msra.mxu0 0.0
        %3180 = vmatprep.subr.mxu0 0.0
        %3181 = vmatpush1.msra.mxu0 0.0
        %3182 = vmatprep.subr.mxu0 0.0
        %3183 = vmatpush1.msra.mxu0 0.0
        %3184 = vmatprep.subr.mxu0 0.0
        %3185 = vmatpush1.msra.mxu0 0.0
        %3186 = vmatprep.subr.mxu0 0.0
        %3187 = vmatpush1.msra.mxu0 0.0
        %3188 = vmatprep.subr.mxu0 0.0
        %3189 = vmatpush1.msra.mxu0 0.0
        %3190 = vmatprep.subr.mxu0 0.0
        %3191 = vmatpush1.msra.mxu0 0.0
        %3192 = vmatprep.subr.mxu0 0.0
        %3193 = vmatpush1.msra.mxu0 0.0
        %3194 = vmatprep.subr.mxu0 0.0
        %3195 = vmatpush1.msra.mxu0 0.0
        %3196 = vmatprep.subr.mxu0 0.0
        %3197 = vmatpush1.msra.mxu0 0.0
        %3198 = vmatprep.subr.mxu0 0.0
        %3199 = vmatpush1.msra.mxu0 0.0
        %3200 = vmatprep.subr.mxu0 0.0
        %3201 = vmatpush1.msra.mxu0 0.0
        %3202 = vmatprep.subr.mxu0 0.0
        %3203 = vmatpush1.msra.mxu0 0.0
        %3204 = vmatprep.subr.mxu0 0.0
        %3205 = vmatpush1.msra.mxu0 0.0
        %3206 = vmatprep.subr.mxu0 0.0
        %3207 = vmatpush1.msra.mxu0 0.0
        %3208 = vmatprep.subr.mxu0 0.0
        %3209 = vmatpush1.msra.mxu0 0.0
        %3210 = vmatprep.subr.mxu0 0.0
        %3211 = vmatpush1.msra.mxu0 0.0
        %3212 = vmatprep.subr.mxu0 0.0
        %3213 = vmatpush1.msra.mxu0 0.0
        %3214 = vmatprep.subr.mxu0 0.0
        %3215 = vmatpush1.msra.mxu0 0.0
        %3216 = vmatprep.subr.mxu0 0.0
        %3217 = vmatpush1.msra.mxu0 0.0
        %3218 = vmatprep.subr.mxu0 0.0
        %3219 = vmatpush1.msra.mxu0 0.0
        %3220 = vmatprep.subr.mxu0 0.0
        %3221 = vmatpush1.msra.mxu0 0.0
        %3222 = vmatprep.subr.mxu0 0.0
        %3223 = vmatpush1.msra.mxu0 0.0
        %3224 = vmatprep.subr.mxu0 0.0
        %3225 = vmatpush1.msra.mxu0 0.0
        %3226 = vmatprep.subr.mxu0 0.0
        %3227 = vmatpush1.msra.mxu0 0.0
        %3228 = vmatprep.mubr.f32.mxu0 0.0
        %3229 = vmatmul.mubr.f32.gmra.mrb[0].mxu0 %v3145
        %v3230 = vpop.f32.mrb[0].mxu0
        %v3231 = vadd.f32 0.0, %v3230
        %v3232 = vpop.f32.mrb[0].mxu0
        %3233 = vmatprep.mubr.f32.mxu0 0.0
        %3234 = vmatmul.mubr.f32.gmra.mrb[0].mxu0 %v3147
        %v3235 = vpop.f32.mrb[0].mxu0
        %v3236 = vadd.f32 0.0, %v3235
        %v3237 = vpop.f32.mrb[0].mxu0
        %3238 = vmatprep.mubr.f32.mxu0 0.0
        %3239 = vmatmul.mubr.f32.gmra.mrb[0].mxu0 %v3149
        %v3240 = vpop.f32.mrb[0].mxu0
        %v3241 = vadd.f32 0.0, %v3240
        %v3242 = vpop.f32.mrb[0].mxu0
        %3243 = vmatprep.mubr.f32.mxu0 0.0
        %3244 = vmatmul.mubr.f32.gmra.mrb[0].mxu0 %v3151
        %v3245 = vpop.f32.mrb[0].mxu0
        %v3246 = vadd.f32 0.0, %v3245
        %v3247 = vpop.f32.mrb[0].mxu0
        %3248 = vmatprep.mubr.f32.mxu0 0.0
        %3249 = vmatmul.mubr.f32.gmra.mrb[0].mxu0 %v3153
        %v3250 = vpop.f32.mrb[0].mxu0
        %v3251 = vadd.f32 0.0, %v3250
        %v3252 = vpop.f32.mrb[0].mxu0
        %3253 = vmatprep.mubr.f32.mxu0 0.0
        %3254 = vmatmul.mubr.f32.gmra.mrb[0].mxu0 %v3155
        %v3255 = vpop.f32.mrb[0].mxu0
        %v3256 = vadd.f32 0.0, %v3255
        %v3257 = vpop.f32.mrb[0].mxu0
        %3258 = vmatprep.mubr.f32.mxu0 0.0
        %3259 = vmatmul.mubr.f32.gmra.mrb[0].mxu0 %v3157
        %v3260 = vpop.f32.mrb[0].mxu0
        %v3261 = vadd.f32 0.0, %v3260
        %v3262 = vpop.f32.mrb[0].mxu0
        %3263 = vmatprep.mubr.f32.mxu0 0.0
        %3264 = vmatmul.mubr.f32.gmra.mrb[0].mxu0 %v3159
        %v3265 = vpop.f32.mrb[0].mxu0
        %v3266 = vadd.f32 0.0, %v3265
        %v3267 = vpop.f32.mrb[0].mxu0
        %3268 = vdwg.mxu0
        %v3269 = vadd.f32 %v3111, %v3231
        %v3270 = vadd.f32 %v3112, %v3236
        %v3271 = vadd.f32 %v3113, %v3241
        %v3272 = vadd.f32 %v3114, %v3246
        %v3273 = vadd.f32 %v3115, %v3251
        %v3274 = vadd.f32 %v3116, %v3256
        %v3275 = vadd.f32 %v3117, %v3261
        %v3276 = vadd.f32 %v3118, %v3266
        %s3277 = scalar_lea.vmem %s3, 84
        %v3278 = vld [vmem:[%s3277] sm:$0xf]
        %v3280 = vsel %vm464, %v416, 0
        %v3283 = vsel %vm481, %v3278, 0
        %3285 = vmatprep.subr.mxu0 0.0
        %3286 = vmatpush1.msra.mxu0 %v3283
        %3287 = vmatprep.subr.mxu0 0.0
        %3288 = vmatpush1.msra.mxu0 0.0
        %3289 = vmatprep.subr.mxu0 0.0
        %3290 = vmatpush1.msra.mxu0 0.0
        %3291 = vmatprep.subr.mxu0 0.0
        %3292 = vmatpush1.msra.mxu0 0.0
        %3293 = vmatprep.subr.mxu0 0.0
        %3294 = vmatpush1.msra.mxu0 0.0
        %3295 = vmatprep.subr.mxu0 0.0
        %3296 = vmatpush1.msra.mxu0 0.0
        %3297 = vmatprep.subr.mxu0 0.0
        %3298 = vmatpush1.msra.mxu0 0.0
        %3299 = vmatprep.subr.mxu0 0.0
        %3300 = vmatpush1.msra.mxu0 0.0
        %3301 = vmatprep.subr.mxu0 0.0
        %3302 = vmatpush1.msra.mxu0 0.0
        %3303 = vmatprep.subr.mxu0 0.0
        %3304 = vmatpush1.msra.mxu0 0.0
        %3305 = vmatprep.subr.mxu0 0.0
        %3306 = vmatpush1.msra.mxu0 0.0
        %3307 = vmatprep.subr.mxu0 0.0
        %3308 = vmatpush1.msra.mxu0 0.0
        %3309 = vmatprep.subr.mxu0 0.0
        %3310 = vmatpush1.msra.mxu0 0.0
        %3311 = vmatprep.subr.mxu0 0.0
        %3312 = vmatpush1.msra.mxu0 0.0
        %3313 = vmatprep.subr.mxu0 0.0
        %3314 = vmatpush1.msra.mxu0 0.0
        %3315 = vmatprep.subr.mxu0 0.0
        %3316 = vmatpush1.msra.mxu0 0.0
        %3317 = vmatprep.subr.mxu0 0.0
        %3318 = vmatpush1.msra.mxu0 0.0
        %3319 = vmatprep.subr.mxu0 0.0
        %3320 = vmatpush1.msra.mxu0 0.0
        %3321 = vmatprep.subr.mxu0 0.0
        %3322 = vmatpush1.msra.mxu0 0.0
        %3323 = vmatprep.subr.mxu0 0.0
        %3324 = vmatpush1.msra.mxu0 0.0
        %3325 = vmatprep.subr.mxu0 0.0
        %3326 = vmatpush1.msra.mxu0 0.0
        %3327 = vmatprep.subr.mxu0 0.0
        %3328 = vmatpush1.msra.mxu0 0.0
        %3329 = vmatprep.subr.mxu0 0.0
        %3330 = vmatpush1.msra.mxu0 0.0
        %3331 = vmatprep.subr.mxu0 0.0
        %3332 = vmatpush1.msra.mxu0 0.0
        %3333 = vmatprep.subr.mxu0 0.0
        %3334 = vmatpush1.msra.mxu0 0.0
        %3335 = vmatprep.subr.mxu0 0.0
        %3336 = vmatpush1.msra.mxu0 0.0
        %3337 = vmatprep.subr.mxu0 0.0
        %3338 = vmatpush1.msra.mxu0 0.0
        %3339 = vmatprep.subr.mxu0 0.0
        %3340 = vmatpush1.msra.mxu0 0.0
        %3341 = vmatprep.subr.mxu0 0.0
        %3342 = vmatpush1.msra.mxu0 0.0
        %3343 = vmatprep.subr.mxu0 0.0
        %3344 = vmatpush1.msra.mxu0 0.0
        %3345 = vmatprep.subr.mxu0 0.0
        %3346 = vmatpush1.msra.mxu0 0.0
        %3347 = vmatprep.subr.mxu0 0.0
        %3348 = vmatpush1.msra.mxu0 0.0
        %3349 = vmatprep.mubr.f32.mxu0 0.0
        %3350 = vmatmul.mubr.f32.gmra.mrb[0].mxu0 %v2817
        %v3351 = vpop.f32.mrb[0].mxu0
        %v3352 = vadd.f32 0.0, %v3351
        %v3353 = vpop.f32.mrb[0].mxu0
        %3354 = vmatprep.mubr.f32.mxu0 0.0
        %3355 = vmatmul.mubr.f32.gmra.mrb[0].mxu0 %v2820
        %v3356 = vpop.f32.mrb[0].mxu0
        %v3357 = vadd.f32 0.0, %v3356
        %v3358 = vpop.f32.mrb[0].mxu0
        %3359 = vmatprep.mubr.f32.mxu0 0.0
        %3360 = vmatmul.mubr.f32.gmra.mrb[0].mxu0 %v2823
        %v3361 = vpop.f32.mrb[0].mxu0
        %v3362 = vadd.f32 0.0, %v3361
        %v3363 = vpop.f32.mrb[0].mxu0
        %3364 = vmatprep.mubr.f32.mxu0 0.0
        %3365 = vmatmul.mubr.f32.gmra.mrb[0].mxu0 %v2826
        %v3366 = vpop.f32.mrb[0].mxu0
        %v3367 = vadd.f32 0.0, %v3366
        %v3368 = vpop.f32.mrb[0].mxu0
        %3369 = vmatprep.mubr.f32.mxu0 0.0
        %3370 = vmatmul.mubr.f32.gmra.mrb[0].mxu0 %v2829
        %v3371 = vpop.f32.mrb[0].mxu0
        %v3372 = vadd.f32 0.0, %v3371
        %v3373 = vpop.f32.mrb[0].mxu0
        %3374 = vmatprep.mubr.f32.mxu0 0.0
        %3375 = vmatmul.mubr.f32.gmra.mrb[0].mxu0 %v2832
        %v3376 = vpop.f32.mrb[0].mxu0
        %v3377 = vadd.f32 0.0, %v3376
        %v3378 = vpop.f32.mrb[0].mxu0
        %3379 = vmatprep.mubr.f32.mxu0 0.0
        %3380 = vmatmul.mubr.f32.gmra.mrb[0].mxu0 %v2835
        %v3381 = vpop.f32.mrb[0].mxu0
        %v3382 = vadd.f32 0.0, %v3381
        %v3383 = vpop.f32.mrb[0].mxu0
        %3384 = vmatprep.mubr.f32.mxu0 0.0
        %3385 = vmatmul.mubr.f32.gmra.mrb[0].mxu0 %v3280
        %v3386 = vpop.f32.mrb[0].mxu0
        %v3387 = vadd.f32 0.0, %v3386
        %v3388 = vpop.f32.mrb[0].mxu0
        %3389 = vdwg.mxu0
        %v3390 = vadd.f32 %v3269, %v3352
        %v3391 = vadd.f32 %v3270, %v3357
        %v3392 = vadd.f32 %v3271, %v3362
        %v3393 = vadd.f32 %v3272, %v3367
        %v3394 = vadd.f32 %v3273, %v3372
        %v3395 = vadd.f32 %v3274, %v3377
        %v3396 = vadd.f32 %v3275, %v3382
        %v3397 = vadd.f32 %v3276, %v3387
        %v3399 = vrot.slane %v416, 1
        %v3400 = vrot.slane %v417, 1
        %v3401 = vsel %vm437, %v3399, %v3400
        %s3402 = scalar_lea.vmem %s3, 88
        %v3403 = vld [vmem:[%s3402] sm:$0xf]
        %v3404 = vsel %vm464, %v3401, 0
        %v3407 = vsel %vm481, %v3403, 0
        %3409 = vmatprep.subr.mxu0 0.0
        %3410 = vmatpush1.msra.mxu0 %v3407
        %3411 = vmatprep.subr.mxu0 0.0
        %3412 = vmatpush1.msra.mxu0 0.0
        %3413 = vmatprep.subr.mxu0 0.0
        %3414 = vmatpush1.msra.mxu0 0.0
        %3415 = vmatprep.subr.mxu0 0.0
        %3416 = vmatpush1.msra.mxu0 0.0
        %3417 = vmatprep.subr.mxu0 0.0
        %3418 = vmatpush1.msra.mxu0 0.0
        %3419 = vmatprep.subr.mxu0 0.0
        %3420 = vmatpush1.msra.mxu0 0.0
        %3421 = vmatprep.subr.mxu0 0.0
        %3422 = vmatpush1.msra.mxu0 0.0
        %3423 = vmatprep.subr.mxu0 0.0
        %3424 = vmatpush1.msra.mxu0 0.0
        %3425 = vmatprep.subr.mxu0 0.0
        %3426 = vmatpush1.msra.mxu0 0.0
        %3427 = vmatprep.subr.mxu0 0.0
        %3428 = vmatpush1.msra.mxu0 0.0
        %3429 = vmatprep.subr.mxu0 0.0
        %3430 = vmatpush1.msra.mxu0 0.0
        %3431 = vmatprep.subr.mxu0 0.0
        %3432 = vmatpush1.msra.mxu0 0.0
        %3433 = vmatprep.subr.mxu0 0.0
        %3434 = vmatpush1.msra.mxu0 0.0
        %3435 = vmatprep.subr.mxu0 0.0
        %3436 = vmatpush1.msra.mxu0 0.0
        %3437 = vmatprep.subr.mxu0 0.0
        %3438 = vmatpush1.msra.mxu0 0.0
        %3439 = vmatprep.subr.mxu0 0.0
        %3440 = vmatpush1.msra.mxu0 0.0
        %3441 = vmatprep.subr.mxu0 0.0
        %3442 = vmatpush1.msra.mxu0 0.0
        %3443 = vmatprep.subr.mxu0 0.0
        %3444 = vmatpush1.msra.mxu0 0.0
        %3445 = vmatprep.subr.mxu0 0.0
        %3446 = vmatpush1.msra.mxu0 0.0
        %3447 = vmatprep.subr.mxu0 0.0
        %3448 = vmatpush1.msra.mxu0 0.0
        %3449 = vmatprep.subr.mxu0 0.0
        %3450 = vmatpush1.msra.mxu0 0.0
        %3451 = vmatprep.subr.mxu0 0.0
        %3452 = vmatpush1.msra.mxu0 0.0
        %3453 = vmatprep.subr.mxu0 0.0
        %3454 = vmatpush1.msra.mxu0 0.0
        %3455 = vmatprep.subr.mxu0 0.0
        %3456 = vmatpush1.msra.mxu0 0.0
        %3457 = vmatprep.subr.mxu0 0.0
        %3458 = vmatpush1.msra.mxu0 0.0
        %3459 = vmatprep.subr.mxu0 0.0
        %3460 = vmatpush1.msra.mxu0 0.0
        %3461 = vmatprep.subr.mxu0 0.0
        %3462 = vmatpush1.msra.mxu0 0.0
        %3463 = vmatprep.subr.mxu0 0.0
        %3464 = vmatpush1.msra.mxu0 0.0
        %3465 = vmatprep.subr.mxu0 0.0
        %3466 = vmatpush1.msra.mxu0 0.0
        %3467 = vmatprep.subr.mxu0 0.0
        %3468 = vmatpush1.msra.mxu0 0.0
        %3469 = vmatprep.subr.mxu0 0.0
        %3470 = vmatpush1.msra.mxu0 0.0
        %3471 = vmatprep.subr.mxu0 0.0
        %3472 = vmatpush1.msra.mxu0 0.0
        %3473 = vmatprep.mubr.f32.mxu0 0.0
        %3474 = vmatmul.mubr.f32.gmra.mrb[0].mxu0 %v2989
        %v3475 = vpop.f32.mrb[0].mxu0
        %v3476 = vadd.f32 0.0, %v3475
        %v3477 = vpop.f32.mrb[0].mxu0
        %3478 = vmatprep.mubr.f32.mxu0 0.0
        %3479 = vmatmul.mubr.f32.gmra.mrb[0].mxu0 %v2991
        %v3480 = vpop.f32.mrb[0].mxu0
        %v3481 = vadd.f32 0.0, %v3480
        %v3482 = vpop.f32.mrb[0].mxu0
        %3483 = vmatprep.mubr.f32.mxu0 0.0
        %3484 = vmatmul.mubr.f32.gmra.mrb[0].mxu0 %v2993
        %v3485 = vpop.f32.mrb[0].mxu0
        %v3486 = vadd.f32 0.0, %v3485
        %v3487 = vpop.f32.mrb[0].mxu0
        %3488 = vmatprep.mubr.f32.mxu0 0.0
        %3489 = vmatmul.mubr.f32.gmra.mrb[0].mxu0 %v2995
        %v3490 = vpop.f32.mrb[0].mxu0
        %v3491 = vadd.f32 0.0, %v3490
        %v3492 = vpop.f32.mrb[0].mxu0
        %3493 = vmatprep.mubr.f32.mxu0 0.0
        %3494 = vmatmul.mubr.f32.gmra.mrb[0].mxu0 %v2997
        %v3495 = vpop.f32.mrb[0].mxu0
        %v3496 = vadd.f32 0.0, %v3495
        %v3497 = vpop.f32.mrb[0].mxu0
        %3498 = vmatprep.mubr.f32.mxu0 0.0
        %3499 = vmatmul.mubr.f32.gmra.mrb[0].mxu0 %v2999
        %v3500 = vpop.f32.mrb[0].mxu0
        %v3501 = vadd.f32 0.0, %v3500
        %v3502 = vpop.f32.mrb[0].mxu0
        %3503 = vmatprep.mubr.f32.mxu0 0.0
        %3504 = vmatmul.mubr.f32.gmra.mrb[0].mxu0 %v3001
        %v3505 = vpop.f32.mrb[0].mxu0
        %v3506 = vadd.f32 0.0, %v3505
        %v3507 = vpop.f32.mrb[0].mxu0
        %3508 = vmatprep.mubr.f32.mxu0 0.0
        %3509 = vmatmul.mubr.f32.gmra.mrb[0].mxu0 %v3404
        %v3510 = vpop.f32.mrb[0].mxu0
        %v3511 = vadd.f32 0.0, %v3510
        %v3512 = vpop.f32.mrb[0].mxu0
        %3513 = vdwg.mxu0
        %v3514 = vadd.f32 %v3390, %v3476
        %v3515 = vadd.f32 %v3391, %v3481
        %v3516 = vadd.f32 %v3392, %v3486
        %v3517 = vadd.f32 %v3393, %v3491
        %v3518 = vadd.f32 %v3394, %v3496
        %v3519 = vadd.f32 %v3395, %v3501
        %v3520 = vadd.f32 %v3396, %v3506
        %v3521 = vadd.f32 %v3397, %v3511
        %v3522 = vrot.slane %v416, 2
        %v3523 = vrot.slane %v417, 2
        %v3524 = vsel %vm714, %v3522, %v3523
        %s3525 = scalar_lea.vmem %s3, 92
        %v3526 = vld [vmem:[%s3525] sm:$0xf]
        %v3527 = vsel %vm464, %v3524, 0
        %v3530 = vsel %vm481, %v3526, 0
        %3532 = vmatprep.subr.mxu0 0.0
        %3533 = vmatpush1.msra.mxu0 %v3530
        %3534 = vmatprep.subr.mxu0 0.0
        %3535 = vmatpush1.msra.mxu0 0.0
        %3536 = vmatprep.subr.mxu0 0.0
        %3537 = vmatpush1.msra.mxu0 0.0
        %3538 = vmatprep.subr.mxu0 0.0
        %3539 = vmatpush1.msra.mxu0 0.0
        %3540 = vmatprep.subr.mxu0 0.0
        %3541 = vmatpush1.msra.mxu0 0.0
        %3542 = vmatprep.subr.mxu0 0.0
        %3543 = vmatpush1.msra.mxu0 0.0
        %3544 = vmatprep.subr.mxu0 0.0
        %3545 = vmatpush1.msra.mxu0 0.0
        %3546 = vmatprep.subr.mxu0 0.0
        %3547 = vmatpush1.msra.mxu0 0.0
        %3548 = vmatprep.subr.mxu0 0.0
        %3549 = vmatpush1.msra.mxu0 0.0
        %3550 = vmatprep.subr.mxu0 0.0
        %3551 = vmatpush1.msra.mxu0 0.0
        %3552 = vmatprep.subr.mxu0 0.0
        %3553 = vmatpush1.msra.mxu0 0.0
        %3554 = vmatprep.subr.mxu0 0.0
        %3555 = vmatpush1.msra.mxu0 0.0
        %3556 = vmatprep.subr.mxu0 0.0
        %3557 = vmatpush1.msra.mxu0 0.0
        %3558 = vmatprep.subr.mxu0 0.0
        %3559 = vmatpush1.msra.mxu0 0.0
        %3560 = vmatprep.subr.mxu0 0.0
        %3561 = vmatpush1.msra.mxu0 0.0
        %3562 = vmatprep.subr.mxu0 0.0
        %3563 = vmatpush1.msra.mxu0 0.0
        %3564 = vmatprep.subr.mxu0 0.0
        %3565 = vmatpush1.msra.mxu0 0.0
        %3566 = vmatprep.subr.mxu0 0.0
        %3567 = vmatpush1.msra.mxu0 0.0
        %3568 = vmatprep.subr.mxu0 0.0
        %3569 = vmatpush1.msra.mxu0 0.0
        %3570 = vmatprep.subr.mxu0 0.0
        %3571 = vmatpush1.msra.mxu0 0.0
        %3572 = vmatprep.subr.mxu0 0.0
        %3573 = vmatpush1.msra.mxu0 0.0
        %3574 = vmatprep.subr.mxu0 0.0
        %3575 = vmatpush1.msra.mxu0 0.0
        %3576 = vmatprep.subr.mxu0 0.0
        %3577 = vmatpush1.msra.mxu0 0.0
        %3578 = vmatprep.subr.mxu0 0.0
        %3579 = vmatpush1.msra.mxu0 0.0
        %3580 = vmatprep.subr.mxu0 0.0
        %3581 = vmatpush1.msra.mxu0 0.0
        %3582 = vmatprep.subr.mxu0 0.0
        %3583 = vmatpush1.msra.mxu0 0.0
        %3584 = vmatprep.subr.mxu0 0.0
        %3585 = vmatpush1.msra.mxu0 0.0
        %3586 = vmatprep.subr.mxu0 0.0
        %3587 = vmatpush1.msra.mxu0 0.0
        %3588 = vmatprep.subr.mxu0 0.0
        %3589 = vmatpush1.msra.mxu0 0.0
        %3590 = vmatprep.subr.mxu0 0.0
        %3591 = vmatpush1.msra.mxu0 0.0
        %3592 = vmatprep.subr.mxu0 0.0
        %3593 = vmatpush1.msra.mxu0 0.0
        %3594 = vmatprep.subr.mxu0 0.0
        %3595 = vmatpush1.msra.mxu0 0.0
        %3596 = vmatprep.mubr.f32.mxu0 0.0
        %3597 = vmatmul.mubr.f32.gmra.mrb[0].mxu0 %v3147
        %v3598 = vpop.f32.mrb[0].mxu0
        %v3599 = vadd.f32 0.0, %v3598
        %v3600 = vpop.f32.mrb[0].mxu0
        %3601 = vmatprep.mubr.f32.mxu0 0.0
        %3602 = vmatmul.mubr.f32.gmra.mrb[0].mxu0 %v3149
        %v3603 = vpop.f32.mrb[0].mxu0
        %v3604 = vadd.f32 0.0, %v3603
        %v3605 = vpop.f32.mrb[0].mxu0
        %3606 = vmatprep.mubr.f32.mxu0 0.0
        %3607 = vmatmul.mubr.f32.gmra.mrb[0].mxu0 %v3151
        %v3608 = vpop.f32.mrb[0].mxu0
        %v3609 = vadd.f32 0.0, %v3608
        %v3610 = vpop.f32.mrb[0].mxu0
        %3611 = vmatprep.mubr.f32.mxu0 0.0
        %3612 = vmatmul.mubr.f32.gmra.mrb[0].mxu0 %v3153
        %v3613 = vpop.f32.mrb[0].mxu0
        %v3614 = vadd.f32 0.0, %v3613
        %v3615 = vpop.f32.mrb[0].mxu0
        %3616 = vmatprep.mubr.f32.mxu0 0.0
        %3617 = vmatmul.mubr.f32.gmra.mrb[0].mxu0 %v3155
        %v3618 = vpop.f32.mrb[0].mxu0
        %v3619 = vadd.f32 0.0, %v3618
        %v3620 = vpop.f32.mrb[0].mxu0
        %3621 = vmatprep.mubr.f32.mxu0 0.0
        %3622 = vmatmul.mubr.f32.gmra.mrb[0].mxu0 %v3157
        %v3623 = vpop.f32.mrb[0].mxu0
        %v3624 = vadd.f32 0.0, %v3623
        %v3625 = vpop.f32.mrb[0].mxu0
        %3626 = vmatprep.mubr.f32.mxu0 0.0
        %3627 = vmatmul.mubr.f32.gmra.mrb[0].mxu0 %v3159
        %v3628 = vpop.f32.mrb[0].mxu0
        %v3629 = vadd.f32 0.0, %v3628
        %v3630 = vpop.f32.mrb[0].mxu0
        %3631 = vmatprep.mubr.f32.mxu0 0.0
        %3632 = vmatmul.mubr.f32.gmra.mrb[0].mxu0 %v3527
        %v3633 = vpop.f32.mrb[0].mxu0
        %v3634 = vadd.f32 0.0, %v3633
        %v3635 = vpop.f32.mrb[0].mxu0
        %3636 = vdwg.mxu0
        %v3637 = vadd.f32 %v3514, %v3599
        %v3638 = vadd.f32 %v3515, %v3604
        %v3639 = vadd.f32 %v3516, %v3609
        %v3640 = vadd.f32 %v3517, %v3614
        %v3641 = vadd.f32 %v3518, %v3619
        %v3642 = vadd.f32 %v3519, %v3624
        %v3643 = vadd.f32 %v3520, %v3629
        %v3644 = vadd.f32 %v3521, %v3634
        %s3645 = scalar_lea.vmem %s3, 96
        %v3646 = vld [vmem:[%s3645] sm:$0xf]
        %v3648 = vsel %vm464, %v418, 0
        %v3651 = vsel %vm481, %v3646, 0
        %3653 = vmatprep.subr.mxu0 0.0
        %3654 = vmatpush1.msra.mxu0 %v3651
        %3655 = vmatprep.subr.mxu0 0.0
        %3656 = vmatpush1.msra.mxu0 0.0
        %3657 = vmatprep.subr.mxu0 0.0
        %3658 = vmatpush1.msra.mxu0 0.0
        %3659 = vmatprep.subr.mxu0 0.0
        %3660 = vmatpush1.msra.mxu0 0.0
        %3661 = vmatprep.subr.mxu0 0.0
        %3662 = vmatpush1.msra.mxu0 0.0
        %3663 = vmatprep.subr.mxu0 0.0
        %3664 = vmatpush1.msra.mxu0 0.0
        %3665 = vmatprep.subr.mxu0 0.0
        %3666 = vmatpush1.msra.mxu0 0.0
        %3667 = vmatprep.subr.mxu0 0.0
        %3668 = vmatpush1.msra.mxu0 0.0
        %3669 = vmatprep.subr.mxu0 0.0
        %3670 = vmatpush1.msra.mxu0 0.0
        %3671 = vmatprep.subr.mxu0 0.0
        %3672 = vmatpush1.msra.mxu0 0.0
        %3673 = vmatprep.subr.mxu0 0.0
        %3674 = vmatpush1.msra.mxu0 0.0
        %3675 = vmatprep.subr.mxu0 0.0
        %3676 = vmatpush1.msra.mxu0 0.0
        %3677 = vmatprep.subr.mxu0 0.0
        %3678 = vmatpush1.msra.mxu0 0.0
        %3679 = vmatprep.subr.mxu0 0.0
        %3680 = vmatpush1.msra.mxu0 0.0
        %3681 = vmatprep.subr.mxu0 0.0
        %3682 = vmatpush1.msra.mxu0 0.0
        %3683 = vmatprep.subr.mxu0 0.0
        %3684 = vmatpush1.msra.mxu0 0.0
        %3685 = vmatprep.subr.mxu0 0.0
        %3686 = vmatpush1.msra.mxu0 0.0
        %3687 = vmatprep.subr.mxu0 0.0
        %3688 = vmatpush1.msra.mxu0 0.0
        %3689 = vmatprep.subr.mxu0 0.0
        %3690 = vmatpush1.msra.mxu0 0.0
        %3691 = vmatprep.subr.mxu0 0.0
        %3692 = vmatpush1.msra.mxu0 0.0
        %3693 = vmatprep.subr.mxu0 0.0
        %3694 = vmatpush1.msra.mxu0 0.0
        %3695 = vmatprep.subr.mxu0 0.0
        %3696 = vmatpush1.msra.mxu0 0.0
        %3697 = vmatprep.subr.mxu0 0.0
        %3698 = vmatpush1.msra.mxu0 0.0
        %3699 = vmatprep.subr.mxu0 0.0
        %3700 = vmatpush1.msra.mxu0 0.0
        %3701 = vmatprep.subr.mxu0 0.0
        %3702 = vmatpush1.msra.mxu0 0.0
        %3703 = vmatprep.subr.mxu0 0.0
        %3704 = vmatpush1.msra.mxu0 0.0
        %3705 = vmatprep.subr.mxu0 0.0
        %3706 = vmatpush1.msra.mxu0 0.0
        %3707 = vmatprep.subr.mxu0 0.0
        %3708 = vmatpush1.msra.mxu0 0.0
        %3709 = vmatprep.subr.mxu0 0.0
        %3710 = vmatpush1.msra.mxu0 0.0
        %3711 = vmatprep.subr.mxu0 0.0
        %3712 = vmatpush1.msra.mxu0 0.0
        %3713 = vmatprep.subr.mxu0 0.0
        %3714 = vmatpush1.msra.mxu0 0.0
        %3715 = vmatprep.subr.mxu0 0.0
        %3716 = vmatpush1.msra.mxu0 0.0
        %3717 = vmatprep.mubr.f32.mxu0 0.0
        %3718 = vmatmul.mubr.f32.gmra.mrb[0].mxu0 %v2820
        %v3719 = vpop.f32.mrb[0].mxu0
        %v3720 = vadd.f32 0.0, %v3719
        %v3721 = vpop.f32.mrb[0].mxu0
        %3722 = vmatprep.mubr.f32.mxu0 0.0
        %3723 = vmatmul.mubr.f32.gmra.mrb[0].mxu0 %v2823
        %v3724 = vpop.f32.mrb[0].mxu0
        %v3725 = vadd.f32 0.0, %v3724
        %v3726 = vpop.f32.mrb[0].mxu0
        %3727 = vmatprep.mubr.f32.mxu0 0.0
        %3728 = vmatmul.mubr.f32.gmra.mrb[0].mxu0 %v2826
        %v3729 = vpop.f32.mrb[0].mxu0
        %v3730 = vadd.f32 0.0, %v3729
        %v3731 = vpop.f32.mrb[0].mxu0
        %3732 = vmatprep.mubr.f32.mxu0 0.0
        %3733 = vmatmul.mubr.f32.gmra.mrb[0].mxu0 %v2829
        %v3734 = vpop.f32.mrb[0].mxu0
        %v3735 = vadd.f32 0.0, %v3734
        %v3736 = vpop.f32.mrb[0].mxu0
        %3737 = vmatprep.mubr.f32.mxu0 0.0
        %3738 = vmatmul.mubr.f32.gmra.mrb[0].mxu0 %v2832
        %v3739 = vpop.f32.mrb[0].mxu0
        %v3740 = vadd.f32 0.0, %v3739
        %v3741 = vpop.f32.mrb[0].mxu0
        %3742 = vmatprep.mubr.f32.mxu0 0.0
        %3743 = vmatmul.mubr.f32.gmra.mrb[0].mxu0 %v2835
        %v3744 = vpop.f32.mrb[0].mxu0
        %v3745 = vadd.f32 0.0, %v3744
        %v3746 = vpop.f32.mrb[0].mxu0
        %3747 = vmatprep.mubr.f32.mxu0 0.0
        %3748 = vmatmul.mubr.f32.gmra.mrb[0].mxu0 %v3280
        %v3749 = vpop.f32.mrb[0].mxu0
        %v3750 = vadd.f32 0.0, %v3749
        %v3751 = vpop.f32.mrb[0].mxu0
        %3752 = vmatprep.mubr.f32.mxu0 0.0
        %3753 = vmatmul.mubr.f32.gmra.mrb[0].mxu0 %v3648
        %v3754 = vpop.f32.mrb[0].mxu0
        %v3755 = vadd.f32 0.0, %v3754
        %v3756 = vpop.f32.mrb[0].mxu0
        %3757 = vdwg.mxu0
        %v3758 = vadd.f32 %v3637, %v3720
        %v3759 = vadd.f32 %v3638, %v3725
        %v3760 = vadd.f32 %v3639, %v3730
        %v3761 = vadd.f32 %v3640, %v3735
        %v3762 = vadd.f32 %v3641, %v3740
        %v3763 = vadd.f32 %v3642, %v3745
        %v3764 = vadd.f32 %v3643, %v3750
        %v3765 = vadd.f32 %v3644, %v3755
        %v3767 = vrot.slane %v418, 1
        %v3768 = vrot.slane %v419, 1
        %v3769 = vsel %vm437, %v3767, %v3768
        %s3770 = scalar_lea.vmem %s3, 100
        %v3771 = vld [vmem:[%s3770] sm:$0xf]
        %v3772 = vsel %vm464, %v3769, 0
        %v3775 = vsel %vm481, %v3771, 0
        %3777 = vmatprep.subr.mxu0 0.0
        %3778 = vmatpush1.msra.mxu0 %v3775
        %3779 = vmatprep.subr.mxu0 0.0
        %3780 = vmatpush1.msra.mxu0 0.0
        %3781 = vmatprep.subr.mxu0 0.0
        %3782 = vmatpush1.msra.mxu0 0.0
        %3783 = vmatprep.subr.mxu0 0.0
        %3784 = vmatpush1.msra.mxu0 0.0
        %3785 = vmatprep.subr.mxu0 0.0
        %3786 = vmatpush1.msra.mxu0 0.0
        %3787 = vmatprep.subr.mxu0 0.0
        %3788 = vmatpush1.msra.mxu0 0.0
        %3789 = vmatprep.subr.mxu0 0.0
        %3790 = vmatpush1.msra.mxu0 0.0
        %3791 = vmatprep.subr.mxu0 0.0
        %3792 = vmatpush1.msra.mxu0 0.0
        %3793 = vmatprep.subr.mxu0 0.0
        %3794 = vmatpush1.msra.mxu0 0.0
        %3795 = vmatprep.subr.mxu0 0.0
        %3796 = vmatpush1.msra.mxu0 0.0
        %3797 = vmatprep.subr.mxu0 0.0
        %3798 = vmatpush1.msra.mxu0 0.0
        %3799 = vmatprep.subr.mxu0 0.0
        %3800 = vmatpush1.msra.mxu0 0.0
        %3801 = vmatprep.subr.mxu0 0.0
        %3802 = vmatpush1.msra.mxu0 0.0
        %3803 = vmatprep.subr.mxu0 0.0
        %3804 = vmatpush1.msra.mxu0 0.0
        %3805 = vmatprep.subr.mxu0 0.0
        %3806 = vmatpush1.msra.mxu0 0.0
        %3807 = vmatprep.subr.mxu0 0.0
        %3808 = vmatpush1.msra.mxu0 0.0
        %3809 = vmatprep.subr.mxu0 0.0
        %3810 = vmatpush1.msra.mxu0 0.0
        %3811 = vmatprep.subr.mxu0 0.0
        %3812 = vmatpush1.msra.mxu0 0.0
        %3813 = vmatprep.subr.mxu0 0.0
        %3814 = vmatpush1.msra.mxu0 0.0
        %3815 = vmatprep.subr.mxu0 0.0
        %3816 = vmatpush1.msra.mxu0 0.0
        %3817 = vmatprep.subr.mxu0 0.0
        %3818 = vmatpush1.msra.mxu0 0.0
        %3819 = vmatprep.subr.mxu0 0.0
        %3820 = vmatpush1.msra.mxu0 0.0
        %3821 = vmatprep.subr.mxu0 0.0
        %3822 = vmatpush1.msra.mxu0 0.0
        %3823 = vmatprep.subr.mxu0 0.0
        %3824 = vmatpush1.msra.mxu0 0.0
        %3825 = vmatprep.subr.mxu0 0.0
        %3826 = vmatpush1.msra.mxu0 0.0
        %3827 = vmatprep.subr.mxu0 0.0
        %3828 = vmatpush1.msra.mxu0 0.0
        %3829 = vmatprep.subr.mxu0 0.0
        %3830 = vmatpush1.msra.mxu0 0.0
        %3831 = vmatprep.subr.mxu0 0.0
        %3832 = vmatpush1.msra.mxu0 0.0
        %3833 = vmatprep.subr.mxu0 0.0
        %3834 = vmatpush1.msra.mxu0 0.0
        %3835 = vmatprep.subr.mxu0 0.0
        %3836 = vmatpush1.msra.mxu0 0.0
        %3837 = vmatprep.subr.mxu0 0.0
        %3838 = vmatpush1.msra.mxu0 0.0
        %3839 = vmatprep.subr.mxu0 0.0
        %3840 = vmatpush1.msra.mxu0 0.0
        %3841 = vmatprep.mubr.f32.mxu0 0.0
        %3842 = vmatmul.mubr.f32.gmra.mrb[0].mxu0 %v2991
        %v3843 = vpop.f32.mrb[0].mxu0
        %v3844 = vadd.f32 0.0, %v3843
        %v3845 = vpop.f32.mrb[0].mxu0
        %3846 = vmatprep.mubr.f32.mxu0 0.0
        %3847 = vmatmul.mubr.f32.gmra.mrb[0].mxu0 %v2993
        %v3848 = vpop.f32.mrb[0].mxu0
        %v3849 = vadd.f32 0.0, %v3848
        %v3850 = vpop.f32.mrb[0].mxu0
        %3851 = vmatprep.mubr.f32.mxu0 0.0
        %3852 = vmatmul.mubr.f32.gmra.mrb[0].mxu0 %v2995
        %v3853 = vpop.f32.mrb[0].mxu0
        %v3854 = vadd.f32 0.0, %v3853
        %v3855 = vpop.f32.mrb[0].mxu0
        %3856 = vmatprep.mubr.f32.mxu0 0.0
        %3857 = vmatmul.mubr.f32.gmra.mrb[0].mxu0 %v2997
        %v3858 = vpop.f32.mrb[0].mxu0
        %v3859 = vadd.f32 0.0, %v3858
        %v3860 = vpop.f32.mrb[0].mxu0
        %3861 = vmatprep.mubr.f32.mxu0 0.0
        %3862 = vmatmul.mubr.f32.gmra.mrb[0].mxu0 %v2999
        %v3863 = vpop.f32.mrb[0].mxu0
        %v3864 = vadd.f32 0.0, %v3863
        %v3865 = vpop.f32.mrb[0].mxu0
        %3866 = vmatprep.mubr.f32.mxu0 0.0
        %3867 = vmatmul.mubr.f32.gmra.mrb[0].mxu0 %v3001
        %v3868 = vpop.f32.mrb[0].mxu0
        %v3869 = vadd.f32 0.0, %v3868
        %v3870 = vpop.f32.mrb[0].mxu0
        %3871 = vmatprep.mubr.f32.mxu0 0.0
        %3872 = vmatmul.mubr.f32.gmra.mrb[0].mxu0 %v3404
        %v3873 = vpop.f32.mrb[0].mxu0
        %v3874 = vadd.f32 0.0, %v3873
        %v3875 = vpop.f32.mrb[0].mxu0
        %3876 = vmatprep.mubr.f32.mxu0 0.0
        %3877 = vmatmul.mubr.f32.gmra.mrb[0].mxu0 %v3772
        %v3878 = vpop.f32.mrb[0].mxu0
        %v3879 = vadd.f32 0.0, %v3878
        %v3880 = vpop.f32.mrb[0].mxu0
        %3881 = vdwg.mxu0
        %v3882 = vadd.f32 %v3758, %v3844
        %v3883 = vadd.f32 %v3759, %v3849
        %v3884 = vadd.f32 %v3760, %v3854
        %v3885 = vadd.f32 %v3761, %v3859
        %v3886 = vadd.f32 %v3762, %v3864
        %v3887 = vadd.f32 %v3763, %v3869
        %v3888 = vadd.f32 %v3764, %v3874
        %v3889 = vadd.f32 %v3765, %v3879
        %v3890 = vrot.slane %v418, 2
        %v3891 = vrot.slane %v419, 2
        %v3892 = vsel %vm714, %v3890, %v3891
        %s3893 = scalar_lea.vmem %s3, 104
        %v3894 = vld [vmem:[%s3893] sm:$0xf]
        %v3895 = vsel %vm464, %v3892, 0
        %v3898 = vsel %vm481, %v3894, 0
        %3900 = vmatprep.subr.mxu0 0.0
        %3901 = vmatpush1.msra.mxu0 %v3898
        %3902 = vmatprep.subr.mxu0 0.0
        %3903 = vmatpush1.msra.mxu0 0.0
        %3904 = vmatprep.subr.mxu0 0.0
        %3905 = vmatpush1.msra.mxu0 0.0
        %3906 = vmatprep.subr.mxu0 0.0
        %3907 = vmatpush1.msra.mxu0 0.0
        %3908 = vmatprep.subr.mxu0 0.0
        %3909 = vmatpush1.msra.mxu0 0.0
        %3910 = vmatprep.subr.mxu0 0.0
        %3911 = vmatpush1.msra.mxu0 0.0
        %3912 = vmatprep.subr.mxu0 0.0
        %3913 = vmatpush1.msra.mxu0 0.0
        %3914 = vmatprep.subr.mxu0 0.0
        %3915 = vmatpush1.msra.mxu0 0.0
        %3916 = vmatprep.subr.mxu0 0.0
        %3917 = vmatpush1.msra.mxu0 0.0
        %3918 = vmatprep.subr.mxu0 0.0
        %3919 = vmatpush1.msra.mxu0 0.0
        %3920 = vmatprep.subr.mxu0 0.0
        %3921 = vmatpush1.msra.mxu0 0.0
        %3922 = vmatprep.subr.mxu0 0.0
        %3923 = vmatpush1.msra.mxu0 0.0
        %3924 = vmatprep.subr.mxu0 0.0
        %3925 = vmatpush1.msra.mxu0 0.0
        %3926 = vmatprep.subr.mxu0 0.0
        %3927 = vmatpush1.msra.mxu0 0.0
        %3928 = vmatprep.subr.mxu0 0.0
        %3929 = vmatpush1.msra.mxu0 0.0
        %3930 = vmatprep.subr.mxu0 0.0
        %3931 = vmatpush1.msra.mxu0 0.0
        %3932 = vmatprep.subr.mxu0 0.0
        %3933 = vmatpush1.msra.mxu0 0.0
        %3934 = vmatprep.subr.mxu0 0.0
        %3935 = vmatpush1.msra.mxu0 0.0
        %3936 = vmatprep.subr.mxu0 0.0
        %3937 = vmatpush1.msra.mxu0 0.0
        %3938 = vmatprep.subr.mxu0 0.0
        %3939 = vmatpush1.msra.mxu0 0.0
        %3940 = vmatprep.subr.mxu0 0.0
        %3941 = vmatpush1.msra.mxu0 0.0
        %3942 = vmatprep.subr.mxu0 0.0
        %3943 = vmatpush1.msra.mxu0 0.0
        %3944 = vmatprep.subr.mxu0 0.0
        %3945 = vmatpush1.msra.mxu0 0.0
        %3946 = vmatprep.subr.mxu0 0.0
        %3947 = vmatpush1.msra.mxu0 0.0
        %3948 = vmatprep.subr.mxu0 0.0
        %3949 = vmatpush1.msra.mxu0 0.0
        %3950 = vmatprep.subr.mxu0 0.0
        %3951 = vmatpush1.msra.mxu0 0.0
        %3952 = vmatprep.subr.mxu0 0.0
        %3953 = vmatpush1.msra.mxu0 0.0
        %3954 = vmatprep.subr.mxu0 0.0
        %3955 = vmatpush1.msra.mxu0 0.0
        %3956 = vmatprep.subr.mxu0 0.0
        %3957 = vmatpush1.msra.mxu0 0.0
        %3958 = vmatprep.subr.mxu0 0.0
        %3959 = vmatpush1.msra.mxu0 0.0
        %3960 = vmatprep.subr.mxu0 0.0
        %3961 = vmatpush1.msra.mxu0 0.0
        %3962 = vmatprep.subr.mxu0 0.0
        %3963 = vmatpush1.msra.mxu0 0.0
        %3964 = vmatprep.mubr.f32.mxu0 0.0
        %3965 = vmatmul.mubr.f32.gmra.mrb[0].mxu0 %v3149
        %v3966 = vpop.f32.mrb[0].mxu0
        %v3967 = vadd.f32 0.0, %v3966
        %v3968 = vpop.f32.mrb[0].mxu0
        %3969 = vmatprep.mubr.f32.mxu0 0.0
        %3970 = vmatmul.mubr.f32.gmra.mrb[0].mxu0 %v3151
        %v3971 = vpop.f32.mrb[0].mxu0
        %v3972 = vadd.f32 0.0, %v3971
        %v3973 = vpop.f32.mrb[0].mxu0
        %3974 = vmatprep.mubr.f32.mxu0 0.0
        %3975 = vmatmul.mubr.f32.gmra.mrb[0].mxu0 %v3153
        %v3976 = vpop.f32.mrb[0].mxu0
        %v3977 = vadd.f32 0.0, %v3976
        %v3978 = vpop.f32.mrb[0].mxu0
        %3979 = vmatprep.mubr.f32.mxu0 0.0
        %3980 = vmatmul.mubr.f32.gmra.mrb[0].mxu0 %v3155
        %v3981 = vpop.f32.mrb[0].mxu0
        %v3982 = vadd.f32 0.0, %v3981
        %v3983 = vpop.f32.mrb[0].mxu0
        %3984 = vmatprep.mubr.f32.mxu0 0.0
        %3985 = vmatmul.mubr.f32.gmra.mrb[0].mxu0 %v3157
        %v3986 = vpop.f32.mrb[0].mxu0
        %v3987 = vadd.f32 0.0, %v3986
        %v3988 = vpop.f32.mrb[0].mxu0
        %3989 = vmatprep.mubr.f32.mxu0 0.0
        %3990 = vmatmul.mubr.f32.gmra.mrb[0].mxu0 %v3159
        %v3991 = vpop.f32.mrb[0].mxu0
        %v3992 = vadd.f32 0.0, %v3991
        %v3993 = vpop.f32.mrb[0].mxu0
        %3994 = vmatprep.mubr.f32.mxu0 0.0
        %3995 = vmatmul.mubr.f32.gmra.mrb[0].mxu0 %v3527
        %v3996 = vpop.f32.mrb[0].mxu0
        %v3997 = vadd.f32 0.0, %v3996
        %v3998 = vpop.f32.mrb[0].mxu0
        %3999 = vmatprep.mubr.f32.mxu0 0.0
        %4000 = vmatmul.mubr.f32.gmra.mrb[0].mxu0 %v3895
        %v4001 = vpop.f32.mrb[0].mxu0
        %v4002 = vadd.f32 0.0, %v4001
        %v4003 = vpop.f32.mrb[0].mxu0
        %4004 = vdwg.mxu0
        %v4005 = vadd.f32 %v3882, %v3967
        %v4006 = vadd.f32 %v3883, %v3972
        %v4007 = vadd.f32 %v3884, %v3977
        %v4008 = vadd.f32 %v3885, %v3982
        %v4009 = vadd.f32 %v3886, %v3987
        %v4010 = vadd.f32 %v3887, %v3992
        %v4011 = vadd.f32 %v3888, %v3997
        %v4012 = vadd.f32 %v3889, %v4002
        %v4013 = vld [vmem:[%s4] sm:$0x1]
        %v4015 = vlaneseq
        %v4016 = vshrl.u32 %v4015, 7
        %v4017 = vsub.s32 0, %v4016
        %v4018 = vrot.slane %v4013, %v4017
        %v4020 = vmul.f32 %v4005, %v4018
        %v4021 = vmul.f32 %v4006, %v4018
        %v4022 = vmul.f32 %v4007, %v4018
        %v4023 = vmul.f32 %v4008, %v4018
        %v4024 = vmul.f32 %v4009, %v4018
        %v4025 = vmul.f32 %v4010, %v4018
        %v4026 = vmul.f32 %v4011, %v4018
        %v4027 = vmul.f32 %v4012, %v4018
        %v4028 = vld [vmem:[%s5] sm:$0x1]
        %v4030 = vlaneseq
        %v4031 = vshrl.u32 %v4030, 7
        %v4032 = vsub.s32 0, %v4031
        %v4033 = vrot.slane %v4028, %v4032
        %v4035 = vadd.f32 %v4020, %v4033
        %v4036 = vadd.f32 %v4021, %v4033
        %v4037 = vadd.f32 %v4022, %v4033
        %v4038 = vadd.f32 %v4023, %v4033
        %v4039 = vadd.f32 %v4024, %v4033
        %v4040 = vadd.f32 %v4025, %v4033
        %v4041 = vadd.f32 %v4026, %v4033
        %v4042 = vadd.f32 %v4027, %v4033
        %v4043 = vmax.f32 %v4035, 0.0
        %v4044 = vmax.f32 %v4036, 0.0
        %v4045 = vmax.f32 %v4037, 0.0
        %v4046 = vmax.f32 %v4038, 0.0
        %v4047 = vmax.f32 %v4039, 0.0
        %v4048 = vmax.f32 %v4040, 0.0
        %v4049 = vmax.f32 %v4041, 0.0
        %v4050 = vmax.f32 %v4042, 0.0
        %vm4051 = vcmask 64512
        %4052 = vst.msk [vmem:[%s328] sm:$0xff] %vm4051, %v4043
        %4053 = vst.msk [vmem:[%s328 + $0x8] sm:$0xff] %vm4051, %v4044
        %4054 = vst.msk [vmem:[%s328 + $0x10] sm:$0xff] %vm4051, %v4045
        %4055 = vst.msk [vmem:[%s328 + $0x18] sm:$0xff] %vm4051, %v4046
        %4056 = vst.msk [vmem:[%s328 + $0x20] sm:$0xff] %vm4051, %v4047
        %4057 = vst.msk [vmem:[%s328 + $0x28] sm:$0xff] %vm4051, %v4048
        %4058 = vst.msk [vmem:[%s328 + $0x30] sm:$0xff] %vm4051, %v4049
        %4059 = vst.msk [vmem:[%s328 + $0x38] sm:$0xff] %vm4051, %v4050
        %s4060 = sand.u32 %s193, 1
        %s4061 = scalar_lea.sflag [#allocation3], %s4060
        %s4062 = sand.u32 %s193, 1
        %s4063 = smul.addr %s4062, 64
        %s4064 = scalar_lea.vmem [#allocation2], %s4063
        // Predicated region
        $region45: #{tpu_custom_call.1} parent=43 // pred_check
          %p4065 = pneg %p203
        $region46: #{tpu_custom_call.1} parent=43 // pred_check_branch
          %4067 = sbr.rel (%p4065) target = $region48
        $region47: #{tpu_custom_call.1} parent=43 // pred_region
          %s4069 = ssub.s32 1024, 1024
          %4070 = vsyncadd %s4061, %s4069
          %s4071 = smul.addr %s25, 8
          %s4072 = smul.addr %s24, 64
          %s4073 = sadd.s32 %s4071, %s4072
          %s4074 = smul.addr %s4073, 128
          %s4075 = scalar_lea.hbm %s6, %s4074
          %s4076 = sshll.u32 %s4064, 4
          %s4077 = int_to_ptr.vmem [resolvable:$true] %s4076
          %4082 = dma.vmem_to_hbm [thread:$0]  %s4077, 1024, %s4075, %s4061, 128, 128, 8
        $region48: #{tpu_custom_call.1} parent=43 // pred_fallthru
          _
      $region44: #{tpu_custom_call.1} parent=5 // pred_fallthru
        _
      %p4083 = scmp.le.s32.totalorder 2, %s15
      // Predicated region
      $region49: #{tpu_custom_call.1} parent=5 // pred_check
        %p4084 = pneg %p4083
      $region50: #{tpu_custom_call.1} parent=5 // pred_check_branch
        %4086 = sbr.rel (%p4084) target = $region52
      $region51: #{tpu_custom_call.1} parent=5 // pred_region
        %s4087 = ssub.s32 %s15, 2
        // Predicated region
        $region53: #{tpu_custom_call.1} parent=51 // pred_check
          %p4088 = pneg %p209
        $region54: #{tpu_custom_call.1} parent=51 // pred_check_branch
          %4090 = sbr.rel (%p4088) target = $region56
        $region55: #{tpu_custom_call.1} parent=51 // pred_region
          %s4091 = sand.u32 %s194, 1
          %s4092 = scalar_lea.sflag [#allocation3], %s4091
          %s4093 = sand.u32 %s194, 1
          %s4094 = smul.addr %s4093, 64
          %s4095 = scalar_lea.vmem [#allocation2], %s4094
          %4096 = dma.done %s4092, 1024
        $region56: #{tpu_custom_call.1} parent=51 // pred_fallthru
          _
      $region52: #{tpu_custom_call.1} parent=5 // pred_fallthru
        _
    $region6: #{tpu_custom_call.1} parent=1 // loop_footer
      %s19 = sadd.s32 1, %s15
    $region7: #{tpu_custom_call.1} parent=1 // loop_footer_branch
      %14 = sbr.rel target = $region3
    $region8: #{tpu_custom_call.1} parent=1 // loop_exit
      _
    %4097 = vsyncpa [#allocation3], 1
    %s4098 = scalar_lea.sflag [#allocation3], 1
    %4099 = vsyncpa %s4098, 1

</llo_original>
